<compile_context>
chip_gen: v5e
topology: v5e:2x2
jax: 0.10.0
libtpu: 0.0.40
codegen_flags: <defaults>
</compile_context>

<pallas_src>
import functools

import jax
import jax.numpy as jnp
from jax.experimental import pallas as pl
from jax.experimental.pallas import tpu as pltpu


def _layer_norm(x, g, b, eps=1e-6):
    # TODO(synk): eps=1e-6 matches UER; HuggingFace BERT checkpoints use 1e-12.
    mu = jnp.mean(x, axis=-1, keepdims=True)
    xc = x - mu
    var = jnp.mean(xc * xc, axis=-1, keepdims=True)
    return xc * jax.lax.rsqrt(var + eps) * g + b


# ------------- fused embedding-LN + all encoder layers (one pallas_call) -------------
def _fused_encoder_kernel(emb_ref, mask_ref, embg_ref, embb_ref,
                          wqkv_ref, bqkv_ref, wo_ref, bo_ref,
                          ln1g_ref, ln1b_ref, w1_ref, b1_ref,
                          w2_ref, b2_ref, ln2g_ref, ln2b_ref,
                          out_ref, x_vmem,
                          *, block_n, seq, hidden, num_heads, head_dim):
    layer = pl.program_id(1)

    # First layer of this N-split: embedding LayerNorm, init the resident activation scratch.
    @pl.when(layer == 0)
    def _():
        emb = emb_ref[...].astype(jnp.float32)                      # [bn, S, H]
        x_vmem[...] = _layer_norm(emb, embg_ref[...], embb_ref[...]).astype(x_vmem.dtype)

    x2 = x_vmem[...].astype(jnp.float32).reshape(block_n * seq, hidden)   # [bnS, H] f32
    xb = x2.astype(jnp.bfloat16)

    # Fused QKV projection (one MXU pass); cast to bf16 immediately after the bias add so the
    # [bnS, 3H] intermediate lives at half width (every consumer is a bf16 MXU operand).
    qkv = (jnp.dot(xb, wqkv_ref[...], preferred_element_type=jnp.float32)
           + bqkv_ref[...]).astype(jnp.bfloat16)                    # [bnS, 3H] bf16

    mask = mask_ref[...]                                            # [bn, 1, S] f32 (0 / -1e9)

    # Attention. 1/sqrt(head_dim) is already folded into the Q weights at init.
    # Each head's context is multiplied with the matching row-slab of wo and accumulated in
    # f32 -> no context scratch, no sub-lane masked stores.
    attn = None
    for h in range(num_heads):
        lo = h * head_dim
        qh = qkv[:, lo:lo + head_dim].reshape(block_n, seq, head_dim)
        kh = qkv[:, hidden + lo:hidden + lo + head_dim].reshape(block_n, seq, head_dim)
        vh = qkv[:, 2 * hidden + lo:2 * hidden + lo + head_dim].reshape(block_n, seq, head_dim)

        s = jnp.einsum('bqd,bkd->bqk', qh, kh,
                       preferred_element_type=jnp.float32)          # [bn, S, S]
        s = s + mask                                                # key-position mask bias
        s = s - jnp.max(s, axis=-1, keepdims=True)
        p = jnp.exp(s)
        # TODO(synk): approx reciprocal (EUP slot) -> tiny per-row error vs exact division.
        p = p * pl.reciprocal(jnp.sum(p, axis=-1, keepdims=True), approx=True)
        ctx = jnp.einsum('bqk,bkd->bqd', p.astype(jnp.bfloat16), vh,
                         preferred_element_type=jnp.float32)        # [bn, S, hd]
        part = jnp.dot(ctx.reshape(block_n * seq, head_dim).astype(jnp.bfloat16),
                       wo_ref[lo:lo + head_dim, :],
                       preferred_element_type=jnp.float32)          # [bnS, H]
        attn = part if attn is None else attn + part
    attn = attn + bo_ref[...]

    h1 = _layer_norm(x2 + attn, ln1g_ref[...], ln1b_ref[...])

    ffh = (jnp.dot(h1.astype(jnp.bfloat16), w1_ref[...],
                   preferred_element_type=jnp.float32) + b1_ref[...])     # [bnS, F]
    # TODO(synk): UER/PyTorch gelu is the exact erf form; tanh approximation differs slightly.
    ffh = jax.nn.gelu(ffh, approximate=True)
    ffo = (jnp.dot(ffh.astype(jnp.bfloat16), w2_ref[...],
                   preferred_element_type=jnp.float32) + b2_ref[...])     # [bnS, H]
    out2 = _layer_norm(h1 + ffo, ln2g_ref[...], ln2b_ref[...])

    x_vmem[...] = out2.reshape(block_n, seq, hidden).astype(x_vmem.dtype)

    # Final layer: write only token-0 hidden states back to HBM (all the head consumes).
    @pl.when(layer == pl.num_programs(1) - 1)
    def _():
        out_ref[...] = x_vmem[:, 0:1, :].astype(out_ref.dtype)


def fused_encoder(emb, mask, params, *, num_heads, residual_dtype=jnp.float32):
    n, s, h = emb.shape
    num_layers = params["wqkv"].shape[0]
    f = params["w1"].shape[-1]
    head_dim = h // num_heads

    # Leading grid axis splits the sequences across TensorCores (targets v7x's 2 TCs).
    n_splits = 2 if (n % 2 == 0 and n >= 2) else 1
    bn = n // n_splits

    kern = functools.partial(_fused_encoder_kernel, block_n=bn, seq=s, hidden=h,
                             num_heads=num_heads, head_dim=head_dim)

    # Scoped-VMEM budget: double-buffered per-layer weight stream + constants + resident
    # activations + margin.  v5e defaults to only 16 MiB so explicit sizing is required at
    # real scale; at these toy shapes the 32 MiB floor dominates.
    layer_keys = ("wqkv", "bqkv", "wo", "bo", "ln1_g", "ln1_b",
                  "w1", "b1", "w2", "b2", "ln2_g", "ln2_b")
    per_layer_bytes = sum((params[k].size // params[k].shape[0]) * params[k].dtype.itemsize
                          for k in layer_keys)
    const_bytes = (emb.size * emb.dtype.itemsize + mask.size * mask.dtype.itemsize) // n_splits
    scratch_bytes = bn * s * h * 4
    vmem_limit = int(min(100 << 20,
                         max(32 << 20,
                             2 * per_layer_bytes + const_bytes + scratch_bytes + (8 << 20))))

    def run(single_buffer_consts):
        # pl.Buffered(1): these blocks never change along the layer axis and are only read at
        # layer 0, so one VMEM buffer suffices (saves the duplicate embedding block).
        buf_kw = {"pipeline_mode": pl.Buffered(1)} if single_buffer_consts else {}

        def layer_spec(shape):  # per-layer block; leading (layer) dim is squeezed
            r = len(shape)
            return pl.BlockSpec((None,) + shape,
                                lambda i, l, _r=r: (l,) + (0,) * _r)

        in_specs = [
            pl.BlockSpec((bn, s, h), lambda i, l: (i, 0, 0), **buf_kw),  # embeddings (bf16)
            pl.BlockSpec((bn, 1, s), lambda i, l: (i, 0, 0)),            # mask bias (read every layer)
            pl.BlockSpec((1, h), lambda i, l: (0, 0), **buf_kw),         # emb LN gamma
            pl.BlockSpec((1, h), lambda i, l: (0, 0), **buf_kw),         # emb LN beta
            layer_spec((h, 3 * h)),   # fused QKV weight (bf16, 1/sqrt(hd) folded into Q)
            layer_spec((1, 3 * h)),   # fused QKV bias
            layer_spec((h, h)),       # attention out weight (bf16)
            layer_spec((1, h)),       # attention out bias
            layer_spec((1, h)),       # LN1 gamma
            layer_spec((1, h)),       # LN1 beta
            layer_spec((h, f)),       # FFN w1 (bf16)
            layer_spec((1, f)),       # FFN b1
            layer_spec((f, h)),       # FFN w2 (bf16)
            layer_spec((1, h)),       # FFN b2
            layer_spec((1, h)),       # LN2 gamma
            layer_spec((1, h)),       # LN2 beta
        ]

        return pl.pallas_call(
            kern,
            out_shape=jax.ShapeDtypeStruct((n, 1, h), jnp.float32),
            grid=(n_splits, num_layers),
            in_specs=in_specs,
            out_specs=pl.BlockSpec((bn, 1, h), lambda i, l: (i, 0, 0)),
            scratch_shapes=[
                pltpu.VMEM((bn, s, h), residual_dtype),   # resident activations across layers
            ],
            compiler_params=pltpu.CompilerParams(
                dimension_semantics=("parallel", "arbitrary"),
                vmem_limit_bytes=vmem_limit),
        )(emb, mask, params["emb_ln_g"], params["emb_ln_b"],
          params["wqkv"], params["bqkv"], params["wo"], params["bo"],
          params["ln1_g"], params["ln1_b"], params["w1"], params["b1"],
          params["w2"], params["b2"], params["ln2_g"], params["ln2_b"])

    try:
        return run(single_buffer_consts=True)
    except Exception:  # pragma: no cover - fallback if pipeline_mode=pl.Buffered is unsupported
        return run(single_buffer_consts=False)


# ---------------------------------- parameters ----------------------------------
def init_params(key, *, vocab, hidden, ff, num_layers, max_seq, num_heads):
    def nrm(k, shape, scale=0.02):
        return (scale * jax.random.normal(k, shape)).astype(jnp.float32)

    head_dim = hidden // num_heads
    attn_scale = 1.0 / float(head_dim) ** 0.5

    keys = jax.random.split(key, 4 + num_layers)
    params = {
        "word_emb": nrm(keys[0], (vocab, hidden)),
        "pos_emb": nrm(keys[1], (max_seq, hidden)),
        "seg_emb": nrm(keys[2], (3, hidden)),
        "emb_ln_g": jnp.ones((1, hidden), jnp.float32),
        "emb_ln_b": jnp.zeros((1, hidden), jnp.float32),
        "out_w": nrm(keys[3], (hidden,)),            # nn.Linear(hidden, 1) weight
        "out_b": jnp.zeros((), jnp.float32),         # nn.Linear(hidden, 1) bias
    }
    wqkv, wo, w1, w2 = [], [], [], []
    for l in range(num_layers):
        lk = jax.random.split(keys[4 + l], 6)
        # 1/sqrt(head_dim) is folded into the Q projection (would also apply to a real Q bias).
        wq = nrm(lk[0], (hidden, hidden)) * attn_scale
        wk = nrm(lk[1], (hidden, hidden))
        wv = nrm(lk[2], (hidden, hidden))
        wqkv.append(jnp.concatenate([wq, wk, wv], axis=1))
        wo.append(nrm(lk[3], (hidden, hidden)))
        w1.append(nrm(lk[4], (hidden, ff)))
        w2.append(nrm(lk[5], (ff, hidden)))
    # Stacked, layer-indexed weights; matmul operands stored in bf16 (MXU-native).
    params["wqkv"] = jnp.stack(wqkv).astype(jnp.bfloat16)                 # [L, H, 3H]
    params["bqkv"] = jnp.zeros((num_layers, 1, 3 * hidden), jnp.float32)
    params["wo"] = jnp.stack(wo).astype(jnp.bfloat16)                     # [L, H, H]
    params["bo"] = jnp.zeros((num_layers, 1, hidden), jnp.float32)
    params["ln1_g"] = jnp.ones((num_layers, 1, hidden), jnp.float32)
    params["ln1_b"] = jnp.zeros((num_layers, 1, hidden), jnp.float32)
    params["w1"] = jnp.stack(w1).astype(jnp.bfloat16)                     # [L, H, F]
    params["b1"] = jnp.zeros((num_layers, 1, ff), jnp.float32)
    params["w2"] = jnp.stack(w2).astype(jnp.bfloat16)                     # [L, F, H]
    params["b2"] = jnp.zeros((num_layers, 1, hidden), jnp.float32)
    params["ln2_g"] = jnp.ones((num_layers, 1, hidden), jnp.float32)
    params["ln2_b"] = jnp.zeros((num_layers, 1, hidden), jnp.float32)
    return params


# ---------------------------------- forward ----------------------------------
def multiple_choice_forward(params, src, tgt, seg, *, num_heads):
    """src: [B, C, S] int32, tgt: [B] int32, seg: [B, C, S] int32."""
    batch, choices, seq = src.shape
    n = batch * choices
    src_f = src.reshape(n, seq)
    seg_f = seg.reshape(n, seq)

    # Embedding lookup (table gather) is plain-JAX glue; activations enter Pallas in bf16.
    emb = (params["word_emb"][src_f]
           + params["pos_emb"][None, :seq, :]
           + params["seg_emb"][seg_f]).astype(jnp.bfloat16)

    # Precompute the key-position mask bias once (reused by every layer inside the kernel).
    mask = jnp.where(seg_f > 0, 0.0, -1e9).astype(jnp.float32).reshape(n, 1, seq)

    # residual_dtype=jnp.bfloat16 is the recommended setting on v7x (64 MiB VMEM).
    x0 = fused_encoder(emb, mask, params, num_heads=num_heads,
                       residual_dtype=jnp.float32)                 # [n, 1, H] token-0 states

    # TODO(synk): dropout is identity here (eval mode), matching inference semantics.
    # Tiny head (Linear(H,1) + LogSoftmax + NLLLoss) stays in plain JAX: lane widths of
    # 1 / choices would only produce masked partial vector stores in a Pallas kernel.
    x0 = x0.reshape(batch, choices, -1).astype(jnp.float32)
    logits = jnp.einsum('bch,h->bc', x0, params["out_w"]) + params["out_b"]
    logp = jax.nn.log_softmax(logits, axis=-1)
    picked = jnp.take_along_axis(logp, tgt.reshape(batch, 1).astype(jnp.int32), axis=-1)
    loss = -jnp.mean(picked)                                        # NLLLoss (mean)
    return loss, logits


if __name__ == "__main__":
    B, C, S = 2, 3, 8
    H, FF, HEADS, LAYERS, VOCAB, MAXSEQ = 32, 64, 4, 2, 100, 16

    key = jax.random.PRNGKey(0)
    kp, ks, kt = jax.random.split(key, 3)
    params = init_params(kp, vocab=VOCAB, hidden=H, ff=FF, num_layers=LAYERS,
                         max_seq=MAXSEQ, num_heads=HEADS)

    src = jax.random.randint(ks, (B, C, S), 0, VOCAB, dtype=jnp.int32)
    seg = jnp.concatenate([jnp.full((B, C, S // 2), 1, jnp.int32),
                           jnp.full((B, C, S - S // 2), 2, jnp.int32)], axis=-1)
    tgt = jax.random.randint(kt, (B,), 0, C, dtype=jnp.int32)

    loss, logits = multiple_choice_forward(params, src, tgt, seg, num_heads=HEADS)
    jax.block_until_ready((loss, logits))
    assert logits.shape == (B, C) and loss.shape == ()
    print("KERNEL_OK")
</pallas_src>

<mosaic_0001>
module attributes {stable_mosaic.version = 11 : i64} {
  func.func @_fused_encoder_kernel(%arg0: i32, %arg1: i32, %arg2: memref<3x8x32xbf16, #tpu.memory_space<vmem>>, %arg3: memref<3x1x8xf32, #tpu.memory_space<vmem>>, %arg4: memref<1x32xf32, #tpu.memory_space<vmem>>, %arg5: memref<1x32xf32, #tpu.memory_space<vmem>>, %arg6: memref<1x32x96xbf16, #tpu.memory_space<vmem>>, %arg7: memref<1x1x96xf32, #tpu.memory_space<vmem>>, %arg8: memref<1x32x32xbf16, #tpu.memory_space<vmem>>, %arg9: memref<1x1x32xf32, #tpu.memory_space<vmem>>, %arg10: memref<1x1x32xf32, #tpu.memory_space<vmem>>, %arg11: memref<1x1x32xf32, #tpu.memory_space<vmem>>, %arg12: memref<1x32x64xbf16, #tpu.memory_space<vmem>>, %arg13: memref<1x1x64xf32, #tpu.memory_space<vmem>>, %arg14: memref<1x64x32xbf16, #tpu.memory_space<vmem>>, %arg15: memref<1x1x32xf32, #tpu.memory_space<vmem>>, %arg16: memref<1x1x32xf32, #tpu.memory_space<vmem>>, %arg17: memref<1x1x32xf32, #tpu.memory_space<vmem>>, %arg18: memref<3x1x32xf32, #tpu.memory_space<vmem>>, %arg19: memref<3x8x32xf32, #tpu.memory_space<vmem>>) attributes {dimension_semantics = [#tpu.dimension_semantics<parallel>, #tpu.dimension_semantics<arbitrary>], iteration_bounds = array<i64: 2, 2>, scalar_prefetch = 0 : i64, scratch_operands = 1 : i64, tpu.core_type = #tpu.core_type<tc>, window_params = [{pipeline_mode = #tpu.pipeline_mode<synchronous>, transform_indices = @transform_0, window_bounds = array<i64: 3, 8, 32>}, {transform_indices = @transform_1, window_bounds = array<i64: 3, 1, 8>}, {pipeline_mode = #tpu.pipeline_mode<synchronous>, transform_indices = @transform_2, window_bounds = array<i64: 1, 32>}, {pipeline_mode = #tpu.pipeline_mode<synchronous>, transform_indices = @transform_3, window_bounds = array<i64: 1, 32>}, {transform_indices = @transform_4, window_bounds = array<i64: 1, 32, 96>}, {transform_indices = @transform_5, window_bounds = array<i64: 1, 1, 96>}, {transform_indices = @transform_6, window_bounds = array<i64: 1, 32, 32>}, {transform_indices = @transform_7, window_bounds = array<i64: 1, 1, 32>}, {transform_indices = @transform_8, window_bounds = array<i64: 1, 1, 32>}, {transform_indices = @transform_9, window_bounds = array<i64: 1, 1, 32>}, {transform_indices = @transform_10, window_bounds = array<i64: 1, 32, 64>}, {transform_indices = @transform_11, window_bounds = array<i64: 1, 1, 64>}, {transform_indices = @transform_12, window_bounds = array<i64: 1, 64, 32>}, {transform_indices = @transform_13, window_bounds = array<i64: 1, 1, 32>}, {transform_indices = @transform_14, window_bounds = array<i64: 1, 1, 32>}, {transform_indices = @transform_15, window_bounds = array<i64: 1, 1, 32>}, {transform_indices = @transform_16, window_bounds = array<i64: 3, 1, 32>}]} {
    %c0_i32 = arith.constant 0 : i32
    %0 = arith.cmpi eq, %arg1, %c0_i32 : i32
    %1 = arith.extui %0 : i1 to i32
    %c0_i32_0 = arith.constant 0 : i32
    %2 = arith.cmpi ne, %1, %c0_i32_0 : i32
    scf.if %2 {
      %c0_88 = arith.constant 0 : index
      %c0_89 = arith.constant 0 : index
      %c0_90 = arith.constant 0 : index
      %210 = vector.load %arg2[%c0_88, %c0_89, %c0_90] : memref<3x8x32xbf16, #tpu.memory_space<vmem>>, vector<3x8x32xbf16>
      %211 = arith.extf %210 : vector<3x8x32xbf16> to vector<3x8x32xf32>
      %c0_91 = arith.constant 0 : index
      %c0_92 = arith.constant 0 : index
      %212 = vector.load %arg4[%c0_91, %c0_92] : memref<1x32xf32, #tpu.memory_space<vmem>>, vector<1x32xf32>
      %c0_93 = arith.constant 0 : index
      %c0_94 = arith.constant 0 : index
      %213 = vector.load %arg5[%c0_93, %c0_94] : memref<1x32xf32, #tpu.memory_space<vmem>>, vector<1x32xf32>
      %cst_95 = arith.constant dense<0.000000e+00> : vector<3x8xf32>
      %214 = vector.multi_reduction <add>, %211, %cst_95 [2] : vector<3x8x32xf32> to vector<3x8xf32>
      %215 = vector.shape_cast %214 : vector<3x8xf32> to vector<3x8x1xf32>
      %cst_96 = arith.constant 3.200000e+01 : f32
      %216 = vector.broadcast %cst_96 : f32 to vector<3x8x1xf32>
      %217 = arith.divf %215, %216 : vector<3x8x1xf32>
      %218 = vector.broadcast %217 : vector<3x8x1xf32> to vector<3x8x32xf32>
      %219 = arith.subf %211, %218 : vector<3x8x32xf32>
      %220 = arith.mulf %219, %219 : vector<3x8x32xf32>
      %cst_97 = arith.constant dense<0.000000e+00> : vector<3x8xf32>
      %221 = vector.multi_reduction <add>, %220, %cst_97 [2] : vector<3x8x32xf32> to vector<3x8xf32>
      %222 = vector.shape_cast %221 : vector<3x8xf32> to vector<3x8x1xf32>
      %cst_98 = arith.constant 3.200000e+01 : f32
      %223 = vector.broadcast %cst_98 : f32 to vector<3x8x1xf32>
      %224 = arith.divf %222, %223 : vector<3x8x1xf32>
      %cst_99 = arith.constant 9.99999997E-7 : f32
      %225 = vector.broadcast %cst_99 : f32 to vector<3x8x1xf32>
      %226 = arith.addf %224, %225 : vector<3x8x1xf32>
      %227 = math.rsqrt %226 : vector<3x8x1xf32>
      %228 = vector.broadcast %227 : vector<3x8x1xf32> to vector<3x8x32xf32>
      %229 = arith.mulf %219, %228 : vector<3x8x32xf32>
      %230 = vector.shape_cast %212 : vector<1x32xf32> to vector<1x1x32xf32>
      %231 = vector.broadcast %230 : vector<1x1x32xf32> to vector<3x8x32xf32>
      %232 = arith.mulf %229, %231 : vector<3x8x32xf32>
      %233 = vector.shape_cast %213 : vector<1x32xf32> to vector<1x1x32xf32>
      %234 = vector.broadcast %233 : vector<1x1x32xf32> to vector<3x8x32xf32>
      %235 = arith.addf %232, %234 : vector<3x8x32xf32>
      %c0_100 = arith.constant 0 : index
      %c0_101 = arith.constant 0 : index
      %c0_102 = arith.constant 0 : index
      %236 = vector.load %arg19[%c0_100, %c0_101, %c0_102] : memref<3x8x32xf32, #tpu.memory_space<vmem>>, vector<3x8x32xf32>
      tpu.vector_store %arg19[%c0_100, %c0_101, %c0_102], %235 {strides = array<i32>} : memref<3x8x32xf32, #tpu.memory_space<vmem>>, vector<3x8x32xf32>,
    } else {
    }
    %c0 = arith.constant 0 : index
    %c0_1 = arith.constant 0 : index
    %c0_2 = arith.constant 0 : index
    %3 = vector.load %arg19[%c0, %c0_1, %c0_2] : memref<3x8x32xf32, #tpu.memory_space<vmem>>, vector<3x8x32xf32>
    %4 = vector.shape_cast %3 : vector<3x8x32xf32> to vector<24x32xf32>
    %5 = arith.truncf %4 : vector<24x32xf32> to vector<24x32xbf16>
    %c0_3 = arith.constant 0 : index
    %c0_4 = arith.constant 0 : index
    %c0_5 = arith.constant 0 : index
    %6 = vector.load %arg6[%c0_3, %c0_4, %c0_5] : memref<1x32x96xbf16, #tpu.memory_space<vmem>>, vector<1x32x96xbf16>
    %7 = vector.shape_cast %6 : vector<1x32x96xbf16> to vector<32x96xbf16>
    %cst = arith.constant dense<0.000000e+00> : vector<24x96xf32>
    %8 = tpu.matmul %5, %7, %cst {dimension_numbers = #tpu.dot_dimension_numbers<[1], [0], [0], [1], [0, 0, 1, 1], [], []>} : vector<24x32xbf16>, vector<32x96xbf16>, vector<24x96xf32> -> vector<24x96xf32>
    %c0_6 = arith.constant 0 : index
    %c0_7 = arith.constant 0 : index
    %c0_8 = arith.constant 0 : index
    %9 = vector.load %arg7[%c0_6, %c0_7, %c0_8] : memref<1x1x96xf32, #tpu.memory_space<vmem>>, vector<1x1x96xf32>
    %10 = vector.shape_cast %9 : vector<1x1x96xf32> to vector<1x96xf32>
    %11 = vector.broadcast %10 : vector<1x96xf32> to vector<24x96xf32>
    %12 = arith.addf %8, %11 : vector<24x96xf32>
    %13 = arith.truncf %12 : vector<24x96xf32> to vector<24x96xbf16>
    %c0_9 = arith.constant 0 : index
    %c0_10 = arith.constant 0 : index
    %c0_11 = arith.constant 0 : index
    %14 = vector.load %arg3[%c0_9, %c0_10, %c0_11] : memref<3x1x8xf32, #tpu.memory_space<vmem>>, vector<3x1x8xf32>
    %15 = vector.extract_strided_slice %13 {offsets = [0, 0], sizes = [24, 8], strides = [1, 1]} : vector<24x96xbf16> to vector<24x8xbf16>
    %16 = vector.shape_cast %15 : vector<24x8xbf16> to vector<3x8x8xbf16>
    %17 = vector.extract_strided_slice %13 {offsets = [0, 32], sizes = [24, 8], strides = [1, 1]} : vector<24x96xbf16> to vector<24x8xbf16>
    %18 = vector.shape_cast %17 : vector<24x8xbf16> to vector<3x8x8xbf16>
    %19 = vector.extract_strided_slice %13 {offsets = [0, 64], sizes = [24, 8], strides = [1, 1]} : vector<24x96xbf16> to vector<24x8xbf16>
    %20 = vector.shape_cast %19 : vector<24x8xbf16> to vector<3x8x8xbf16>
    "tpu.trace_start"() <{level = 10 : i32, message = "bqd,bkd->bqk"}> : () -> ()
    %cst_12 = arith.constant dense<0.000000e+00> : vector<3x8x8xf32>
    %21 = tpu.matmul %16, %18, %cst_12 {dimension_numbers = #tpu.dot_dimension_numbers<[2], [2], [1], [1], [0, 0, 0, 1, 1, 1], [0], [0]>} : vector<3x8x8xbf16>, vector<3x8x8xbf16>, vector<3x8x8xf32> -> vector<3x8x8xf32>
    "tpu.trace_stop"() : () -> ()
    %22 = vector.broadcast %14 : vector<3x1x8xf32> to vector<3x8x8xf32>
    %23 = arith.addf %21, %22 : vector<3x8x8xf32>
    %cst_13 = arith.constant dense<0xFF800000> : vector<3x8xf32>
    %24 = vector.multi_reduction <maximumf>, %23, %cst_13 [2] : vector<3x8x8xf32> to vector<3x8xf32>
    %25 = vector.shape_cast %24 : vector<3x8xf32> to vector<3x8x1xf32>
    %26 = vector.broadcast %25 : vector<3x8x1xf32> to vector<3x8x8xf32>
    %27 = arith.subf %23, %26 : vector<3x8x8xf32>
    %28 = math.exp %27 : vector<3x8x8xf32>
    %cst_14 = arith.constant dense<0.000000e+00> : vector<3x8xf32>
    %29 = vector.multi_reduction <add>, %28, %cst_14 [2] : vector<3x8x8xf32> to vector<3x8xf32>
    %30 = vector.shape_cast %29 : vector<3x8xf32> to vector<3x8x1xf32>
    %31 = tpu.reciprocal %30 {approx = true} : vector<3x8x1xf32> -> vector<3x8x1xf32>
    %32 = vector.broadcast %31 : vector<3x8x1xf32> to vector<3x8x8xf32>
    %33 = arith.mulf %28, %32 : vector<3x8x8xf32>
    %34 = arith.truncf %33 : vector<3x8x8xf32> to vector<3x8x8xbf16>
    "tpu.trace_start"() <{level = 10 : i32, message = "bqk,bkd->bqd"}> : () -> ()
    %cst_15 = arith.constant dense<0.000000e+00> : vector<3x8x8xf32>
    %35 = tpu.matmul %34, %20, %cst_15 {dimension_numbers = #tpu.dot_dimension_numbers<[2], [1], [1], [2], [0, 0, 0, 1, 1, 2], [0], [0]>} : vector<3x8x8xbf16>, vector<3x8x8xbf16>, vector<3x8x8xf32> -> vector<3x8x8xf32>
    "tpu.trace_stop"() : () -> ()
    %36 = vector.shape_cast %35 : vector<3x8x8xf32> to vector<24x8xf32>
    %37 = arith.truncf %36 : vector<24x8xf32> to vector<24x8xbf16>
    %c0_16 = arith.constant 0 : index
    %c0_17 = arith.constant 0 : index
    %c0_18 = arith.constant 0 : index
    %38 = vector.load %arg8[%c0_16, %c0_17, %c0_18] : memref<1x32x32xbf16, #tpu.memory_space<vmem>>, vector<1x8x32xbf16>
    %39 = vector.shape_cast %38 : vector<1x8x32xbf16> to vector<8x32xbf16>
    %cst_19 = arith.constant dense<0.000000e+00> : vector<24x32xf32>
    %40 = tpu.matmul %37, %39, %cst_19 {dimension_numbers = #tpu.dot_dimension_numbers<[1], [0], [0], [1], [0, 0, 1, 1], [], []>} : vector<24x8xbf16>, vector<8x32xbf16>, vector<24x32xf32> -> vector<24x32xf32>
    %41 = vector.extract_strided_slice %13 {offsets = [0, 8], sizes = [24, 8], strides = [1, 1]} : vector<24x96xbf16> to vector<24x8xbf16>
    %42 = vector.shape_cast %41 : vector<24x8xbf16> to vector<3x8x8xbf16>
    %43 = vector.extract_strided_slice %13 {offsets = [0, 40], sizes = [24, 8], strides = [1, 1]} : vector<24x96xbf16> to vector<24x8xbf16>
    %44 = vector.shape_cast %43 : vector<24x8xbf16> to vector<3x8x8xbf16>
    %45 = vector.extract_strided_slice %13 {offsets = [0, 72], sizes = [24, 8], strides = [1, 1]} : vector<24x96xbf16> to vector<24x8xbf16>
    %46 = vector.shape_cast %45 : vector<24x8xbf16> to vector<3x8x8xbf16>
    "tpu.trace_start"() <{level = 10 : i32, message = "bqd,bkd->bqk"}> : () -> ()
    %cst_20 = arith.constant dense<0.000000e+00> : vector<3x8x8xf32>
    %47 = tpu.matmul %42, %44, %cst_20 {dimension_numbers = #tpu.dot_dimension_numbers<[2], [2], [1], [1], [0, 0, 0, 1, 1, 1], [0], [0]>} : vector<3x8x8xbf16>, vector<3x8x8xbf16>, vector<3x8x8xf32> -> vector<3x8x8xf32>
    "tpu.trace_stop"() : () -> ()
    %48 = vector.broadcast %14 : vector<3x1x8xf32> to vector<3x8x8xf32>
    %49 = arith.addf %47, %48 : vector<3x8x8xf32>
    %cst_21 = arith.constant dense<0xFF800000> : vector<3x8xf32>
    %50 = vector.multi_reduction <maximumf>, %49, %cst_21 [2] : vector<3x8x8xf32> to vector<3x8xf32>
    %51 = vector.shape_cast %50 : vector<3x8xf32> to vector<3x8x1xf32>
    %52 = vector.broadcast %51 : vector<3x8x1xf32> to vector<3x8x8xf32>
    %53 = arith.subf %49, %52 : vector<3x8x8xf32>
    %54 = math.exp %53 : vector<3x8x8xf32>
    %cst_22 = arith.constant dense<0.000000e+00> : vector<3x8xf32>
    %55 = vector.multi_reduction <add>, %54, %cst_22 [2] : vector<3x8x8xf32> to vector<3x8xf32>
    %56 = vector.shape_cast %55 : vector<3x8xf32> to vector<3x8x1xf32>
    %57 = tpu.reciprocal %56 {approx = true} : vector<3x8x1xf32> -> vector<3x8x1xf32>
    %58 = vector.broadcast %57 : vector<3x8x1xf32> to vector<3x8x8xf32>
    %59 = arith.mulf %54, %58 : vector<3x8x8xf32>
    %60 = arith.truncf %59 : vector<3x8x8xf32> to vector<3x8x8xbf16>
    "tpu.trace_start"() <{level = 10 : i32, message = "bqk,bkd->bqd"}> : () -> ()
    %cst_23 = arith.constant dense<0.000000e+00> : vector<3x8x8xf32>
    %61 = tpu.matmul %60, %46, %cst_23 {dimension_numbers = #tpu.dot_dimension_numbers<[2], [1], [1], [2], [0, 0, 0, 1, 1, 2], [0], [0]>} : vector<3x8x8xbf16>, vector<3x8x8xbf16>, vector<3x8x8xf32> -> vector<3x8x8xf32>
    "tpu.trace_stop"() : () -> ()
    %62 = vector.shape_cast %61 : vector<3x8x8xf32> to vector<24x8xf32>
    %63 = arith.truncf %62 : vector<24x8xf32> to vector<24x8xbf16>
    %c0_24 = arith.constant 0 : index
    %c8 = arith.constant 8 : index
    %c0_25 = arith.constant 0 : index
    %64 = vector.load %arg8[%c0_24, %c8, %c0_25] : memref<1x32x32xbf16, #tpu.memory_space<vmem>>, vector<1x8x32xbf16>
    %65 = vector.shape_cast %64 : vector<1x8x32xbf16> to vector<8x32xbf16>
    %cst_26 = arith.constant dense<0.000000e+00> : vector<24x32xf32>
    %66 = tpu.matmul %63, %65, %cst_26 {dimension_numbers = #tpu.dot_dimension_numbers<[1], [0], [0], [1], [0, 0, 1, 1], [], []>} : vector<24x8xbf16>, vector<8x32xbf16>, vector<24x32xf32> -> vector<24x32xf32>
    %67 = arith.addf %40, %66 : vector<24x32xf32>
    %68 = vector.extract_strided_slice %13 {offsets = [0, 16], sizes = [24, 8], strides = [1, 1]} : vector<24x96xbf16> to vector<24x8xbf16>
    %69 = vector.shape_cast %68 : vector<24x8xbf16> to vector<3x8x8xbf16>
    %70 = vector.extract_strided_slice %13 {offsets = [0, 48], sizes = [24, 8], strides = [1, 1]} : vector<24x96xbf16> to vector<24x8xbf16>
    %71 = vector.shape_cast %70 : vector<24x8xbf16> to vector<3x8x8xbf16>
    %72 = vector.extract_strided_slice %13 {offsets = [0, 80], sizes = [24, 8], strides = [1, 1]} : vector<24x96xbf16> to vector<24x8xbf16>
    %73 = vector.shape_cast %72 : vector<24x8xbf16> to vector<3x8x8xbf16>
    "tpu.trace_start"() <{level = 10 : i32, message = "bqd,bkd->bqk"}> : () -> ()
    %cst_27 = arith.constant dense<0.000000e+00> : vector<3x8x8xf32>
    %74 = tpu.matmul %69, %71, %cst_27 {dimension_numbers = #tpu.dot_dimension_numbers<[2], [2], [1], [1], [0, 0, 0, 1, 1, 1], [0], [0]>} : vector<3x8x8xbf16>, vector<3x8x8xbf16>, vector<3x8x8xf32> -> vector<3x8x8xf32>
    "tpu.trace_stop"() : () -> ()
    %75 = vector.broadcast %14 : vector<3x1x8xf32> to vector<3x8x8xf32>
    %76 = arith.addf %74, %75 : vector<3x8x8xf32>
    %cst_28 = arith.constant dense<0xFF800000> : vector<3x8xf32>
    %77 = vector.multi_reduction <maximumf>, %76, %cst_28 [2] : vector<3x8x8xf32> to vector<3x8xf32>
    %78 = vector.shape_cast %77 : vector<3x8xf32> to vector<3x8x1xf32>
    %79 = vector.broadcast %78 : vector<3x8x1xf32> to vector<3x8x8xf32>
    %80 = arith.subf %76, %79 : vector<3x8x8xf32>
    %81 = math.exp %80 : vector<3x8x8xf32>
    %cst_29 = arith.constant dense<0.000000e+00> : vector<3x8xf32>
    %82 = vector.multi_reduction <add>, %81, %cst_29 [2] : vector<3x8x8xf32> to vector<3x8xf32>
    %83 = vector.shape_cast %82 : vector<3x8xf32> to vector<3x8x1xf32>
    %84 = tpu.reciprocal %83 {approx = true} : vector<3x8x1xf32> -> vector<3x8x1xf32>
    %85 = vector.broadcast %84 : vector<3x8x1xf32> to vector<3x8x8xf32>
    %86 = arith.mulf %81, %85 : vector<3x8x8xf32>
    %87 = arith.truncf %86 : vector<3x8x8xf32> to vector<3x8x8xbf16>
    "tpu.trace_start"() <{level = 10 : i32, message = "bqk,bkd->bqd"}> : () -> ()
    %cst_30 = arith.constant dense<0.000000e+00> : vector<3x8x8xf32>
    %88 = tpu.matmul %87, %73, %cst_30 {dimension_numbers = #tpu.dot_dimension_numbers<[2], [1], [1], [2], [0, 0, 0, 1, 1, 2], [0], [0]>} : vector<3x8x8xbf16>, vector<3x8x8xbf16>, vector<3x8x8xf32> -> vector<3x8x8xf32>
    "tpu.trace_stop"() : () -> ()
    %89 = vector.shape_cast %88 : vector<3x8x8xf32> to vector<24x8xf32>
    %90 = arith.truncf %89 : vector<24x8xf32> to vector<24x8xbf16>
    %c0_31 = arith.constant 0 : index
    %c16 = arith.constant 16 : index
    %c0_32 = arith.constant 0 : index
    %91 = vector.load %arg8[%c0_31, %c16, %c0_32] : memref<1x32x32xbf16, #tpu.memory_space<vmem>>, vector<1x8x32xbf16>
    %92 = vector.shape_cast %91 : vector<1x8x32xbf16> to vector<8x32xbf16>
    %cst_33 = arith.constant dense<0.000000e+00> : vector<24x32xf32>
    %93 = tpu.matmul %90, %92, %cst_33 {dimension_numbers = #tpu.dot_dimension_numbers<[1], [0], [0], [1], [0, 0, 1, 1], [], []>} : vector<24x8xbf16>, vector<8x32xbf16>, vector<24x32xf32> -> vector<24x32xf32>
    %94 = arith.addf %67, %93 : vector<24x32xf32>
    %95 = vector.extract_strided_slice %13 {offsets = [0, 24], sizes = [24, 8], strides = [1, 1]} : vector<24x96xbf16> to vector<24x8xbf16>
    %96 = vector.shape_cast %95 : vector<24x8xbf16> to vector<3x8x8xbf16>
    %97 = vector.extract_strided_slice %13 {offsets = [0, 56], sizes = [24, 8], strides = [1, 1]} : vector<24x96xbf16> to vector<24x8xbf16>
    %98 = vector.shape_cast %97 : vector<24x8xbf16> to vector<3x8x8xbf16>
    %99 = vector.extract_strided_slice %13 {offsets = [0, 88], sizes = [24, 8], strides = [1, 1]} : vector<24x96xbf16> to vector<24x8xbf16>
    %100 = vector.shape_cast %99 : vector<24x8xbf16> to vector<3x8x8xbf16>
    "tpu.trace_start"() <{level = 10 : i32, message = "bqd,bkd->bqk"}> : () -> ()
    %cst_34 = arith.constant dense<0.000000e+00> : vector<3x8x8xf32>
    %101 = tpu.matmul %96, %98, %cst_34 {dimension_numbers = #tpu.dot_dimension_numbers<[2], [2], [1], [1], [0, 0, 0, 1, 1, 1], [0], [0]>} : vector<3x8x8xbf16>, vector<3x8x8xbf16>, vector<3x8x8xf32> -> vector<3x8x8xf32>
    "tpu.trace_stop"() : () -> ()
    %102 = vector.broadcast %14 : vector<3x1x8xf32> to vector<3x8x8xf32>
    %103 = arith.addf %101, %102 : vector<3x8x8xf32>
    %cst_35 = arith.constant dense<0xFF800000> : vector<3x8xf32>
    %104 = vector.multi_reduction <maximumf>, %103, %cst_35 [2] : vector<3x8x8xf32> to vector<3x8xf32>
    %105 = vector.shape_cast %104 : vector<3x8xf32> to vector<3x8x1xf32>
    %106 = vector.broadcast %105 : vector<3x8x1xf32> to vector<3x8x8xf32>
    %107 = arith.subf %103, %106 : vector<3x8x8xf32>
    %108 = math.exp %107 : vector<3x8x8xf32>
    %cst_36 = arith.constant dense<0.000000e+00> : vector<3x8xf32>
    %109 = vector.multi_reduction <add>, %108, %cst_36 [2] : vector<3x8x8xf32> to vector<3x8xf32>
    %110 = vector.shape_cast %109 : vector<3x8xf32> to vector<3x8x1xf32>
    %111 = tpu.reciprocal %110 {approx = true} : vector<3x8x1xf32> -> vector<3x8x1xf32>
    %112 = vector.broadcast %111 : vector<3x8x1xf32> to vector<3x8x8xf32>
    %113 = arith.mulf %108, %112 : vector<3x8x8xf32>
    %114 = arith.truncf %113 : vector<3x8x8xf32> to vector<3x8x8xbf16>
    "tpu.trace_start"() <{level = 10 : i32, message = "bqk,bkd->bqd"}> : () -> ()
    %cst_37 = arith.constant dense<0.000000e+00> : vector<3x8x8xf32>
    %115 = tpu.matmul %114, %100, %cst_37 {dimension_numbers = #tpu.dot_dimension_numbers<[2], [1], [1], [2], [0, 0, 0, 1, 1, 2], [0], [0]>} : vector<3x8x8xbf16>, vector<3x8x8xbf16>, vector<3x8x8xf32> -> vector<3x8x8xf32>
    "tpu.trace_stop"() : () -> ()
    %116 = vector.shape_cast %115 : vector<3x8x8xf32> to vector<24x8xf32>
    %117 = arith.truncf %116 : vector<24x8xf32> to vector<24x8xbf16>
    %c0_38 = arith.constant 0 : index
    %c24 = arith.constant 24 : index
    %c0_39 = arith.constant 0 : index
    %118 = vector.load %arg8[%c0_38, %c24, %c0_39] : memref<1x32x32xbf16, #tpu.memory_space<vmem>>, vector<1x8x32xbf16>
    %119 = vector.shape_cast %118 : vector<1x8x32xbf16> to vector<8x32xbf16>
    %cst_40 = arith.constant dense<0.000000e+00> : vector<24x32xf32>
    %120 = tpu.matmul %117, %119, %cst_40 {dimension_numbers = #tpu.dot_dimension_numbers<[1], [0], [0], [1], [0, 0, 1, 1], [], []>} : vector<24x8xbf16>, vector<8x32xbf16>, vector<24x32xf32> -> vector<24x32xf32>
    %121 = arith.addf %94, %120 : vector<24x32xf32>
    %c0_41 = arith.constant 0 : index
    %c0_42 = arith.constant 0 : index
    %c0_43 = arith.constant 0 : index
    %122 = vector.load %arg9[%c0_41, %c0_42, %c0_43] : memref<1x1x32xf32, #tpu.memory_space<vmem>>, vector<1x1x32xf32>
    %123 = vector.shape_cast %122 : vector<1x1x32xf32> to vector<1x32xf32>
    %124 = vector.broadcast %123 : vector<1x32xf32> to vector<24x32xf32>
    %125 = arith.addf %121, %124 : vector<24x32xf32>
    %126 = arith.addf %4, %125 : vector<24x32xf32>
    %c0_44 = arith.constant 0 : index
    %c0_45 = arith.constant 0 : index
    %c0_46 = arith.constant 0 : index
    %127 = vector.load %arg10[%c0_44, %c0_45, %c0_46] : memref<1x1x32xf32, #tpu.memory_space<vmem>>, vector<1x1x32xf32>
    %128 = vector.shape_cast %127 : vector<1x1x32xf32> to vector<1x32xf32>
    %c0_47 = arith.constant 0 : index
    %c0_48 = arith.constant 0 : index
    %c0_49 = arith.constant 0 : index
    %129 = vector.load %arg11[%c0_47, %c0_48, %c0_49] : memref<1x1x32xf32, #tpu.memory_space<vmem>>, vector<1x1x32xf32>
    %130 = vector.shape_cast %129 : vector<1x1x32xf32> to vector<1x32xf32>
    %cst_50 = arith.constant dense<0.000000e+00> : vector<24xf32>
    %131 = vector.multi_reduction <add>, %126, %cst_50 [1] : vector<24x32xf32> to vector<24xf32>
    %132 = vector.shape_cast %131 : vector<24xf32> to vector<24x1xf32>
    %cst_51 = arith.constant 3.200000e+01 : f32
    %133 = vector.broadcast %cst_51 : f32 to vector<24x1xf32>
    %134 = arith.divf %132, %133 : vector<24x1xf32>
    %135 = vector.broadcast %134 : vector<24x1xf32> to vector<24x32xf32>
    %136 = arith.subf %126, %135 : vector<24x32xf32>
    %137 = arith.mulf %136, %136 : vector<24x32xf32>
    %cst_52 = arith.constant dense<0.000000e+00> : vector<24xf32>
    %138 = vector.multi_reduction <add>, %137, %cst_52 [1] : vector<24x32xf32> to vector<24xf32>
    %139 = vector.shape_cast %138 : vector<24xf32> to vector<24x1xf32>
    %cst_53 = arith.constant 3.200000e+01 : f32
    %140 = vector.broadcast %cst_53 : f32 to vector<24x1xf32>
    %141 = arith.divf %139, %140 : vector<24x1xf32>
    %cst_54 = arith.constant 9.99999997E-7 : f32
    %142 = vector.broadcast %cst_54 : f32 to vector<24x1xf32>
    %143 = arith.addf %141, %142 : vector<24x1xf32>
    %144 = math.rsqrt %143 : vector<24x1xf32>
    %145 = vector.broadcast %144 : vector<24x1xf32> to vector<24x32xf32>
    %146 = arith.mulf %136, %145 : vector<24x32xf32>
    %147 = vector.broadcast %128 : vector<1x32xf32> to vector<24x32xf32>
    %148 = arith.mulf %146, %147 : vector<24x32xf32>
    %149 = vector.broadcast %130 : vector<1x32xf32> to vector<24x32xf32>
    %150 = arith.addf %148, %149 : vector<24x32xf32>
    %151 = arith.truncf %150 : vector<24x32xf32> to vector<24x32xbf16>
    %c0_55 = arith.constant 0 : index
    %c0_56 = arith.constant 0 : index
    %c0_57 = arith.constant 0 : index
    %152 = vector.load %arg12[%c0_55, %c0_56, %c0_57] : memref<1x32x64xbf16, #tpu.memory_space<vmem>>, vector<1x32x64xbf16>
    %153 = vector.shape_cast %152 : vector<1x32x64xbf16> to vector<32x64xbf16>
    %cst_58 = arith.constant dense<0.000000e+00> : vector<24x64xf32>
    %154 = tpu.matmul %151, %153, %cst_58 {dimension_numbers = #tpu.dot_dimension_numbers<[1], [0], [0], [1], [0, 0, 1, 1], [], []>} : vector<24x32xbf16>, vector<32x64xbf16>, vector<24x64xf32> -> vector<24x64xf32>
    %c0_59 = arith.constant 0 : index
    %c0_60 = arith.constant 0 : index
    %c0_61 = arith.constant 0 : index
    %155 = vector.load %arg13[%c0_59, %c0_60, %c0_61] : memref<1x1x64xf32, #tpu.memory_space<vmem>>, vector<1x1x64xf32>
    %156 = vector.shape_cast %155 : vector<1x1x64xf32> to vector<1x64xf32>
    %157 = vector.broadcast %156 : vector<1x64xf32> to vector<24x64xf32>
    %158 = arith.addf %154, %157 : vector<24x64xf32>
    %159 = arith.mulf %158, %158 : vector<24x64xf32>
    %160 = arith.mulf %158, %159 : vector<24x64xf32>
    %cst_62 = arith.constant 4.471500e-02 : f32
    %161 = vector.broadcast %cst_62 : f32 to vector<24x64xf32>
    %162 = arith.mulf %161, %160 : vector<24x64xf32>
    %163 = arith.addf %158, %162 : vector<24x64xf32>
    %cst_63 = arith.constant 0.797884583 : f32
    %164 = vector.broadcast %cst_63 : f32 to vector<24x64xf32>
    %165 = arith.mulf %164, %163 : vector<24x64xf32>
    %166 = math.tanh %165 : vector<24x64xf32>
    %cst_64 = arith.constant 1.000000e+00 : f32
    %167 = vector.broadcast %cst_64 : f32 to vector<24x64xf32>
    %168 = arith.addf %167, %166 : vector<24x64xf32>
    %cst_65 = arith.constant 5.000000e-01 : f32
    %169 = vector.broadcast %cst_65 : f32 to vector<24x64xf32>
    %170 = arith.mulf %169, %168 : vector<24x64xf32>
    %171 = arith.mulf %158, %170 : vector<24x64xf32>
    %172 = arith.truncf %171 : vector<24x64xf32> to vector<24x64xbf16>
    %c0_66 = arith.constant 0 : index
    %c0_67 = arith.constant 0 : index
    %c0_68 = arith.constant 0 : index
    %173 = vector.load %arg14[%c0_66, %c0_67, %c0_68] : memref<1x64x32xbf16, #tpu.memory_space<vmem>>, vector<1x64x32xbf16>
    %174 = vector.shape_cast %173 : vector<1x64x32xbf16> to vector<64x32xbf16>
    %cst_69 = arith.constant dense<0.000000e+00> : vector<24x32xf32>
    %175 = tpu.matmul %172, %174, %cst_69 {dimension_numbers = #tpu.dot_dimension_numbers<[1], [0], [0], [1], [0, 0, 1, 1], [], []>} : vector<24x64xbf16>, vector<64x32xbf16>, vector<24x32xf32> -> vector<24x32xf32>
    %c0_70 = arith.constant 0 : index
    %c0_71 = arith.constant 0 : index
    %c0_72 = arith.constant 0 : index
    %176 = vector.load %arg15[%c0_70, %c0_71, %c0_72] : memref<1x1x32xf32, #tpu.memory_space<vmem>>, vector<1x1x32xf32>
    %177 = vector.shape_cast %176 : vector<1x1x32xf32> to vector<1x32xf32>
    %178 = vector.broadcast %177 : vector<1x32xf32> to vector<24x32xf32>
    %179 = arith.addf %175, %178 : vector<24x32xf32>
    %180 = arith.addf %150, %179 : vector<24x32xf32>
    %c0_73 = arith.constant 0 : index
    %c0_74 = arith.constant 0 : index
    %c0_75 = arith.constant 0 : index
    %181 = vector.load %arg16[%c0_73, %c0_74, %c0_75] : memref<1x1x32xf32, #tpu.memory_space<vmem>>, vector<1x1x32xf32>
    %182 = vector.shape_cast %181 : vector<1x1x32xf32> to vector<1x32xf32>
    %c0_76 = arith.constant 0 : index
    %c0_77 = arith.constant 0 : index
    %c0_78 = arith.constant 0 : index
    %183 = vector.load %arg17[%c0_76, %c0_77, %c0_78] : memref<1x1x32xf32, #tpu.memory_space<vmem>>, vector<1x1x32xf32>
    %184 = vector.shape_cast %183 : vector<1x1x32xf32> to vector<1x32xf32>
    %cst_79 = arith.constant dense<0.000000e+00> : vector<24xf32>
    %185 = vector.multi_reduction <add>, %180, %cst_79 [1] : vector<24x32xf32> to vector<24xf32>
    %186 = vector.shape_cast %185 : vector<24xf32> to vector<24x1xf32>
    %cst_80 = arith.constant 3.200000e+01 : f32
    %187 = vector.broadcast %cst_80 : f32 to vector<24x1xf32>
    %188 = arith.divf %186, %187 : vector<24x1xf32>
    %189 = vector.broadcast %188 : vector<24x1xf32> to vector<24x32xf32>
    %190 = arith.subf %180, %189 : vector<24x32xf32>
    %191 = arith.mulf %190, %190 : vector<24x32xf32>
    %cst_81 = arith.constant dense<0.000000e+00> : vector<24xf32>
    %192 = vector.multi_reduction <add>, %191, %cst_81 [1] : vector<24x32xf32> to vector<24xf32>
    %193 = vector.shape_cast %192 : vector<24xf32> to vector<24x1xf32>
    %cst_82 = arith.constant 3.200000e+01 : f32
    %194 = vector.broadcast %cst_82 : f32 to vector<24x1xf32>
    %195 = arith.divf %193, %194 : vector<24x1xf32>
    %cst_83 = arith.constant 9.99999997E-7 : f32
    %196 = vector.broadcast %cst_83 : f32 to vector<24x1xf32>
    %197 = arith.addf %195, %196 : vector<24x1xf32>
    %198 = math.rsqrt %197 : vector<24x1xf32>
    %199 = vector.broadcast %198 : vector<24x1xf32> to vector<24x32xf32>
    %200 = arith.mulf %190, %199 : vector<24x32xf32>
    %201 = vector.broadcast %182 : vector<1x32xf32> to vector<24x32xf32>
    %202 = arith.mulf %200, %201 : vector<24x32xf32>
    %203 = vector.broadcast %184 : vector<1x32xf32> to vector<24x32xf32>
    %204 = arith.addf %202, %203 : vector<24x32xf32>
    %205 = vector.shape_cast %204 : vector<24x32xf32> to vector<3x8x32xf32>
    %c0_84 = arith.constant 0 : index
    %c0_85 = arith.constant 0 : index
    %c0_86 = arith.constant 0 : index
    %206 = vector.load %arg19[%c0_84, %c0_85, %c0_86] : memref<3x8x32xf32, #tpu.memory_space<vmem>>, vector<3x8x32xf32>
    tpu.vector_store %arg19[%c0_84, %c0_85, %c0_86], %205 {strides = array<i32>} : memref<3x8x32xf32, #tpu.memory_space<vmem>>, vector<3x8x32xf32>,
    %c1_i32 = arith.constant 1 : i32
    %207 = arith.cmpi eq, %arg1, %c1_i32 : i32
    %208 = arith.extui %207 : i1 to i32
    %c0_i32_87 = arith.constant 0 : i32
    %209 = arith.cmpi ne, %208, %c0_i32_87 : i32
    scf.if %209 {
      %c0_88 = arith.constant 0 : index
      %c0_89 = arith.constant 0 : index
      %c0_90 = arith.constant 0 : index
      %210 = vector.load %arg19[%c0_88, %c0_89, %c0_90] : memref<3x8x32xf32, #tpu.memory_space<vmem>>, vector<3x1x32xf32>
      %c0_91 = arith.constant 0 : index
      %c0_92 = arith.constant 0 : index
      %c0_93 = arith.constant 0 : index
      %211 = vector.load %arg18[%c0_91, %c0_92, %c0_93] : memref<3x1x32xf32, #tpu.memory_space<vmem>>, vector<3x1x32xf32>
      tpu.vector_store %arg18[%c0_91, %c0_92, %c0_93], %210 {strides = array<i32>} : memref<3x1x32xf32, #tpu.memory_space<vmem>>, vector<3x1x32xf32>,
    } else {
    }
    return
  }
  func.func @transform_0(%arg0: i32, %arg1: i32) -> (i32, i32, i32) {
    %c0_i32 = arith.constant 0 : i32
    %c0_i32_0 = arith.constant 0 : i32
    %c0_i32_1 = arith.constant 0 : i32
    return %arg0, %c0_i32, %c0_i32_0 : i32, i32, i32
  }
  func.func @transform_1(%arg0: i32, %arg1: i32) -> (i32, i32, i32) {
    %c0_i32 = arith.constant 0 : i32
    %c0_i32_0 = arith.constant 0 : i32
    %c0_i32_1 = arith.constant 0 : i32
    return %arg0, %c0_i32, %c0_i32_0 : i32, i32, i32
  }
  func.func @transform_2(%arg0: i32, %arg1: i32) -> (i32, i32) {
    %c0_i32 = arith.constant 0 : i32
    %c0_i32_0 = arith.constant 0 : i32
    %c0_i32_1 = arith.constant 0 : i32
    return %c0_i32, %c0_i32_0 : i32, i32
  }
  func.func @transform_3(%arg0: i32, %arg1: i32) -> (i32, i32) {
    %c0_i32 = arith.constant 0 : i32
    %c0_i32_0 = arith.constant 0 : i32
    %c0_i32_1 = arith.constant 0 : i32
    return %c0_i32, %c0_i32_0 : i32, i32
  }
  func.func @transform_4(%arg0: i32, %arg1: i32) -> (i32, i32, i32) {
    %c0_i32 = arith.constant 0 : i32
    %c0_i32_0 = arith.constant 0 : i32
    %c0_i32_1 = arith.constant 0 : i32
    return %arg1, %c0_i32, %c0_i32_0 : i32, i32, i32
  }
  func.func @transform_5(%arg0: i32, %arg1: i32) -> (i32, i32, i32) {
    %c0_i32 = arith.constant 0 : i32
    %c0_i32_0 = arith.constant 0 : i32
    %c0_i32_1 = arith.constant 0 : i32
    return %arg1, %c0_i32, %c0_i32_0 : i32, i32, i32
  }
  func.func @transform_6(%arg0: i32, %arg1: i32) -> (i32, i32, i32) {
    %c0_i32 = arith.constant 0 : i32
    %c0_i32_0 = arith.constant 0 : i32
    %c0_i32_1 = arith.constant 0 : i32
    return %arg1, %c0_i32, %c0_i32_0 : i32, i32, i32
  }
  func.func @transform_7(%arg0: i32, %arg1: i32) -> (i32, i32, i32) {
    %c0_i32 = arith.constant 0 : i32
    %c0_i32_0 = arith.constant 0 : i32
    %c0_i32_1 = arith.constant 0 : i32
    return %arg1, %c0_i32, %c0_i32_0 : i32, i32, i32
  }
  func.func @transform_8(%arg0: i32, %arg1: i32) -> (i32, i32, i32) {
    %c0_i32 = arith.constant 0 : i32
    %c0_i32_0 = arith.constant 0 : i32
    %c0_i32_1 = arith.constant 0 : i32
    return %arg1, %c0_i32, %c0_i32_0 : i32, i32, i32
  }
  func.func @transform_9(%arg0: i32, %arg1: i32) -> (i32, i32, i32) {
    %c0_i32 = arith.constant 0 : i32
    %c0_i32_0 = arith.constant 0 : i32
    %c0_i32_1 = arith.constant 0 : i32
    return %arg1, %c0_i32, %c0_i32_0 : i32, i32, i32
  }
  func.func @transform_10(%arg0: i32, %arg1: i32) -> (i32, i32, i32) {
    %c0_i32 = arith.constant 0 : i32
    %c0_i32_0 = arith.constant 0 : i32
    %c0_i32_1 = arith.constant 0 : i32
    return %arg1, %c0_i32, %c0_i32_0 : i32, i32, i32
  }
  func.func @transform_11(%arg0: i32, %arg1: i32) -> (i32, i32, i32) {
    %c0_i32 = arith.constant 0 : i32
    %c0_i32_0 = arith.constant 0 : i32
    %c0_i32_1 = arith.constant 0 : i32
    return %arg1, %c0_i32, %c0_i32_0 : i32, i32, i32
  }
  func.func @transform_12(%arg0: i32, %arg1: i32) -> (i32, i32, i32) {
    %c0_i32 = arith.constant 0 : i32
    %c0_i32_0 = arith.constant 0 : i32
    %c0_i32_1 = arith.constant 0 : i32
    return %arg1, %c0_i32, %c0_i32_0 : i32, i32, i32
  }
  func.func @transform_13(%arg0: i32, %arg1: i32) -> (i32, i32, i32) {
    %c0_i32 = arith.constant 0 : i32
    %c0_i32_0 = arith.constant 0 : i32
    %c0_i32_1 = arith.constant 0 : i32
    return %arg1, %c0_i32, %c0_i32_0 : i32, i32, i32
  }
  func.func @transform_14(%arg0: i32, %arg1: i32) -> (i32, i32, i32) {
    %c0_i32 = arith.constant 0 : i32
    %c0_i32_0 = arith.constant 0 : i32
    %c0_i32_1 = arith.constant 0 : i32
    return %arg1, %c0_i32, %c0_i32_0 : i32, i32, i32
  }
  func.func @transform_15(%arg0: i32, %arg1: i32) -> (i32, i32, i32) {
    %c0_i32 = arith.constant 0 : i32
    %c0_i32_0 = arith.constant 0 : i32
    %c0_i32_1 = arith.constant 0 : i32
    return %arg1, %c0_i32, %c0_i32_0 : i32, i32, i32
  }
  func.func @transform_16(%arg0: i32, %arg1: i32) -> (i32, i32, i32) {
    %c0_i32 = arith.constant 0 : i32
    %c0_i32_0 = arith.constant 0 : i32
    %c0_i32_1 = arith.constant 0 : i32
    return %arg0, %c0_i32, %c0_i32_0 : i32, i32, i32
  }
}

module attributes {stable_mosaic.version = 11 : i64} {
  func.func @_fused_encoder_kernel(%arg0: i32, %arg1: i32, %arg2: memref<3x8x32xbf16, #tpu.memory_space<vmem>>, %arg3: memref<3x1x8xf32, #tpu.memory_space<vmem>>, %arg4: memref<1x32xf32, #tpu.memory_space<vmem>>, %arg5: memref<1x32xf32, #tpu.memory_space<vmem>>, %arg6: memref<1x32x96xbf16, #tpu.memory_space<vmem>>, %arg7: memref<1x1x96xf32, #tpu.memory_space<vmem>>, %arg8: memref<1x32x32xbf16, #tpu.memory_space<vmem>>, %arg9: memref<1x1x32xf32, #tpu.memory_space<vmem>>, %arg10: memref<1x1x32xf32, #tpu.memory_space<vmem>>, %arg11: memref<1x1x32xf32, #tpu.memory_space<vmem>>, %arg12: memref<1x32x64xbf16, #tpu.memory_space<vmem>>, %arg13: memref<1x1x64xf32, #tpu.memory_space<vmem>>, %arg14: memref<1x64x32xbf16, #tpu.memory_space<vmem>>, %arg15: memref<1x1x32xf32, #tpu.memory_space<vmem>>, %arg16: memref<1x1x32xf32, #tpu.memory_space<vmem>>, %arg17: memref<1x1x32xf32, #tpu.memory_space<vmem>>, %arg18: memref<3x1x32xf32, #tpu.memory_space<vmem>>, %arg19: memref<3x8x32xf32, #tpu.memory_space<vmem>>) attributes {dimension_semantics = [#tpu.dimension_semantics<parallel>, #tpu.dimension_semantics<arbitrary>], iteration_bounds = array<i64: 2, 2>, scalar_prefetch = 0 : i64, scratch_operands = 1 : i64, tpu.core_type = #tpu.core_type<tc>, window_params = [{transform_indices = @transform_0, window_bounds = array<i64: 3, 8, 32>}, {transform_indices = @transform_1, window_bounds = array<i64: 3, 1, 8>}, {pipeline_mode = #tpu.pipeline_mode<synchronous>, transform_indices = @transform_2, window_bounds = array<i64: 1, 32>}, {pipeline_mode = #tpu.pipeline_mode<synchronous>, transform_indices = @transform_3, window_bounds = array<i64: 1, 32>}, {transform_indices = @transform_4, window_bounds = array<i64: 1, 32, 96>}, {transform_indices = @transform_5, window_bounds = array<i64: 1, 1, 96>}, {transform_indices = @transform_6, window_bounds = array<i64: 1, 32, 32>}, {transform_indices = @transform_7, window_bounds = array<i64: 1, 1, 32>}, {transform_indices = @transform_8, window_bounds = array<i64: 1, 1, 32>}, {transform_indices = @transform_9, window_bounds = array<i64: 1, 1, 32>}, {transform_indices = @transform_10, window_bounds = array<i64: 1, 32, 64>}, {transform_indices = @transform_11, window_bounds = array<i64: 1, 1, 64>}, {transform_indices = @transform_12, window_bounds = array<i64: 1, 64, 32>}, {transform_indices = @transform_13, window_bounds = array<i64: 1, 1, 32>}, {transform_indices = @transform_14, window_bounds = array<i64: 1, 1, 32>}, {transform_indices = @transform_15, window_bounds = array<i64: 1, 1, 32>}, {transform_indices = @transform_16, window_bounds = array<i64: 3, 1, 32>}]} {
    %c0_i32 = arith.constant 0 : i32
    %0 = arith.cmpi eq, %arg1, %c0_i32 : i32
    %1 = arith.extui %0 : i1 to i32
    %c0_i32_0 = arith.constant 0 : i32
    %2 = arith.cmpi ne, %1, %c0_i32_0 : i32
    scf.if %2 {
      %c0_88 = arith.constant 0 : index
      %c0_89 = arith.constant 0 : index
      %c0_90 = arith.constant 0 : index
      %210 = vector.load %arg2[%c0_88, %c0_89, %c0_90] : memref<3x8x32xbf16, #tpu.memory_space<vmem>>, vector<3x8x32xbf16>
      %211 = arith.extf %210 : vector<3x8x32xbf16> to vector<3x8x32xf32>
      %c0_91 = arith.constant 0 : index
      %c0_92 = arith.constant 0 : index
      %212 = vector.load %arg4[%c0_91, %c0_92] : memref<1x32xf32, #tpu.memory_space<vmem>>, vector<1x32xf32>
      %c0_93 = arith.constant 0 : index
      %c0_94 = arith.constant 0 : index
      %213 = vector.load %arg5[%c0_93, %c0_94] : memref<1x32xf32, #tpu.memory_space<vmem>>, vector<1x32xf32>
      %cst_95 = arith.constant dense<0.000000e+00> : vector<3x8xf32>
      %214 = vector.multi_reduction <add>, %211, %cst_95 [2] : vector<3x8x32xf32> to vector<3x8xf32>
      %215 = vector.shape_cast %214 : vector<3x8xf32> to vector<3x8x1xf32>
      %cst_96 = arith.constant 3.200000e+01 : f32
      %216 = vector.broadcast %cst_96 : f32 to vector<3x8x1xf32>
      %217 = arith.divf %215, %216 : vector<3x8x1xf32>
      %218 = vector.broadcast %217 : vector<3x8x1xf32> to vector<3x8x32xf32>
      %219 = arith.subf %211, %218 : vector<3x8x32xf32>
      %220 = arith.mulf %219, %219 : vector<3x8x32xf32>
      %cst_97 = arith.constant dense<0.000000e+00> : vector<3x8xf32>
      %221 = vector.multi_reduction <add>, %220, %cst_97 [2] : vector<3x8x32xf32> to vector<3x8xf32>
      %222 = vector.shape_cast %221 : vector<3x8xf32> to vector<3x8x1xf32>
      %cst_98 = arith.constant 3.200000e+01 : f32
      %223 = vector.broadcast %cst_98 : f32 to vector<3x8x1xf32>
      %224 = arith.divf %222, %223 : vector<3x8x1xf32>
      %cst_99 = arith.constant 9.99999997E-7 : f32
      %225 = vector.broadcast %cst_99 : f32 to vector<3x8x1xf32>
      %226 = arith.addf %224, %225 : vector<3x8x1xf32>
      %227 = math.rsqrt %226 : vector<3x8x1xf32>
      %228 = vector.broadcast %227 : vector<3x8x1xf32> to vector<3x8x32xf32>
      %229 = arith.mulf %219, %228 : vector<3x8x32xf32>
      %230 = vector.shape_cast %212 : vector<1x32xf32> to vector<1x1x32xf32>
      %231 = vector.broadcast %230 : vector<1x1x32xf32> to vector<3x8x32xf32>
      %232 = arith.mulf %229, %231 : vector<3x8x32xf32>
      %233 = vector.shape_cast %213 : vector<1x32xf32> to vector<1x1x32xf32>
      %234 = vector.broadcast %233 : vector<1x1x32xf32> to vector<3x8x32xf32>
      %235 = arith.addf %232, %234 : vector<3x8x32xf32>
      %c0_100 = arith.constant 0 : index
      %c0_101 = arith.constant 0 : index
      %c0_102 = arith.constant 0 : index
      %236 = vector.load %arg19[%c0_100, %c0_101, %c0_102] : memref<3x8x32xf32, #tpu.memory_space<vmem>>, vector<3x8x32xf32>
      tpu.vector_store %arg19[%c0_100, %c0_101, %c0_102], %235 {strides = array<i32>} : memref<3x8x32xf32, #tpu.memory_space<vmem>>, vector<3x8x32xf32>,
    } else {
    }
    %c0 = arith.constant 0 : index
    %c0_1 = arith.constant 0 : index
    %c0_2 = arith.constant 0 : index
    %3 = vector.load %arg19[%c0, %c0_1, %c0_2] : memref<3x8x32xf32, #tpu.memory_space<vmem>>, vector<3x8x32xf32>
    %4 = vector.shape_cast %3 : vector<3x8x32xf32> to vector<24x32xf32>
    %5 = arith.truncf %4 : vector<24x32xf32> to vector<24x32xbf16>
    %c0_3 = arith.constant 0 : index
    %c0_4 = arith.constant 0 : index
    %c0_5 = arith.constant 0 : index
    %6 = vector.load %arg6[%c0_3, %c0_4, %c0_5] : memref<1x32x96xbf16, #tpu.memory_space<vmem>>, vector<1x32x96xbf16>
    %7 = vector.shape_cast %6 : vector<1x32x96xbf16> to vector<32x96xbf16>
    %cst = arith.constant dense<0.000000e+00> : vector<24x96xf32>
    %8 = tpu.matmul %5, %7, %cst {dimension_numbers = #tpu.dot_dimension_numbers<[1], [0], [0], [1], [0, 0, 1, 1], [], []>} : vector<24x32xbf16>, vector<32x96xbf16>, vector<24x96xf32> -> vector<24x96xf32>
    %c0_6 = arith.constant 0 : index
    %c0_7 = arith.constant 0 : index
    %c0_8 = arith.constant 0 : index
    %9 = vector.load %arg7[%c0_6, %c0_7, %c0_8] : memref<1x1x96xf32, #tpu.memory_space<vmem>>, vector<1x1x96xf32>
    %10 = vector.shape_cast %9 : vector<1x1x96xf32> to vector<1x96xf32>
    %11 = vector.broadcast %10 : vector<1x96xf32> to vector<24x96xf32>
    %12 = arith.addf %8, %11 : vector<24x96xf32>
    %13 = arith.truncf %12 : vector<24x96xf32> to vector<24x96xbf16>
    %c0_9 = arith.constant 0 : index
    %c0_10 = arith.constant 0 : index
    %c0_11 = arith.constant 0 : index
    %14 = vector.load %arg3[%c0_9, %c0_10, %c0_11] : memref<3x1x8xf32, #tpu.memory_space<vmem>>, vector<3x1x8xf32>
    %15 = vector.extract_strided_slice %13 {offsets = [0, 0], sizes = [24, 8], strides = [1, 1]} : vector<24x96xbf16> to vector<24x8xbf16>
    %16 = vector.shape_cast %15 : vector<24x8xbf16> to vector<3x8x8xbf16>
    %17 = vector.extract_strided_slice %13 {offsets = [0, 32], sizes = [24, 8], strides = [1, 1]} : vector<24x96xbf16> to vector<24x8xbf16>
    %18 = vector.shape_cast %17 : vector<24x8xbf16> to vector<3x8x8xbf16>
    %19 = vector.extract_strided_slice %13 {offsets = [0, 64], sizes = [24, 8], strides = [1, 1]} : vector<24x96xbf16> to vector<24x8xbf16>
    %20 = vector.shape_cast %19 : vector<24x8xbf16> to vector<3x8x8xbf16>
    "tpu.trace_start"() <{level = 10 : i32, message = "bqd,bkd->bqk"}> : () -> ()
    %cst_12 = arith.constant dense<0.000000e+00> : vector<3x8x8xf32>
    %21 = tpu.matmul %16, %18, %cst_12 {dimension_numbers = #tpu.dot_dimension_numbers<[2], [2], [1], [1], [0, 0, 0, 1, 1, 1], [0], [0]>} : vector<3x8x8xbf16>, vector<3x8x8xbf16>, vector<3x8x8xf32> -> vector<3x8x8xf32>
    "tpu.trace_stop"() : () -> ()
    %22 = vector.broadcast %14 : vector<3x1x8xf32> to vector<3x8x8xf32>
    %23 = arith.addf %21, %22 : vector<3x8x8xf32>
    %cst_13 = arith.constant dense<0xFF800000> : vector<3x8xf32>
    %24 = vector.multi_reduction <maximumf>, %23, %cst_13 [2] : vector<3x8x8xf32> to vector<3x8xf32>
    %25 = vector.shape_cast %24 : vector<3x8xf32> to vector<3x8x1xf32>
    %26 = vector.broadcast %25 : vector<3x8x1xf32> to vector<3x8x8xf32>
    %27 = arith.subf %23, %26 : vector<3x8x8xf32>
    %28 = math.exp %27 : vector<3x8x8xf32>
    %cst_14 = arith.constant dense<0.000000e+00> : vector<3x8xf32>
    %29 = vector.multi_reduction <add>, %28, %cst_14 [2] : vector<3x8x8xf32> to vector<3x8xf32>
    %30 = vector.shape_cast %29 : vector<3x8xf32> to vector<3x8x1xf32>
    %31 = tpu.reciprocal %30 {approx = true} : vector<3x8x1xf32> -> vector<3x8x1xf32>
    %32 = vector.broadcast %31 : vector<3x8x1xf32> to vector<3x8x8xf32>
    %33 = arith.mulf %28, %32 : vector<3x8x8xf32>
    %34 = arith.truncf %33 : vector<3x8x8xf32> to vector<3x8x8xbf16>
    "tpu.trace_start"() <{level = 10 : i32, message = "bqk,bkd->bqd"}> : () -> ()
    %cst_15 = arith.constant dense<0.000000e+00> : vector<3x8x8xf32>
    %35 = tpu.matmul %34, %20, %cst_15 {dimension_numbers = #tpu.dot_dimension_numbers<[2], [1], [1], [2], [0, 0, 0, 1, 1, 2], [0], [0]>} : vector<3x8x8xbf16>, vector<3x8x8xbf16>, vector<3x8x8xf32> -> vector<3x8x8xf32>
    "tpu.trace_stop"() : () -> ()
    %36 = vector.shape_cast %35 : vector<3x8x8xf32> to vector<24x8xf32>
    %37 = arith.truncf %36 : vector<24x8xf32> to vector<24x8xbf16>
    %c0_16 = arith.constant 0 : index
    %c0_17 = arith.constant 0 : index
    %c0_18 = arith.constant 0 : index
    %38 = vector.load %arg8[%c0_16, %c0_17, %c0_18] : memref<1x32x32xbf16, #tpu.memory_space<vmem>>, vector<1x8x32xbf16>
    %39 = vector.shape_cast %38 : vector<1x8x32xbf16> to vector<8x32xbf16>
    %cst_19 = arith.constant dense<0.000000e+00> : vector<24x32xf32>
    %40 = tpu.matmul %37, %39, %cst_19 {dimension_numbers = #tpu.dot_dimension_numbers<[1], [0], [0], [1], [0, 0, 1, 1], [], []>} : vector<24x8xbf16>, vector<8x32xbf16>, vector<24x32xf32> -> vector<24x32xf32>
    %41 = vector.extract_strided_slice %13 {offsets = [0, 8], sizes = [24, 8], strides = [1, 1]} : vector<24x96xbf16> to vector<24x8xbf16>
    %42 = vector.shape_cast %41 : vector<24x8xbf16> to vector<3x8x8xbf16>
    %43 = vector.extract_strided_slice %13 {offsets = [0, 40], sizes = [24, 8], strides = [1, 1]} : vector<24x96xbf16> to vector<24x8xbf16>
    %44 = vector.shape_cast %43 : vector<24x8xbf16> to vector<3x8x8xbf16>
    %45 = vector.extract_strided_slice %13 {offsets = [0, 72], sizes = [24, 8], strides = [1, 1]} : vector<24x96xbf16> to vector<24x8xbf16>
    %46 = vector.shape_cast %45 : vector<24x8xbf16> to vector<3x8x8xbf16>
    "tpu.trace_start"() <{level = 10 : i32, message = "bqd,bkd->bqk"}> : () -> ()
    %cst_20 = arith.constant dense<0.000000e+00> : vector<3x8x8xf32>
    %47 = tpu.matmul %42, %44, %cst_20 {dimension_numbers = #tpu.dot_dimension_numbers<[2], [2], [1], [1], [0, 0, 0, 1, 1, 1], [0], [0]>} : vector<3x8x8xbf16>, vector<3x8x8xbf16>, vector<3x8x8xf32> -> vector<3x8x8xf32>
    "tpu.trace_stop"() : () -> ()
    %48 = vector.broadcast %14 : vector<3x1x8xf32> to vector<3x8x8xf32>
    %49 = arith.addf %47, %48 : vector<3x8x8xf32>
    %cst_21 = arith.constant dense<0xFF800000> : vector<3x8xf32>
    %50 = vector.multi_reduction <maximumf>, %49, %cst_21 [2] : vector<3x8x8xf32> to vector<3x8xf32>
    %51 = vector.shape_cast %50 : vector<3x8xf32> to vector<3x8x1xf32>
    %52 = vector.broadcast %51 : vector<3x8x1xf32> to vector<3x8x8xf32>
    %53 = arith.subf %49, %52 : vector<3x8x8xf32>
    %54 = math.exp %53 : vector<3x8x8xf32>
    %cst_22 = arith.constant dense<0.000000e+00> : vector<3x8xf32>
    %55 = vector.multi_reduction <add>, %54, %cst_22 [2] : vector<3x8x8xf32> to vector<3x8xf32>
    %56 = vector.shape_cast %55 : vector<3x8xf32> to vector<3x8x1xf32>
    %57 = tpu.reciprocal %56 {approx = true} : vector<3x8x1xf32> -> vector<3x8x1xf32>
    %58 = vector.broadcast %57 : vector<3x8x1xf32> to vector<3x8x8xf32>
    %59 = arith.mulf %54, %58 : vector<3x8x8xf32>
    %60 = arith.truncf %59 : vector<3x8x8xf32> to vector<3x8x8xbf16>
    "tpu.trace_start"() <{level = 10 : i32, message = "bqk,bkd->bqd"}> : () -> ()
    %cst_23 = arith.constant dense<0.000000e+00> : vector<3x8x8xf32>
    %61 = tpu.matmul %60, %46, %cst_23 {dimension_numbers = #tpu.dot_dimension_numbers<[2], [1], [1], [2], [0, 0, 0, 1, 1, 2], [0], [0]>} : vector<3x8x8xbf16>, vector<3x8x8xbf16>, vector<3x8x8xf32> -> vector<3x8x8xf32>
    "tpu.trace_stop"() : () -> ()
    %62 = vector.shape_cast %61 : vector<3x8x8xf32> to vector<24x8xf32>
    %63 = arith.truncf %62 : vector<24x8xf32> to vector<24x8xbf16>
    %c0_24 = arith.constant 0 : index
    %c8 = arith.constant 8 : index
    %c0_25 = arith.constant 0 : index
    %64 = vector.load %arg8[%c0_24, %c8, %c0_25] : memref<1x32x32xbf16, #tpu.memory_space<vmem>>, vector<1x8x32xbf16>
    %65 = vector.shape_cast %64 : vector<1x8x32xbf16> to vector<8x32xbf16>
    %cst_26 = arith.constant dense<0.000000e+00> : vector<24x32xf32>
    %66 = tpu.matmul %63, %65, %cst_26 {dimension_numbers = #tpu.dot_dimension_numbers<[1], [0], [0], [1], [0, 0, 1, 1], [], []>} : vector<24x8xbf16>, vector<8x32xbf16>, vector<24x32xf32> -> vector<24x32xf32>
    %67 = arith.addf %40, %66 : vector<24x32xf32>
    %68 = vector.extract_strided_slice %13 {offsets = [0, 16], sizes = [24, 8], strides = [1, 1]} : vector<24x96xbf16> to vector<24x8xbf16>
    %69 = vector.shape_cast %68 : vector<24x8xbf16> to vector<3x8x8xbf16>
    %70 = vector.extract_strided_slice %13 {offsets = [0, 48], sizes = [24, 8], strides = [1, 1]} : vector<24x96xbf16> to vector<24x8xbf16>
    %71 = vector.shape_cast %70 : vector<24x8xbf16> to vector<3x8x8xbf16>
    %72 = vector.extract_strided_slice %13 {offsets = [0, 80], sizes = [24, 8], strides = [1, 1]} : vector<24x96xbf16> to vector<24x8xbf16>
    %73 = vector.shape_cast %72 : vector<24x8xbf16> to vector<3x8x8xbf16>
    "tpu.trace_start"() <{level = 10 : i32, message = "bqd,bkd->bqk"}> : () -> ()
    %cst_27 = arith.constant dense<0.000000e+00> : vector<3x8x8xf32>
    %74 = tpu.matmul %69, %71, %cst_27 {dimension_numbers = #tpu.dot_dimension_numbers<[2], [2], [1], [1], [0, 0, 0, 1, 1, 1], [0], [0]>} : vector<3x8x8xbf16>, vector<3x8x8xbf16>, vector<3x8x8xf32> -> vector<3x8x8xf32>
    "tpu.trace_stop"() : () -> ()
    %75 = vector.broadcast %14 : vector<3x1x8xf32> to vector<3x8x8xf32>
    %76 = arith.addf %74, %75 : vector<3x8x8xf32>
    %cst_28 = arith.constant dense<0xFF800000> : vector<3x8xf32>
    %77 = vector.multi_reduction <maximumf>, %76, %cst_28 [2] : vector<3x8x8xf32> to vector<3x8xf32>
    %78 = vector.shape_cast %77 : vector<3x8xf32> to vector<3x8x1xf32>
    %79 = vector.broadcast %78 : vector<3x8x1xf32> to vector<3x8x8xf32>
    %80 = arith.subf %76, %79 : vector<3x8x8xf32>
    %81 = math.exp %80 : vector<3x8x8xf32>
    %cst_29 = arith.constant dense<0.000000e+00> : vector<3x8xf32>
    %82 = vector.multi_reduction <add>, %81, %cst_29 [2] : vector<3x8x8xf32> to vector<3x8xf32>
    %83 = vector.shape_cast %82 : vector<3x8xf32> to vector<3x8x1xf32>
    %84 = tpu.reciprocal %83 {approx = true} : vector<3x8x1xf32> -> vector<3x8x1xf32>
    %85 = vector.broadcast %84 : vector<3x8x1xf32> to vector<3x8x8xf32>
    %86 = arith.mulf %81, %85 : vector<3x8x8xf32>
    %87 = arith.truncf %86 : vector<3x8x8xf32> to vector<3x8x8xbf16>
    "tpu.trace_start"() <{level = 10 : i32, message = "bqk,bkd->bqd"}> : () -> ()
    %cst_30 = arith.constant dense<0.000000e+00> : vector<3x8x8xf32>
    %88 = tpu.matmul %87, %73, %cst_30 {dimension_numbers = #tpu.dot_dimension_numbers<[2], [1], [1], [2], [0, 0, 0, 1, 1, 2], [0], [0]>} : vector<3x8x8xbf16>, vector<3x8x8xbf16>, vector<3x8x8xf32> -> vector<3x8x8xf32>
    "tpu.trace_stop"() : () -> ()
    %89 = vector.shape_cast %88 : vector<3x8x8xf32> to vector<24x8xf32>
    %90 = arith.truncf %89 : vector<24x8xf32> to vector<24x8xbf16>
    %c0_31 = arith.constant 0 : index
    %c16 = arith.constant 16 : index
    %c0_32 = arith.constant 0 : index
    %91 = vector.load %arg8[%c0_31, %c16, %c0_32] : memref<1x32x32xbf16, #tpu.memory_space<vmem>>, vector<1x8x32xbf16>
    %92 = vector.shape_cast %91 : vector<1x8x32xbf16> to vector<8x32xbf16>
    %cst_33 = arith.constant dense<0.000000e+00> : vector<24x32xf32>
    %93 = tpu.matmul %90, %92, %cst_33 {dimension_numbers = #tpu.dot_dimension_numbers<[1], [0], [0], [1], [0, 0, 1, 1], [], []>} : vector<24x8xbf16>, vector<8x32xbf16>, vector<24x32xf32> -> vector<24x32xf32>
    %94 = arith.addf %67, %93 : vector<24x32xf32>
    %95 = vector.extract_strided_slice %13 {offsets = [0, 24], sizes = [24, 8], strides = [1, 1]} : vector<24x96xbf16> to vector<24x8xbf16>
    %96 = vector.shape_cast %95 : vector<24x8xbf16> to vector<3x8x8xbf16>
    %97 = vector.extract_strided_slice %13 {offsets = [0, 56], sizes = [24, 8], strides = [1, 1]} : vector<24x96xbf16> to vector<24x8xbf16>
    %98 = vector.shape_cast %97 : vector<24x8xbf16> to vector<3x8x8xbf16>
    %99 = vector.extract_strided_slice %13 {offsets = [0, 88], sizes = [24, 8], strides = [1, 1]} : vector<24x96xbf16> to vector<24x8xbf16>
    %100 = vector.shape_cast %99 : vector<24x8xbf16> to vector<3x8x8xbf16>
    "tpu.trace_start"() <{level = 10 : i32, message = "bqd,bkd->bqk"}> : () -> ()
    %cst_34 = arith.constant dense<0.000000e+00> : vector<3x8x8xf32>
    %101 = tpu.matmul %96, %98, %cst_34 {dimension_numbers = #tpu.dot_dimension_numbers<[2], [2], [1], [1], [0, 0, 0, 1, 1, 1], [0], [0]>} : vector<3x8x8xbf16>, vector<3x8x8xbf16>, vector<3x8x8xf32> -> vector<3x8x8xf32>
    "tpu.trace_stop"() : () -> ()
    %102 = vector.broadcast %14 : vector<3x1x8xf32> to vector<3x8x8xf32>
    %103 = arith.addf %101, %102 : vector<3x8x8xf32>
    %cst_35 = arith.constant dense<0xFF800000> : vector<3x8xf32>
    %104 = vector.multi_reduction <maximumf>, %103, %cst_35 [2] : vector<3x8x8xf32> to vector<3x8xf32>
    %105 = vector.shape_cast %104 : vector<3x8xf32> to vector<3x8x1xf32>
    %106 = vector.broadcast %105 : vector<3x8x1xf32> to vector<3x8x8xf32>
    %107 = arith.subf %103, %106 : vector<3x8x8xf32>
    %108 = math.exp %107 : vector<3x8x8xf32>
    %cst_36 = arith.constant dense<0.000000e+00> : vector<3x8xf32>
    %109 = vector.multi_reduction <add>, %108, %cst_36 [2] : vector<3x8x8xf32> to vector<3x8xf32>
    %110 = vector.shape_cast %109 : vector<3x8xf32> to vector<3x8x1xf32>
    %111 = tpu.reciprocal %110 {approx = true} : vector<3x8x1xf32> -> vector<3x8x1xf32>
    %112 = vector.broadcast %111 : vector<3x8x1xf32> to vector<3x8x8xf32>
    %113 = arith.mulf %108, %112 : vector<3x8x8xf32>
    %114 = arith.truncf %113 : vector<3x8x8xf32> to vector<3x8x8xbf16>
    "tpu.trace_start"() <{level = 10 : i32, message = "bqk,bkd->bqd"}> : () -> ()
    %cst_37 = arith.constant dense<0.000000e+00> : vector<3x8x8xf32>
    %115 = tpu.matmul %114, %100, %cst_37 {dimension_numbers = #tpu.dot_dimension_numbers<[2], [1], [1], [2], [0, 0, 0, 1, 1, 2], [0], [0]>} : vector<3x8x8xbf16>, vector<3x8x8xbf16>, vector<3x8x8xf32> -> vector<3x8x8xf32>
    "tpu.trace_stop"() : () -> ()
    %116 = vector.shape_cast %115 : vector<3x8x8xf32> to vector<24x8xf32>
    %117 = arith.truncf %116 : vector<24x8xf32> to vector<24x8xbf16>
    %c0_38 = arith.constant 0 : index
    %c24 = arith.constant 24 : index
    %c0_39 = arith.constant 0 : index
    %118 = vector.load %arg8[%c0_38, %c24, %c0_39] : memref<1x32x32xbf16, #tpu.memory_space<vmem>>, vector<1x8x32xbf16>
    %119 = vector.shape_cast %118 : vector<1x8x32xbf16> to vector<8x32xbf16>
    %cst_40 = arith.constant dense<0.000000e+00> : vector<24x32xf32>
    %120 = tpu.matmul %117, %119, %cst_40 {dimension_numbers = #tpu.dot_dimension_numbers<[1], [0], [0], [1], [0, 0, 1, 1], [], []>} : vector<24x8xbf16>, vector<8x32xbf16>, vector<24x32xf32> -> vector<24x32xf32>
    %121 = arith.addf %94, %120 : vector<24x32xf32>
    %c0_41 = arith.constant 0 : index
    %c0_42 = arith.constant 0 : index
    %c0_43 = arith.constant 0 : index
    %122 = vector.load %arg9[%c0_41, %c0_42, %c0_43] : memref<1x1x32xf32, #tpu.memory_space<vmem>>, vector<1x1x32xf32>
    %123 = vector.shape_cast %122 : vector<1x1x32xf32> to vector<1x32xf32>
    %124 = vector.broadcast %123 : vector<1x32xf32> to vector<24x32xf32>
    %125 = arith.addf %121, %124 : vector<24x32xf32>
    %126 = arith.addf %4, %125 : vector<24x32xf32>
    %c0_44 = arith.constant 0 : index
    %c0_45 = arith.constant 0 : index
    %c0_46 = arith.constant 0 : index
    %127 = vector.load %arg10[%c0_44, %c0_45, %c0_46] : memref<1x1x32xf32, #tpu.memory_space<vmem>>, vector<1x1x32xf32>
    %128 = vector.shape_cast %127 : vector<1x1x32xf32> to vector<1x32xf32>
    %c0_47 = arith.constant 0 : index
    %c0_48 = arith.constant 0 : index
    %c0_49 = arith.constant 0 : index
    %129 = vector.load %arg11[%c0_47, %c0_48, %c0_49] : memref<1x1x32xf32, #tpu.memory_space<vmem>>, vector<1x1x32xf32>
    %130 = vector.shape_cast %129 : vector<1x1x32xf32> to vector<1x32xf32>
    %cst_50 = arith.constant dense<0.000000e+00> : vector<24xf32>
    %131 = vector.multi_reduction <add>, %126, %cst_50 [1] : vector<24x32xf32> to vector<24xf32>
    %132 = vector.shape_cast %131 : vector<24xf32> to vector<24x1xf32>
    %cst_51 = arith.constant 3.200000e+01 : f32
    %133 = vector.broadcast %cst_51 : f32 to vector<24x1xf32>
    %134 = arith.divf %132, %133 : vector<24x1xf32>
    %135 = vector.broadcast %134 : vector<24x1xf32> to vector<24x32xf32>
    %136 = arith.subf %126, %135 : vector<24x32xf32>
    %137 = arith.mulf %136, %136 : vector<24x32xf32>
    %cst_52 = arith.constant dense<0.000000e+00> : vector<24xf32>
    %138 = vector.multi_reduction <add>, %137, %cst_52 [1] : vector<24x32xf32> to vector<24xf32>
    %139 = vector.shape_cast %138 : vector<24xf32> to vector<24x1xf32>
    %cst_53 = arith.constant 3.200000e+01 : f32
    %140 = vector.broadcast %cst_53 : f32 to vector<24x1xf32>
    %141 = arith.divf %139, %140 : vector<24x1xf32>
    %cst_54 = arith.constant 9.99999997E-7 : f32
    %142 = vector.broadcast %cst_54 : f32 to vector<24x1xf32>
    %143 = arith.addf %141, %142 : vector<24x1xf32>
    %144 = math.rsqrt %143 : vector<24x1xf32>
    %145 = vector.broadcast %144 : vector<24x1xf32> to vector<24x32xf32>
    %146 = arith.mulf %136, %145 : vector<24x32xf32>
    %147 = vector.broadcast %128 : vector<1x32xf32> to vector<24x32xf32>
    %148 = arith.mulf %146, %147 : vector<24x32xf32>
    %149 = vector.broadcast %130 : vector<1x32xf32> to vector<24x32xf32>
    %150 = arith.addf %148, %149 : vector<24x32xf32>
    %151 = arith.truncf %150 : vector<24x32xf32> to vector<24x32xbf16>
    %c0_55 = arith.constant 0 : index
    %c0_56 = arith.constant 0 : index
    %c0_57 = arith.constant 0 : index
    %152 = vector.load %arg12[%c0_55, %c0_56, %c0_57] : memref<1x32x64xbf16, #tpu.memory_space<vmem>>, vector<1x32x64xbf16>
    %153 = vector.shape_cast %152 : vector<1x32x64xbf16> to vector<32x64xbf16>
    %cst_58 = arith.constant dense<0.000000e+00> : vector<24x64xf32>
    %154 = tpu.matmul %151, %153, %cst_58 {dimension_numbers = #tpu.dot_dimension_numbers<[1], [0], [0], [1], [0, 0, 1, 1], [], []>} : vector<24x32xbf16>, vector<32x64xbf16>, vector<24x64xf32> -> vector<24x64xf32>
    %c0_59 = arith.constant 0 : index
    %c0_60 = arith.constant 0 : index
    %c0_61 = arith.constant 0 : index
    %155 = vector.load %arg13[%c0_59, %c0_60, %c0_61] : memref<1x1x64xf32, #tpu.memory_space<vmem>>, vector<1x1x64xf32>
    %156 = vector.shape_cast %155 : vector<1x1x64xf32> to vector<1x64xf32>
    %157 = vector.broadcast %156 : vector<1x64xf32> to vector<24x64xf32>
    %158 = arith.addf %154, %157 : vector<24x64xf32>
    %159 = arith.mulf %158, %158 : vector<24x64xf32>
    %160 = arith.mulf %158, %159 : vector<24x64xf32>
    %cst_62 = arith.constant 4.471500e-02 : f32
    %161 = vector.broadcast %cst_62 : f32 to vector<24x64xf32>
    %162 = arith.mulf %161, %160 : vector<24x64xf32>
    %163 = arith.addf %158, %162 : vector<24x64xf32>
    %cst_63 = arith.constant 0.797884583 : f32
    %164 = vector.broadcast %cst_63 : f32 to vector<24x64xf32>
    %165 = arith.mulf %164, %163 : vector<24x64xf32>
    %166 = math.tanh %165 : vector<24x64xf32>
    %cst_64 = arith.constant 1.000000e+00 : f32
    %167 = vector.broadcast %cst_64 : f32 to vector<24x64xf32>
    %168 = arith.addf %167, %166 : vector<24x64xf32>
    %cst_65 = arith.constant 5.000000e-01 : f32
    %169 = vector.broadcast %cst_65 : f32 to vector<24x64xf32>
    %170 = arith.mulf %169, %168 : vector<24x64xf32>
    %171 = arith.mulf %158, %170 : vector<24x64xf32>
    %172 = arith.truncf %171 : vector<24x64xf32> to vector<24x64xbf16>
    %c0_66 = arith.constant 0 : index
    %c0_67 = arith.constant 0 : index
    %c0_68 = arith.constant 0 : index
    %173 = vector.load %arg14[%c0_66, %c0_67, %c0_68] : memref<1x64x32xbf16, #tpu.memory_space<vmem>>, vector<1x64x32xbf16>
    %174 = vector.shape_cast %173 : vector<1x64x32xbf16> to vector<64x32xbf16>
    %cst_69 = arith.constant dense<0.000000e+00> : vector<24x32xf32>
    %175 = tpu.matmul %172, %174, %cst_69 {dimension_numbers = #tpu.dot_dimension_numbers<[1], [0], [0], [1], [0, 0, 1, 1], [], []>} : vector<24x64xbf16>, vector<64x32xbf16>, vector<24x32xf32> -> vector<24x32xf32>
    %c0_70 = arith.constant 0 : index
    %c0_71 = arith.constant 0 : index
    %c0_72 = arith.constant 0 : index
    %176 = vector.load %arg15[%c0_70, %c0_71, %c0_72] : memref<1x1x32xf32, #tpu.memory_space<vmem>>, vector<1x1x32xf32>
    %177 = vector.shape_cast %176 : vector<1x1x32xf32> to vector<1x32xf32>
    %178 = vector.broadcast %177 : vector<1x32xf32> to vector<24x32xf32>
    %179 = arith.addf %175, %178 : vector<24x32xf32>
    %180 = arith.addf %150, %179 : vector<24x32xf32>
    %c0_73 = arith.constant 0 : index
    %c0_74 = arith.constant 0 : index
    %c0_75 = arith.constant 0 : index
    %181 = vector.load %arg16[%c0_73, %c0_74, %c0_75] : memref<1x1x32xf32, #tpu.memory_space<vmem>>, vector<1x1x32xf32>
    %182 = vector.shape_cast %181 : vector<1x1x32xf32> to vector<1x32xf32>
    %c0_76 = arith.constant 0 : index
    %c0_77 = arith.constant 0 : index
    %c0_78 = arith.constant 0 : index
    %183 = vector.load %arg17[%c0_76, %c0_77, %c0_78] : memref<1x1x32xf32, #tpu.memory_space<vmem>>, vector<1x1x32xf32>
    %184 = vector.shape_cast %183 : vector<1x1x32xf32> to vector<1x32xf32>
    %cst_79 = arith.constant dense<0.000000e+00> : vector<24xf32>
    %185 = vector.multi_reduction <add>, %180, %cst_79 [1] : vector<24x32xf32> to vector<24xf32>
    %186 = vector.shape_cast %185 : vector<24xf32> to vector<24x1xf32>
    %cst_80 = arith.constant 3.200000e+01 : f32
    %187 = vector.broadcast %cst_80 : f32 to vector<24x1xf32>
    %188 = arith.divf %186, %187 : vector<24x1xf32>
    %189 = vector.broadcast %188 : vector<24x1xf32> to vector<24x32xf32>
    %190 = arith.subf %180, %189 : vector<24x32xf32>
    %191 = arith.mulf %190, %190 : vector<24x32xf32>
    %cst_81 = arith.constant dense<0.000000e+00> : vector<24xf32>
    %192 = vector.multi_reduction <add>, %191, %cst_81 [1] : vector<24x32xf32> to vector<24xf32>
    %193 = vector.shape_cast %192 : vector<24xf32> to vector<24x1xf32>
    %cst_82 = arith.constant 3.200000e+01 : f32
    %194 = vector.broadcast %cst_82 : f32 to vector<24x1xf32>
    %195 = arith.divf %193, %194 : vector<24x1xf32>
    %cst_83 = arith.constant 9.99999997E-7 : f32
    %196 = vector.broadcast %cst_83 : f32 to vector<24x1xf32>
    %197 = arith.addf %195, %196 : vector<24x1xf32>
    %198 = math.rsqrt %197 : vector<24x1xf32>
    %199 = vector.broadcast %198 : vector<24x1xf32> to vector<24x32xf32>
    %200 = arith.mulf %190, %199 : vector<24x32xf32>
    %201 = vector.broadcast %182 : vector<1x32xf32> to vector<24x32xf32>
    %202 = arith.mulf %200, %201 : vector<24x32xf32>
    %203 = vector.broadcast %184 : vector<1x32xf32> to vector<24x32xf32>
    %204 = arith.addf %202, %203 : vector<24x32xf32>
    %205 = vector.shape_cast %204 : vector<24x32xf32> to vector<3x8x32xf32>
    %c0_84 = arith.constant 0 : index
    %c0_85 = arith.constant 0 : index
    %c0_86 = arith.constant 0 : index
    %206 = vector.load %arg19[%c0_84, %c0_85, %c0_86] : memref<3x8x32xf32, #tpu.memory_space<vmem>>, vector<3x8x32xf32>
    tpu.vector_store %arg19[%c0_84, %c0_85, %c0_86], %205 {strides = array<i32>} : memref<3x8x32xf32, #tpu.memory_space<vmem>>, vector<3x8x32xf32>,
    %c1_i32 = arith.constant 1 : i32
    %207 = arith.cmpi eq, %arg1, %c1_i32 : i32
    %208 = arith.extui %207 : i1 to i32
    %c0_i32_87 = arith.constant 0 : i32
    %209 = arith.cmpi ne, %208, %c0_i32_87 : i32
    scf.if %209 {
      %c0_88 = arith.constant 0 : index
      %c0_89 = arith.constant 0 : index
      %c0_90 = arith.constant 0 : index
      %210 = vector.load %arg19[%c0_88, %c0_89, %c0_90] : memref<3x8x32xf32, #tpu.memory_space<vmem>>, vector<3x1x32xf32>
      %c0_91 = arith.constant 0 : index
      %c0_92 = arith.constant 0 : index
      %c0_93 = arith.constant 0 : index
      %211 = vector.load %arg18[%c0_91, %c0_92, %c0_93] : memref<3x1x32xf32, #tpu.memory_space<vmem>>, vector<3x1x32xf32>
      tpu.vector_store %arg18[%c0_91, %c0_92, %c0_93], %210 {strides = array<i32>} : memref<3x1x32xf32, #tpu.memory_space<vmem>>, vector<3x1x32xf32>,
    } else {
    }
    return
  }
  func.func @transform_0(%arg0: i32, %arg1: i32) -> (i32, i32, i32) {
    %c0_i32 = arith.constant 0 : i32
    %c0_i32_0 = arith.constant 0 : i32
    %c0_i32_1 = arith.constant 0 : i32
    return %arg0, %c0_i32, %c0_i32_0 : i32, i32, i32
  }
  func.func @transform_1(%arg0: i32, %arg1: i32) -> (i32, i32, i32) {
    %c0_i32 = arith.constant 0 : i32
    %c0_i32_0 = arith.constant 0 : i32
    %c0_i32_1 = arith.constant 0 : i32
    return %arg0, %c0_i32, %c0_i32_0 : i32, i32, i32
  }
  func.func @transform_2(%arg0: i32, %arg1: i32) -> (i32, i32) {
    %c0_i32 = arith.constant 0 : i32
    %c0_i32_0 = arith.constant 0 : i32
    %c0_i32_1 = arith.constant 0 : i32
    return %c0_i32, %c0_i32_0 : i32, i32
  }
  func.func @transform_3(%arg0: i32, %arg1: i32) -> (i32, i32) {
    %c0_i32 = arith.constant 0 : i32
    %c0_i32_0 = arith.constant 0 : i32
    %c0_i32_1 = arith.constant 0 : i32
    return %c0_i32, %c0_i32_0 : i32, i32
  }
  func.func @transform_4(%arg0: i32, %arg1: i32) -> (i32, i32, i32) {
    %c0_i32 = arith.constant 0 : i32
    %c0_i32_0 = arith.constant 0 : i32
    %c0_i32_1 = arith.constant 0 : i32
    return %arg1, %c0_i32, %c0_i32_0 : i32, i32, i32
  }
  func.func @transform_5(%arg0: i32, %arg1: i32) -> (i32, i32, i32) {
    %c0_i32 = arith.constant 0 : i32
    %c0_i32_0 = arith.constant 0 : i32
    %c0_i32_1 = arith.constant 0 : i32
    return %arg1, %c0_i32, %c0_i32_0 : i32, i32, i32
  }
  func.func @transform_6(%arg0: i32, %arg1: i32) -> (i32, i32, i32) {
    %c0_i32 = arith.constant 0 : i32
    %c0_i32_0 = arith.constant 0 : i32
    %c0_i32_1 = arith.constant 0 : i32
    return %arg1, %c0_i32, %c0_i32_0 : i32, i32, i32
  }
  func.func @transform_7(%arg0: i32, %arg1: i32) -> (i32, i32, i32) {
    %c0_i32 = arith.constant 0 : i32
    %c0_i32_0 = arith.constant 0 : i32
    %c0_i32_1 = arith.constant 0 : i32
    return %arg1, %c0_i32, %c0_i32_0 : i32, i32, i32
  }
  func.func @transform_8(%arg0: i32, %arg1: i32) -> (i32, i32, i32) {
    %c0_i32 = arith.constant 0 : i32
    %c0_i32_0 = arith.constant 0 : i32
    %c0_i32_1 = arith.constant 0 : i32
    return %arg1, %c0_i32, %c0_i32_0 : i32, i32, i32
  }
  func.func @transform_9(%arg0: i32, %arg1: i32) -> (i32, i32, i32) {
    %c0_i32 = arith.constant 0 : i32
    %c0_i32_0 = arith.constant 0 : i32
    %c0_i32_1 = arith.constant 0 : i32
    return %arg1, %c0_i32, %c0_i32_0 : i32, i32, i32
  }
  func.func @transform_10(%arg0: i32, %arg1: i32) -> (i32, i32, i32) {
    %c0_i32 = arith.constant 0 : i32
    %c0_i32_0 = arith.constant 0 : i32
    %c0_i32_1 = arith.constant 0 : i32
    return %arg1, %c0_i32, %c0_i32_0 : i32, i32, i32
  }
  func.func @transform_11(%arg0: i32, %arg1: i32) -> (i32, i32, i32) {
    %c0_i32 = arith.constant 0 : i32
    %c0_i32_0 = arith.constant 0 : i32
    %c0_i32_1 = arith.constant 0 : i32
    return %arg1, %c0_i32, %c0_i32_0 : i32, i32, i32
  }
  func.func @transform_12(%arg0: i32, %arg1: i32) -> (i32, i32, i32) {
    %c0_i32 = arith.constant 0 : i32
    %c0_i32_0 = arith.constant 0 : i32
    %c0_i32_1 = arith.constant 0 : i32
    return %arg1, %c0_i32, %c0_i32_0 : i32, i32, i32
  }
  func.func @transform_13(%arg0: i32, %arg1: i32) -> (i32, i32, i32) {
    %c0_i32 = arith.constant 0 : i32
    %c0_i32_0 = arith.constant 0 : i32
    %c0_i32_1 = arith.constant 0 : i32
    return %arg1, %c0_i32, %c0_i32_0 : i32, i32, i32
  }
  func.func @transform_14(%arg0: i32, %arg1: i32) -> (i32, i32, i32) {
    %c0_i32 = arith.constant 0 : i32
    %c0_i32_0 = arith.constant 0 : i32
    %c0_i32_1 = arith.constant 0 : i32
    return %arg1, %c0_i32, %c0_i32_0 : i32, i32, i32
  }
  func.func @transform_15(%arg0: i32, %arg1: i32) -> (i32, i32, i32) {
    %c0_i32 = arith.constant 0 : i32
    %c0_i32_0 = arith.constant 0 : i32
    %c0_i32_1 = arith.constant 0 : i32
    return %arg1, %c0_i32, %c0_i32_0 : i32, i32, i32
  }
  func.func @transform_16(%arg0: i32, %arg1: i32) -> (i32, i32, i32) {
    %c0_i32 = arith.constant 0 : i32
    %c0_i32_0 = arith.constant 0 : i32
    %c0_i32_1 = arith.constant 0 : i32
    return %arg0, %c0_i32, %c0_i32_0 : i32, i32, i32
  }
}

</mosaic_0001>

<llo_original>
// kernel: tpu_custom_call.1
$region0: #{tpu_custom_call.1}
  #allocation0 [shape = 'u32[]', space=smem, size = 0x4, offset = 0x4, fixed_abs, tag = 'smem constant byte address 0x4 - core index']
  #allocation1 [shape = 'u32[72,128]{1,0:T(1,128)}', space=vmem, size = 0x9000, scoped, tag = 'internal scratch']
  #allocation2 [shape = 'f32[3,8,32]{2,1,0:T(8,128)}', space=vmem, size = 0x3000, scoped, tag = 'scratch operand']
  %s0 = inlined_call_operand.hbm [shape: bf16[6,8,32], index: 0, kind: input, shape index: {}]
  %s1 = inlined_call_operand.hbm [shape: f32[6,1,8], index: 1, kind: input, shape index: {}]
  %s2 = inlined_call_operand.vmem [shape: f32[1,32], index: 2, kind: input, shape index: {}]
  %s3 = inlined_call_operand.hbm [shape: f32[1,32], index: 3, kind: input, shape index: {}]
  %s4 = inlined_call_operand.vmem [shape: bf16[2,32,96], index: 4, kind: input, shape index: {}]
  %s5 = inlined_call_operand.vmem [shape: f32[2,1,96], index: 5, kind: input, shape index: {}]
  %s6 = inlined_call_operand.vmem [shape: bf16[2,32,32], index: 6, kind: input, shape index: {}]
  %s7 = inlined_call_operand.vmem [shape: f32[2,1,32], index: 7, kind: input, shape index: {}]
  %s8 = inlined_call_operand.vmem [shape: f32[2,1,32], index: 8, kind: input, shape index: {}]
  %s9 = inlined_call_operand.hbm [shape: f32[2,1,32], index: 9, kind: input, shape index: {}]
  %s10 = inlined_call_operand.vmem [shape: bf16[2,32,64], index: 10, kind: input, shape index: {}]
  %s11 = inlined_call_operand.vmem [shape: f32[2,1,64], index: 11, kind: input, shape index: {}]
  %s12 = inlined_call_operand.vmem [shape: bf16[2,64,32], index: 12, kind: input, shape index: {}]
  %s13 = inlined_call_operand.vmem [shape: f32[2,1,32], index: 13, kind: input, shape index: {}]
  %s14 = inlined_call_operand.vmem [shape: f32[2,1,32], index: 14, kind: input, shape index: {}]
  %s15 = inlined_call_operand.hbm [shape: f32[2,1,32], index: 15, kind: input, shape index: {}]
  %s16 = inlined_call_operand.hbm [shape: f32[6,1,32], index: 16, kind: output, shape index: {}]
  %s17 = sld [smem:[#allocation0]]
  $region125: #{tpu_custom_call.1} parent=0
    _
  %s19 = ssub.s32 1, %s17
  %s20 = scalar_select 0, %s19, %s17
  $region1: #{tpu_custom_call.1} parent=0
    #allocation3 [shape = 'u8[6144]{0}', space=vmem, size = 0x1800, scoped, tag = 'input window, operand 0, single buffered']
    #allocation4 [shape = 's32[2]{0}', space=sflag, size = 0x8, scoped, tag = 'scoped memory for tpu_custom_call.1']
    #allocation5 [shape = 's32[2]{0}', space=sflag, size = 0x8, scoped, tag = 'scoped memory for tpu_custom_call.1']
    #allocation6 [shape = 'u8[3072]{0}', space=vmem, size = 0xc00, scoped, tag = 'input window, operand 1']
    #allocation7 [shape = 's32[2]{0}', space=sflag, size = 0x8, scoped, tag = 'scoped memory for tpu_custom_call.1']
    #allocation8 [shape = 'u8[512]{0}', space=vmem, size = 0x400, scoped, tag = 'input window, operand 3, single buffered']
    #allocation9 [shape = 'u8[1024]{0}', space=vmem, size = 0x400, scoped, tag = 'input window, operand 9']
    #allocation10 [shape = 's32[2]{0}', space=sflag, size = 0x8, scoped, tag = 'scoped memory for tpu_custom_call.1']
    #allocation11 [shape = 'u8[1024]{0}', space=vmem, size = 0x400, scoped, tag = 'input window, operand 15']
    #allocation12 [shape = 'u8[3072]{0}', space=vmem, size = 0xc00, scoped, tag = 'output window, operand 0']
    %21 = vsyncpa [#allocation4], 0
    %22 = vsyncpa [#allocation7], 0
    %s23 = scalar_lea.sflag [#allocation7], 1
    %24 = vsyncpa %s23, 0
    %25 = vsyncpa [#allocation10], 0
    %s26 = scalar_lea.sflag [#allocation10], 1
    %27 = vsyncpa %s26, 0
    %28 = vsyncpa [#allocation5], 0
    %s29 = scalar_lea.sflag [#allocation5], 1
    %30 = vsyncpa %s29, 0
    loop: start=0, step=1, limit=6
    $region2: #{tpu_custom_call.1} parent=1 // loop_pre_header
      _
    $region3: #{tpu_custom_call.1} parent=1 // loop_header
      %s32 = sphi 0, %s36
      %p33 = scmp.ge.s32.totalorder %s32, 6
      %s39 = sphi 0, %s51
      %s40 = sphi 0, %s47
      %s41 = sphi 0, %s39
      %s42 = sphi 0, %s40
      %s43 = sphi 0, %s41
      %s44 = sphi 0, %s42
      %s54 = sphi 0, %s56
      %s57 = sphi 0, %s54
      %s58 = sphi 0, %s57
      %s74 = sphi 0, %s58
      %s80 = sphi 0, %s82
      %s83 = sphi 0, %s80
      %s84 = sphi 0, %s83
      %s100 = sphi 0, %s84
      %s104 = sphi 0, %s104
      %s106 = sphi 0, %s104
      %s107 = sphi 0, %s106
      %s121 = sphi 0, %s107
      %s125 = sphi 0, %s125
      %s127 = sphi 0, %s125
      %s128 = sphi 0, %s127
      %s142 = sphi 0, %s128
      %s148 = sphi 0, %s150
      %s151 = sphi 0, %s148
      %s152 = sphi 0, %s151
      %s168 = sphi 0, %s152
      %s174 = sphi 0, %s176
      %s177 = sphi 0, %s174
      %s178 = sphi 0, %s177
      %s194 = sphi 0, %s178
      %s200 = sphi 0, %s202
      %s203 = sphi 0, %s200
      %s204 = sphi 0, %s203
      %s220 = sphi 0, %s204
      %s226 = sphi 0, %s228
      %s229 = sphi 0, %s226
      %s230 = sphi 0, %s229
      %s246 = sphi 0, %s230
      %s252 = sphi 0, %s254
      %s255 = sphi 0, %s252
      %s256 = sphi 0, %s255
      %s272 = sphi 0, %s256
      %s278 = sphi 0, %s280
      %s281 = sphi 0, %s278
      %s282 = sphi 0, %s281
      %s298 = sphi 0, %s282
      %s304 = sphi 0, %s306
      %s307 = sphi 0, %s304
      %s308 = sphi 0, %s307
      %s324 = sphi 0, %s308
      %s330 = sphi 0, %s332
      %s333 = sphi 0, %s330
      %s334 = sphi 0, %s333
      %s350 = sphi 0, %s334
      %s356 = sphi 0, %s358
      %s359 = sphi 0, %s356
      %s360 = sphi 0, %s359
      %s376 = sphi 0, %s360
      %s382 = sphi 0, %s384
      %s385 = sphi 0, %s382
      %s386 = sphi 0, %s385
      %s402 = sphi 0, %s386
      %s408 = sphi 0, %s410
      %s411 = sphi 0, %s408
      %s412 = sphi 0, %s411
      %s428 = sphi 0, %s412
      %s434 = sphi 0, %s436
      %s437 = sphi 0, %s434
      %s438 = sphi 0, %s437
      %s454 = sphi 0, %s438
      %s460 = sphi 0, %s462
      %s463 = sphi 0, %s460
      %s464 = sphi 0, %s463
      %s480 = sphi 0, %s464
    $region4: #{tpu_custom_call.1} parent=1 // loop_header_branch
      %35 = sbr.rel (%p33) target = $region8
    $region5: #{tpu_custom_call.1} parent=1 // loop_body
      %s37 = ssub.s32 %s32, 1
      %s38 = ssub.s32 %s32, 2
      %s45 = sadd.s32 1, %s40
      %p46 = scmp.ge.s32.totalorder %s45, 2
      %s47 = scalar_select %p46, 0, %s45
      %s48 = sadd.s32 1, %s39
      %s49 = scalar_select %p46, %s48, %s39
      %p50 = scmp.ge.s32.totalorder %s49, 2
      %s51 = scalar_select %p50, 0, %s49
      %s52 = ssub.s32 %s39, %s51
      %p53 = scmp.eq.s32.totalorder %s52, 0
      %s55 = sadd.s32 %s54, 1
      %s56 = scalar_select %p53, %s54, %s55
      %p59 = pneg %p53
      %p60 = scmp.eq.s32.totalorder %s32, 3
      %p61 = por %p59, %p60
      %p62 = scmp.ne.s32.totalorder %s54, %s57
      %p63 = scmp.eq.s32.totalorder %s32, 0
      %p64 = por %p62, %p63
      %p65 = scmp.ne.s32.totalorder %s54, %s57
      %p66 = scmp.eq.s32.totalorder %s37, 3
      %p67 = por %p65, %p66
      %p68 = scmp.ne.s32.totalorder %s57, %s58
      %p69 = scmp.eq.s32.totalorder %s37, 0
      %p70 = por %p68, %p69
      %p71 = scmp.ne.s32.totalorder %s57, %s58
      %p72 = scmp.eq.s32.totalorder %s38, 3
      %p73 = por %p71, %p72
      %p75 = scmp.ne.s32.totalorder %s58, %s74
      %p76 = scmp.eq.s32.totalorder %s38, 0
      %p77 = por %p75, %p76
      %s78 = ssub.s32 %s39, %s51
      %p79 = scmp.eq.s32.totalorder %s78, 0
      %s81 = sadd.s32 %s80, 1
      %s82 = scalar_select %p79, %s80, %s81
      %p85 = pneg %p79
      %p86 = scmp.eq.s32.totalorder %s32, 3
      %p87 = por %p85, %p86
      %p88 = scmp.ne.s32.totalorder %s80, %s83
      %p89 = scmp.eq.s32.totalorder %s32, 0
      %p90 = por %p88, %p89
      %p91 = scmp.ne.s32.totalorder %s80, %s83
      %p92 = scmp.eq.s32.totalorder %s37, 3
      %p93 = por %p91, %p92
      %p94 = scmp.ne.s32.totalorder %s83, %s84
      %p95 = scmp.eq.s32.totalorder %s37, 0
      %p96 = por %p94, %p95
      %p97 = scmp.ne.s32.totalorder %s83, %s84
      %p98 = scmp.eq.s32.totalorder %s38, 3
      %p99 = por %p97, %p98
      %p101 = scmp.ne.s32.totalorder %s84, %s100
      %p102 = scmp.eq.s32.totalorder %s38, 0
      %p103 = por %p101, %p102
      %s105 = sadd.s32 %s104, 1
      %p108 = scmp.eq.s32.totalorder %s32, 3
      %p109 = scmp.ne.s32.totalorder %s104, %s106
      %p110 = scmp.eq.s32.totalorder %s32, 0
      %p111 = por %p109, %p110
      %p112 = scmp.ne.s32.totalorder %s104, %s106
      %p113 = scmp.eq.s32.totalorder %s37, 3
      %p114 = por %p112, %p113
      %p115 = scmp.ne.s32.totalorder %s106, %s107
      %p116 = scmp.eq.s32.totalorder %s37, 0
      %p117 = por %p115, %p116
      %p118 = scmp.ne.s32.totalorder %s106, %s107
      %p119 = scmp.eq.s32.totalorder %s38, 3
      %p120 = por %p118, %p119
      %p122 = scmp.ne.s32.totalorder %s107, %s121
      %p123 = scmp.eq.s32.totalorder %s38, 0
      %p124 = por %p122, %p123
      %s126 = sadd.s32 %s125, 1
      %p129 = scmp.eq.s32.totalorder %s32, 3
      %p130 = scmp.ne.s32.totalorder %s125, %s127
      %p131 = scmp.eq.s32.totalorder %s32, 0
      %p132 = por %p130, %p131
      %p133 = scmp.ne.s32.totalorder %s125, %s127
      %p134 = scmp.eq.s32.totalorder %s37, 3
      %p135 = por %p133, %p134
      %p136 = scmp.ne.s32.totalorder %s127, %s128
      %p137 = scmp.eq.s32.totalorder %s37, 0
      %p138 = por %p136, %p137
      %p139 = scmp.ne.s32.totalorder %s127, %s128
      %p140 = scmp.eq.s32.totalorder %s38, 3
      %p141 = por %p139, %p140
      %p143 = scmp.ne.s32.totalorder %s128, %s142
      %p144 = scmp.eq.s32.totalorder %s38, 0
      %p145 = por %p143, %p144
      %s146 = ssub.s32 %s40, %s47
      %p147 = scmp.eq.s32.totalorder %s146, 0
      %s149 = sadd.s32 %s148, 1
      %s150 = scalar_select %p147, %s148, %s149
      %p153 = pneg %p147
      %p154 = scmp.eq.s32.totalorder %s32, 3
      %p155 = por %p153, %p154
      %p156 = scmp.ne.s32.totalorder %s148, %s151
      %p157 = scmp.eq.s32.totalorder %s32, 0
      %p158 = por %p156, %p157
      %p159 = scmp.ne.s32.totalorder %s148, %s151
      %p160 = scmp.eq.s32.totalorder %s37, 3
      %p161 = por %p159, %p160
      %p162 = scmp.ne.s32.totalorder %s151, %s152
      %p163 = scmp.eq.s32.totalorder %s37, 0
      %p164 = por %p162, %p163
      %p165 = scmp.ne.s32.totalorder %s151, %s152
      %p166 = scmp.eq.s32.totalorder %s38, 3
      %p167 = por %p165, %p166
      %p169 = scmp.ne.s32.totalorder %s152, %s168
      %p170 = scmp.eq.s32.totalorder %s38, 0
      %p171 = por %p169, %p170
      %s172 = ssub.s32 %s40, %s47
      %p173 = scmp.eq.s32.totalorder %s172, 0
      %s175 = sadd.s32 %s174, 1
      %s176 = scalar_select %p173, %s174, %s175
      %p179 = pneg %p173
      %p180 = scmp.eq.s32.totalorder %s32, 3
      %p181 = por %p179, %p180
      %p182 = scmp.ne.s32.totalorder %s174, %s177
      %p183 = scmp.eq.s32.totalorder %s32, 0
      %p184 = por %p182, %p183
      %p185 = scmp.ne.s32.totalorder %s174, %s177
      %p186 = scmp.eq.s32.totalorder %s37, 3
      %p187 = por %p185, %p186
      %p188 = scmp.ne.s32.totalorder %s177, %s178
      %p189 = scmp.eq.s32.totalorder %s37, 0
      %p190 = por %p188, %p189
      %p191 = scmp.ne.s32.totalorder %s177, %s178
      %p192 = scmp.eq.s32.totalorder %s38, 3
      %p193 = por %p191, %p192
      %p195 = scmp.ne.s32.totalorder %s178, %s194
      %p196 = scmp.eq.s32.totalorder %s38, 0
      %p197 = por %p195, %p196
      %s198 = ssub.s32 %s40, %s47
      %p199 = scmp.eq.s32.totalorder %s198, 0
      %s201 = sadd.s32 %s200, 1
      %s202 = scalar_select %p199, %s200, %s201
      %p205 = pneg %p199
      %p206 = scmp.eq.s32.totalorder %s32, 3
      %p207 = por %p205, %p206
      %p208 = scmp.ne.s32.totalorder %s200, %s203
      %p209 = scmp.eq.s32.totalorder %s32, 0
      %p210 = por %p208, %p209
      %p211 = scmp.ne.s32.totalorder %s200, %s203
      %p212 = scmp.eq.s32.totalorder %s37, 3
      %p213 = por %p211, %p212
      %p214 = scmp.ne.s32.totalorder %s203, %s204
      %p215 = scmp.eq.s32.totalorder %s37, 0
      %p216 = por %p214, %p215
      %p217 = scmp.ne.s32.totalorder %s203, %s204
      %p218 = scmp.eq.s32.totalorder %s38, 3
      %p219 = por %p217, %p218
      %p221 = scmp.ne.s32.totalorder %s204, %s220
      %p222 = scmp.eq.s32.totalorder %s38, 0
      %p223 = por %p221, %p222
      %s224 = ssub.s32 %s40, %s47
      %p225 = scmp.eq.s32.totalorder %s224, 0
      %s227 = sadd.s32 %s226, 1
      %s228 = scalar_select %p225, %s226, %s227
      %p231 = pneg %p225
      %p232 = scmp.eq.s32.totalorder %s32, 3
      %p233 = por %p231, %p232
      %p234 = scmp.ne.s32.totalorder %s226, %s229
      %p235 = scmp.eq.s32.totalorder %s32, 0
      %p236 = por %p234, %p235
      %p237 = scmp.ne.s32.totalorder %s226, %s229
      %p238 = scmp.eq.s32.totalorder %s37, 3
      %p239 = por %p237, %p238
      %p240 = scmp.ne.s32.totalorder %s229, %s230
      %p241 = scmp.eq.s32.totalorder %s37, 0
      %p242 = por %p240, %p241
      %p243 = scmp.ne.s32.totalorder %s229, %s230
      %p244 = scmp.eq.s32.totalorder %s38, 3
      %p245 = por %p243, %p244
      %p247 = scmp.ne.s32.totalorder %s230, %s246
      %p248 = scmp.eq.s32.totalorder %s38, 0
      %p249 = por %p247, %p248
      %s250 = ssub.s32 %s40, %s47
      %p251 = scmp.eq.s32.totalorder %s250, 0
      %s253 = sadd.s32 %s252, 1
      %s254 = scalar_select %p251, %s252, %s253
      %p257 = pneg %p251
      %p258 = scmp.eq.s32.totalorder %s32, 3
      %p259 = por %p257, %p258
      %p260 = scmp.ne.s32.totalorder %s252, %s255
      %p261 = scmp.eq.s32.totalorder %s32, 0
      %p262 = por %p260, %p261
      %p263 = scmp.ne.s32.totalorder %s252, %s255
      %p264 = scmp.eq.s32.totalorder %s37, 3
      %p265 = por %p263, %p264
      %p266 = scmp.ne.s32.totalorder %s255, %s256
      %p267 = scmp.eq.s32.totalorder %s37, 0
      %p268 = por %p266, %p267
      %p269 = scmp.ne.s32.totalorder %s255, %s256
      %p270 = scmp.eq.s32.totalorder %s38, 3
      %p271 = por %p269, %p270
      %p273 = scmp.ne.s32.totalorder %s256, %s272
      %p274 = scmp.eq.s32.totalorder %s38, 0
      %p275 = por %p273, %p274
      %s276 = ssub.s32 %s40, %s47
      %p277 = scmp.eq.s32.totalorder %s276, 0
      %s279 = sadd.s32 %s278, 1
      %s280 = scalar_select %p277, %s278, %s279
      %p283 = pneg %p277
      %p284 = scmp.eq.s32.totalorder %s32, 3
      %p285 = por %p283, %p284
      %p286 = scmp.ne.s32.totalorder %s278, %s281
      %p287 = scmp.eq.s32.totalorder %s32, 0
      %p288 = por %p286, %p287
      %p289 = scmp.ne.s32.totalorder %s278, %s281
      %p290 = scmp.eq.s32.totalorder %s37, 3
      %p291 = por %p289, %p290
      %p292 = scmp.ne.s32.totalorder %s281, %s282
      %p293 = scmp.eq.s32.totalorder %s37, 0
      %p294 = por %p292, %p293
      %p295 = scmp.ne.s32.totalorder %s281, %s282
      %p296 = scmp.eq.s32.totalorder %s38, 3
      %p297 = por %p295, %p296
      %p299 = scmp.ne.s32.totalorder %s282, %s298
      %p300 = scmp.eq.s32.totalorder %s38, 0
      %p301 = por %p299, %p300
      %s302 = ssub.s32 %s40, %s47
      %p303 = scmp.eq.s32.totalorder %s302, 0
      %s305 = sadd.s32 %s304, 1
      %s306 = scalar_select %p303, %s304, %s305
      %p309 = pneg %p303
      %p310 = scmp.eq.s32.totalorder %s32, 3
      %p311 = por %p309, %p310
      %p312 = scmp.ne.s32.totalorder %s304, %s307
      %p313 = scmp.eq.s32.totalorder %s32, 0
      %p314 = por %p312, %p313
      %p315 = scmp.ne.s32.totalorder %s304, %s307
      %p316 = scmp.eq.s32.totalorder %s37, 3
      %p317 = por %p315, %p316
      %p318 = scmp.ne.s32.totalorder %s307, %s308
      %p319 = scmp.eq.s32.totalorder %s37, 0
      %p320 = por %p318, %p319
      %p321 = scmp.ne.s32.totalorder %s307, %s308
      %p322 = scmp.eq.s32.totalorder %s38, 3
      %p323 = por %p321, %p322
      %p325 = scmp.ne.s32.totalorder %s308, %s324
      %p326 = scmp.eq.s32.totalorder %s38, 0
      %p327 = por %p325, %p326
      %s328 = ssub.s32 %s40, %s47
      %p329 = scmp.eq.s32.totalorder %s328, 0
      %s331 = sadd.s32 %s330, 1
      %s332 = scalar_select %p329, %s330, %s331
      %p335 = pneg %p329
      %p336 = scmp.eq.s32.totalorder %s32, 3
      %p337 = por %p335, %p336
      %p338 = scmp.ne.s32.totalorder %s330, %s333
      %p339 = scmp.eq.s32.totalorder %s32, 0
      %p340 = por %p338, %p339
      %p341 = scmp.ne.s32.totalorder %s330, %s333
      %p342 = scmp.eq.s32.totalorder %s37, 3
      %p343 = por %p341, %p342
      %p344 = scmp.ne.s32.totalorder %s333, %s334
      %p345 = scmp.eq.s32.totalorder %s37, 0
      %p346 = por %p344, %p345
      %p347 = scmp.ne.s32.totalorder %s333, %s334
      %p348 = scmp.eq.s32.totalorder %s38, 3
      %p349 = por %p347, %p348
      %p351 = scmp.ne.s32.totalorder %s334, %s350
      %p352 = scmp.eq.s32.totalorder %s38, 0
      %p353 = por %p351, %p352
      %s354 = ssub.s32 %s40, %s47
      %p355 = scmp.eq.s32.totalorder %s354, 0
      %s357 = sadd.s32 %s356, 1
      %s358 = scalar_select %p355, %s356, %s357
      %p361 = pneg %p355
      %p362 = scmp.eq.s32.totalorder %s32, 3
      %p363 = por %p361, %p362
      %p364 = scmp.ne.s32.totalorder %s356, %s359
      %p365 = scmp.eq.s32.totalorder %s32, 0
      %p366 = por %p364, %p365
      %p367 = scmp.ne.s32.totalorder %s356, %s359
      %p368 = scmp.eq.s32.totalorder %s37, 3
      %p369 = por %p367, %p368
      %p370 = scmp.ne.s32.totalorder %s359, %s360
      %p371 = scmp.eq.s32.totalorder %s37, 0
      %p372 = por %p370, %p371
      %p373 = scmp.ne.s32.totalorder %s359, %s360
      %p374 = scmp.eq.s32.totalorder %s38, 3
      %p375 = por %p373, %p374
      %p377 = scmp.ne.s32.totalorder %s360, %s376
      %p378 = scmp.eq.s32.totalorder %s38, 0
      %p379 = por %p377, %p378
      %s380 = ssub.s32 %s40, %s47
      %p381 = scmp.eq.s32.totalorder %s380, 0
      %s383 = sadd.s32 %s382, 1
      %s384 = scalar_select %p381, %s382, %s383
      %p387 = pneg %p381
      %p388 = scmp.eq.s32.totalorder %s32, 3
      %p389 = por %p387, %p388
      %p390 = scmp.ne.s32.totalorder %s382, %s385
      %p391 = scmp.eq.s32.totalorder %s32, 0
      %p392 = por %p390, %p391
      %p393 = scmp.ne.s32.totalorder %s382, %s385
      %p394 = scmp.eq.s32.totalorder %s37, 3
      %p395 = por %p393, %p394
      %p396 = scmp.ne.s32.totalorder %s385, %s386
      %p397 = scmp.eq.s32.totalorder %s37, 0
      %p398 = por %p396, %p397
      %p399 = scmp.ne.s32.totalorder %s385, %s386
      %p400 = scmp.eq.s32.totalorder %s38, 3
      %p401 = por %p399, %p400
      %p403 = scmp.ne.s32.totalorder %s386, %s402
      %p404 = scmp.eq.s32.totalorder %s38, 0
      %p405 = por %p403, %p404
      %s406 = ssub.s32 %s40, %s47
      %p407 = scmp.eq.s32.totalorder %s406, 0
      %s409 = sadd.s32 %s408, 1
      %s410 = scalar_select %p407, %s408, %s409
      %p413 = pneg %p407
      %p414 = scmp.eq.s32.totalorder %s32, 3
      %p415 = por %p413, %p414
      %p416 = scmp.ne.s32.totalorder %s408, %s411
      %p417 = scmp.eq.s32.totalorder %s32, 0
      %p418 = por %p416, %p417
      %p419 = scmp.ne.s32.totalorder %s408, %s411
      %p420 = scmp.eq.s32.totalorder %s37, 3
      %p421 = por %p419, %p420
      %p422 = scmp.ne.s32.totalorder %s411, %s412
      %p423 = scmp.eq.s32.totalorder %s37, 0
      %p424 = por %p422, %p423
      %p425 = scmp.ne.s32.totalorder %s411, %s412
      %p426 = scmp.eq.s32.totalorder %s38, 3
      %p427 = por %p425, %p426
      %p429 = scmp.ne.s32.totalorder %s412, %s428
      %p430 = scmp.eq.s32.totalorder %s38, 0
      %p431 = por %p429, %p430
      %s432 = ssub.s32 %s40, %s47
      %p433 = scmp.eq.s32.totalorder %s432, 0
      %s435 = sadd.s32 %s434, 1
      %s436 = scalar_select %p433, %s434, %s435
      %p439 = pneg %p433
      %p440 = scmp.eq.s32.totalorder %s32, 3
      %p441 = por %p439, %p440
      %p442 = scmp.ne.s32.totalorder %s434, %s437
      %p443 = scmp.eq.s32.totalorder %s32, 0
      %p444 = por %p442, %p443
      %p445 = scmp.ne.s32.totalorder %s434, %s437
      %p446 = scmp.eq.s32.totalorder %s37, 3
      %p447 = por %p445, %p446
      %p448 = scmp.ne.s32.totalorder %s437, %s438
      %p449 = scmp.eq.s32.totalorder %s37, 0
      %p450 = por %p448, %p449
      %p451 = scmp.ne.s32.totalorder %s437, %s438
      %p452 = scmp.eq.s32.totalorder %s38, 3
      %p453 = por %p451, %p452
      %p455 = scmp.ne.s32.totalorder %s438, %s454
      %p456 = scmp.eq.s32.totalorder %s38, 0
      %p457 = por %p455, %p456
      %s458 = ssub.s32 %s39, %s51
      %p459 = scmp.eq.s32.totalorder %s458, 0
      %s461 = sadd.s32 %s460, 1
      %s462 = scalar_select %p459, %s460, %s461
      %p465 = pneg %p459
      %p466 = scmp.eq.s32.totalorder %s32, 3
      %p467 = por %p465, %p466
      %p468 = scmp.ne.s32.totalorder %s460, %s463
      %p469 = scmp.eq.s32.totalorder %s32, 0
      %p470 = por %p468, %p469
      %p471 = scmp.ne.s32.totalorder %s460, %s463
      %p472 = scmp.eq.s32.totalorder %s37, 3
      %p473 = por %p471, %p472
      %p474 = scmp.ne.s32.totalorder %s463, %s464
      %p475 = scmp.eq.s32.totalorder %s37, 0
      %p476 = por %p474, %p475
      %p477 = scmp.ne.s32.totalorder %s463, %s464
      %p478 = scmp.eq.s32.totalorder %s38, 3
      %p479 = por %p477, %p478
      %p481 = scmp.ne.s32.totalorder %s464, %s480
      %p482 = scmp.eq.s32.totalorder %s38, 0
      %p483 = por %p481, %p482
      %p484 = scmp.le.s32.totalorder 1, %s32
      %p485 = scmp.lt.s32.totalorder %s32, 5
      %p486 = pnand %p484, %p485
      %p487 = pneg %p486
      // Predicated region
      $region9: #{tpu_custom_call.1} parent=5 // pred_check
        _
      $region10: #{tpu_custom_call.1} parent=5 // pred_check_branch
        %489 = sbr.rel (%p486) target = $region12
      $region11: #{tpu_custom_call.1} parent=5 // pred_region
        %s490 = ssub.s32 %s32, 1
        // Predicated region
        $region13: #{tpu_custom_call.1} parent=11 // pred_check
          %p491 = pneg %p70
        $region14: #{tpu_custom_call.1} parent=11 // pred_check_branch
          %493 = sbr.rel (%p491) target = $region16
        $region15: #{tpu_custom_call.1} parent=11 // pred_region
          %s494 = smul.u32 3, %s41
          %496 = vsyncadd [#allocation4], 0
          %s497 = smul.addr %s494, 4
          %s498 = scalar_lea.hbm %s0, %s497
          %s499 = sshll.u32 %s498, 4
          %s500 = int_to_ptr.hbm [resolvable:$true] %s499
          %s501 = sshll.u32 [#allocation3], 4
          %s502 = int_to_ptr.vmem [resolvable:$true] %s501
          %507 = dma.hbm_to_vmem [thread:$0]  %s500, 192, %s502, [#allocation4], 64, 64, 4
        $region16: #{tpu_custom_call.1} parent=11 // pred_fallthru
          _
        // Predicated region
        $region17: #{tpu_custom_call.1} parent=11 // pred_check
          %p508 = pneg %p117
        $region18: #{tpu_custom_call.1} parent=11 // pred_check_branch
          %510 = sbr.rel (%p508) target = $region20
        $region19: #{tpu_custom_call.1} parent=11 // pred_region
          _
        $region20: #{tpu_custom_call.1} parent=11 // pred_fallthru
          _
        // Predicated region
        $region21: #{tpu_custom_call.1} parent=11 // pred_check
          %p511 = pneg %p138
        $region22: #{tpu_custom_call.1} parent=11 // pred_check_branch
          %513 = sbr.rel (%p511) target = $region24
        $region23: #{tpu_custom_call.1} parent=11 // pred_region
          %515 = vsyncadd [#allocation7], 0
          %s517 = sshll.u32 %s3, 4
          %s518 = int_to_ptr.hbm [resolvable:$true] %s517
          %s519 = sshll.u32 [#allocation8], 4
          %s520 = int_to_ptr.vmem [resolvable:$true] %s519
          %522 = dma.hbm_to_vmem [thread:$0]  %s518, 16, %s520, [#allocation7]
        $region24: #{tpu_custom_call.1} parent=11 // pred_fallthru
          _
      $region12: #{tpu_custom_call.1} parent=5 // pred_fallthru
        _
      %p523 = scmp.lt.s32.totalorder %s32, 4
      // Predicated region
      $region25: #{tpu_custom_call.1} parent=5 // pred_check
        %p524 = pneg %p523
      $region26: #{tpu_custom_call.1} parent=5 // pred_check_branch
        %526 = sbr.rel (%p524) target = $region28
      $region27: #{tpu_custom_call.1} parent=5 // pred_region
        // Predicated region
        $region29: #{tpu_custom_call.1} parent=27 // pred_check
          %p527 = pneg %p90
        $region30: #{tpu_custom_call.1} parent=27 // pred_check_branch
          %529 = sbr.rel (%p527) target = $region32
        $region31: #{tpu_custom_call.1} parent=27 // pred_region
          %s530 = sand.u32 %s32, 1
          %s531 = scalar_lea.sflag [#allocation7], %s530
          %s532 = sand.u32 %s80, 1
          %s533 = smul.addr %s532, 3
          %s534 = scalar_lea.vmem [#allocation6], %s533
          %s535 = smul.u32 3, %s39
          %537 = vsyncadd %s531, 0
          %s538 = scalar_lea.hbm %s1, %s535
          %s539 = sshll.u32 %s538, 4
          %s540 = int_to_ptr.hbm [resolvable:$true] %s539
          %s541 = sshll.u32 %s534, 4
          %s542 = int_to_ptr.vmem [resolvable:$true] %s541
          %547 = dma.hbm_to_vmem [thread:$0]  %s540, 48, %s542, %s531, 16, 16, 1
        $region32: #{tpu_custom_call.1} parent=27 // pred_fallthru
          _
        // Predicated region
        $region33: #{tpu_custom_call.1} parent=27 // pred_check
          %p548 = pneg %p158
        $region34: #{tpu_custom_call.1} parent=27 // pred_check_branch
          %550 = sbr.rel (%p548) target = $region36
        $region35: #{tpu_custom_call.1} parent=27 // pred_region
          %p551 = scmp.lt.s32.totalorder %s40, 1
          %s552 = scalar_select %p551, %s40, 1
          %s553 = smul.addr %s552, 4
          %s554 = smul.addr %s553, 4
          %s555 = scalar_lea.vmem %s4, %s554
        $region36: #{tpu_custom_call.1} parent=27 // pred_fallthru
          _
        // Predicated region
        $region37: #{tpu_custom_call.1} parent=27 // pred_check
          %p556 = pneg %p184
        $region38: #{tpu_custom_call.1} parent=27 // pred_check_branch
          %558 = sbr.rel (%p556) target = $region40
        $region39: #{tpu_custom_call.1} parent=27 // pred_region
          %p559 = scmp.lt.s32.totalorder %s40, 1
          %s560 = scalar_select %p559, %s40, 1
          %s561 = scalar_lea.vmem %s5, %s560
        $region40: #{tpu_custom_call.1} parent=27 // pred_fallthru
          _
        // Predicated region
        $region41: #{tpu_custom_call.1} parent=27 // pred_check
          %p562 = pneg %p210
        $region42: #{tpu_custom_call.1} parent=27 // pred_check_branch
          %564 = sbr.rel (%p562) target = $region44
        $region43: #{tpu_custom_call.1} parent=27 // pred_region
          %p565 = scmp.lt.s32.totalorder %s40, 1
          %s566 = scalar_select %p565, %s40, 1
          %s567 = smul.addr %s566, 4
          %s568 = smul.addr %s567, 4
          %s569 = scalar_lea.vmem %s6, %s568
        $region44: #{tpu_custom_call.1} parent=27 // pred_fallthru
          _
        // Predicated region
        $region45: #{tpu_custom_call.1} parent=27 // pred_check
          %p570 = pneg %p236
        $region46: #{tpu_custom_call.1} parent=27 // pred_check_branch
          %572 = sbr.rel (%p570) target = $region48
        $region47: #{tpu_custom_call.1} parent=27 // pred_region
          %p573 = scmp.lt.s32.totalorder %s40, 1
          %s574 = scalar_select %p573, %s40, 1
          %s575 = scalar_lea.vmem %s7, %s574
        $region48: #{tpu_custom_call.1} parent=27 // pred_fallthru
          _
        // Predicated region
        $region49: #{tpu_custom_call.1} parent=27 // pred_check
          %p576 = pneg %p262
        $region50: #{tpu_custom_call.1} parent=27 // pred_check_branch
          %578 = sbr.rel (%p576) target = $region52
        $region51: #{tpu_custom_call.1} parent=27 // pred_region
          %p579 = scmp.lt.s32.totalorder %s40, 1
          %s580 = scalar_select %p579, %s40, 1
          %s581 = scalar_lea.vmem %s8, %s580
        $region52: #{tpu_custom_call.1} parent=27 // pred_fallthru
          _
        // Predicated region
        $region53: #{tpu_custom_call.1} parent=27 // pred_check
          %p582 = pneg %p288
        $region54: #{tpu_custom_call.1} parent=27 // pred_check_branch
          %584 = sbr.rel (%p582) target = $region56
        $region55: #{tpu_custom_call.1} parent=27 // pred_region
          %s585 = sand.u32 %s32, 1
          %s586 = scalar_lea.sflag [#allocation10], %s585
          %s587 = sand.u32 %s278, 1
          %s588 = scalar_lea.vmem [#allocation9], %s587
          %590 = vsyncadd %s586, 0
          %s591 = scalar_lea.hbm %s9, %s40
          %s593 = sshll.u32 %s591, 4
          %s594 = int_to_ptr.hbm [resolvable:$true] %s593
          %s595 = sshll.u32 %s588, 4
          %s596 = int_to_ptr.vmem [resolvable:$true] %s595
          %598 = dma.hbm_to_vmem [thread:$0]  %s594, 16, %s596, %s586
        $region56: #{tpu_custom_call.1} parent=27 // pred_fallthru
          _
        // Predicated region
        $region57: #{tpu_custom_call.1} parent=27 // pred_check
          %p599 = pneg %p314
        $region58: #{tpu_custom_call.1} parent=27 // pred_check_branch
          %601 = sbr.rel (%p599) target = $region60
        $region59: #{tpu_custom_call.1} parent=27 // pred_region
          %p602 = scmp.lt.s32.totalorder %s40, 1
          %s603 = scalar_select %p602, %s40, 1
          %s604 = smul.addr %s603, 4
          %s605 = smul.addr %s604, 4
          %s606 = scalar_lea.vmem %s10, %s605
        $region60: #{tpu_custom_call.1} parent=27 // pred_fallthru
          _
        // Predicated region
        $region61: #{tpu_custom_call.1} parent=27 // pred_check
          %p607 = pneg %p340
        $region62: #{tpu_custom_call.1} parent=27 // pred_check_branch
          %609 = sbr.rel (%p607) target = $region64
        $region63: #{tpu_custom_call.1} parent=27 // pred_region
          %p610 = scmp.lt.s32.totalorder %s40, 1
          %s611 = scalar_select %p610, %s40, 1
          %s612 = scalar_lea.vmem %s11, %s611
        $region64: #{tpu_custom_call.1} parent=27 // pred_fallthru
          _
        // Predicated region
        $region65: #{tpu_custom_call.1} parent=27 // pred_check
          %p613 = pneg %p366
        $region66: #{tpu_custom_call.1} parent=27 // pred_check_branch
          %615 = sbr.rel (%p613) target = $region68
        $region67: #{tpu_custom_call.1} parent=27 // pred_region
          %p616 = scmp.lt.s32.totalorder %s40, 1
          %s617 = scalar_select %p616, %s40, 1
          %s618 = smul.addr %s617, 8
          %s619 = smul.addr %s618, 4
          %s620 = scalar_lea.vmem %s12, %s619
        $region68: #{tpu_custom_call.1} parent=27 // pred_fallthru
          _
        // Predicated region
        $region69: #{tpu_custom_call.1} parent=27 // pred_check
          %p621 = pneg %p392
        $region70: #{tpu_custom_call.1} parent=27 // pred_check_branch
          %623 = sbr.rel (%p621) target = $region72
        $region71: #{tpu_custom_call.1} parent=27 // pred_region
          %p624 = scmp.lt.s32.totalorder %s40, 1
          %s625 = scalar_select %p624, %s40, 1
          %s626 = scalar_lea.vmem %s13, %s625
        $region72: #{tpu_custom_call.1} parent=27 // pred_fallthru
          _
        // Predicated region
        $region73: #{tpu_custom_call.1} parent=27 // pred_check
          %p627 = pneg %p418
        $region74: #{tpu_custom_call.1} parent=27 // pred_check_branch
          %629 = sbr.rel (%p627) target = $region76
        $region75: #{tpu_custom_call.1} parent=27 // pred_region
          %p630 = scmp.lt.s32.totalorder %s40, 1
          %s631 = scalar_select %p630, %s40, 1
          %s632 = scalar_lea.vmem %s14, %s631
        $region76: #{tpu_custom_call.1} parent=27 // pred_fallthru
          _
        // Predicated region
        $region77: #{tpu_custom_call.1} parent=27 // pred_check
          %p633 = pneg %p444
        $region78: #{tpu_custom_call.1} parent=27 // pred_check_branch
          %635 = sbr.rel (%p633) target = $region80
        $region79: #{tpu_custom_call.1} parent=27 // pred_region
          %s636 = sand.u32 %s32, 1
          %s637 = scalar_lea.sflag [#allocation10], %s636
          %s638 = sand.u32 %s434, 1
          %s639 = scalar_lea.vmem [#allocation11], %s638
          %641 = vsyncadd %s637, 0
          %s642 = scalar_lea.hbm %s15, %s40
          %s644 = sshll.u32 %s642, 4
          %s645 = int_to_ptr.hbm [resolvable:$true] %s644
          %s646 = sshll.u32 %s639, 4
          %s647 = int_to_ptr.vmem [resolvable:$true] %s646
          %649 = dma.hbm_to_vmem [thread:$0]  %s645, 16, %s647, %s637
        $region80: #{tpu_custom_call.1} parent=27 // pred_fallthru
          _
      $region28: #{tpu_custom_call.1} parent=5 // pred_fallthru
        _
      %p650 = scmp.le.s32.totalorder 1, %s32
      %p651 = scmp.lt.s32.totalorder %s32, 5
      %p652 = pnand %p650, %p651
      %p653 = pneg %p652
      // Predicated region
      $region81: #{tpu_custom_call.1} parent=5 // pred_check
        _
      $region82: #{tpu_custom_call.1} parent=5 // pred_check_branch
        %655 = sbr.rel (%p652) target = $region84
      $region83: #{tpu_custom_call.1} parent=5 // pred_region
        %s656 = ssub.s32 %s32, 1
        // Predicated region
        $region85: #{tpu_custom_call.1} parent=83 // pred_check
          %p657 = pneg %p70
        $region86: #{tpu_custom_call.1} parent=83 // pred_check_branch
          %659 = sbr.rel (%p657) target = $region88
        $region87: #{tpu_custom_call.1} parent=83 // pred_region
          %661 = dma.done [#allocation4], 192
        $region88: #{tpu_custom_call.1} parent=83 // pred_fallthru
          _
        %s662 = sand.u32 %s37, 1
        %s663 = scalar_lea.sflag [#allocation7], %s662
        %s664 = sand.u32 %s83, 1
        %s665 = smul.addr %s664, 3
        %s666 = scalar_lea.vmem [#allocation6], %s665
        // Predicated region
        $region89: #{tpu_custom_call.1} parent=83 // pred_check
          %p667 = pneg %p96
        $region90: #{tpu_custom_call.1} parent=83 // pred_check_branch
          %669 = sbr.rel (%p667) target = $region92
        $region91: #{tpu_custom_call.1} parent=83 // pred_region
          %671 = dma.done %s663, 48
        $region92: #{tpu_custom_call.1} parent=83 // pred_fallthru
          _
        // Predicated region
        $region93: #{tpu_custom_call.1} parent=83 // pred_check
          %p672 = pneg %p138
        $region94: #{tpu_custom_call.1} parent=83 // pred_check_branch
          %674 = sbr.rel (%p672) target = $region96
        $region95: #{tpu_custom_call.1} parent=83 // pred_region
          %676 = dma.done [#allocation7], 16
        $region96: #{tpu_custom_call.1} parent=83 // pred_fallthru
          _
        %s677 = sand.u32 %s37, 1
        %s678 = scalar_lea.sflag [#allocation10], %s677
        %s679 = sand.u32 %s281, 1
        %s680 = scalar_lea.vmem [#allocation9], %s679
        // Predicated region
        $region97: #{tpu_custom_call.1} parent=83 // pred_check
          %p681 = pneg %p294
        $region98: #{tpu_custom_call.1} parent=83 // pred_check_branch
          %683 = sbr.rel (%p681) target = $region100
        $region99: #{tpu_custom_call.1} parent=83 // pred_region
          %685 = dma.done %s678, 16
        $region100: #{tpu_custom_call.1} parent=83 // pred_fallthru
          _
        %s686 = sand.u32 %s37, 1
        %s687 = scalar_lea.sflag [#allocation10], %s686
        %s688 = sand.u32 %s437, 1
        %s689 = scalar_lea.vmem [#allocation11], %s688
        // Predicated region
        $region101: #{tpu_custom_call.1} parent=83 // pred_check
          %p690 = pneg %p450
        $region102: #{tpu_custom_call.1} parent=83 // pred_check_branch
          %692 = sbr.rel (%p690) target = $region104
        $region103: #{tpu_custom_call.1} parent=83 // pred_region
          %694 = dma.done %s687, 16
        $region104: #{tpu_custom_call.1} parent=83 // pred_fallthru
          _
        %p695 = pneg %p70
        %p696 = pneg %p67
        %s697 = sand.u32 %s37, 1
        %s698 = scalar_lea.sflag [#allocation7], %s697
        %s699 = sand.u32 %s83, 1
        %s700 = smul.addr %s699, 3
        %s701 = scalar_lea.vmem [#allocation6], %s700
        %p702 = pneg %p96
        %p703 = pneg %p93
        %p704 = pneg %p117
        %p705 = pneg %p114
        %p706 = pneg %p138
        %p707 = pneg %p135
        %p708 = scmp.lt.s32.totalorder %s42, 1
        %s709 = scalar_select %p708, %s42, 1
        %s710 = smul.addr %s709, 4
        %s711 = smul.addr %s710, 4
        %s712 = scalar_lea.vmem %s4, %s711
        %p713 = pneg %p164
        %p714 = pneg %p161
        %p715 = scmp.lt.s32.totalorder %s42, 1
        %s716 = scalar_select %p715, %s42, 1
        %s717 = scalar_lea.vmem %s5, %s716
        %p718 = pneg %p190
        %p719 = pneg %p187
        %p720 = scmp.lt.s32.totalorder %s42, 1
        %s721 = scalar_select %p720, %s42, 1
        %s722 = smul.addr %s721, 4
        %s723 = smul.addr %s722, 4
        %s724 = scalar_lea.vmem %s6, %s723
        %p725 = pneg %p216
        %p726 = pneg %p213
        %p727 = scmp.lt.s32.totalorder %s42, 1
        %s728 = scalar_select %p727, %s42, 1
        %s729 = scalar_lea.vmem %s7, %s728
        %p730 = pneg %p242
        %p731 = pneg %p239
        %p732 = scmp.lt.s32.totalorder %s42, 1
        %s733 = scalar_select %p732, %s42, 1
        %s734 = scalar_lea.vmem %s8, %s733
        %p735 = pneg %p268
        %p736 = pneg %p265
        %s737 = sand.u32 %s37, 1
        %s738 = scalar_lea.sflag [#allocation10], %s737
        %s739 = sand.u32 %s281, 1
        %s740 = scalar_lea.vmem [#allocation9], %s739
        %p741 = pneg %p294
        %p742 = pneg %p291
        %p743 = scmp.lt.s32.totalorder %s42, 1
        %s744 = scalar_select %p743, %s42, 1
        %s745 = smul.addr %s744, 4
        %s746 = smul.addr %s745, 4
        %s747 = scalar_lea.vmem %s10, %s746
        %p748 = pneg %p320
        %p749 = pneg %p317
        %p750 = scmp.lt.s32.totalorder %s42, 1
        %s751 = scalar_select %p750, %s42, 1
        %s752 = scalar_lea.vmem %s11, %s751
        %p753 = pneg %p346
        %p754 = pneg %p343
        %p755 = scmp.lt.s32.totalorder %s42, 1
        %s756 = scalar_select %p755, %s42, 1
        %s757 = smul.addr %s756, 8
        %s758 = smul.addr %s757, 4
        %s759 = scalar_lea.vmem %s12, %s758
        %p760 = pneg %p372
        %p761 = pneg %p369
        %p762 = scmp.lt.s32.totalorder %s42, 1
        %s763 = scalar_select %p762, %s42, 1
        %s764 = scalar_lea.vmem %s13, %s763
        %p765 = pneg %p398
        %p766 = pneg %p395
        %p767 = scmp.lt.s32.totalorder %s42, 1
        %s768 = scalar_select %p767, %s42, 1
        %s769 = scalar_lea.vmem %s14, %s768
        %p770 = pneg %p424
        %p771 = pneg %p421
        %s772 = sand.u32 %s37, 1
        %s773 = scalar_lea.sflag [#allocation10], %s772
        %s774 = sand.u32 %s437, 1
        %s775 = scalar_lea.vmem [#allocation11], %s774
        %p776 = pneg %p450
        %p777 = pneg %p447
        %p778 = pneg %p476
        %p779 = pneg %p473
        %s780 = sand.u32 %s463, 1
        %s781 = scalar_lea.sflag [#allocation5], %s780
        %s782 = sand.u32 %s463, 1
        %s783 = smul.addr %s782, 3
        %s784 = scalar_lea.vmem [#allocation12], %s783
        %s785 = smul.u32 3, %s41
        %s786 = smul.u32 3, %s41
        %p787 = scmp.lt.s32.totalorder %s42, 1
        %s788 = scalar_select %p787, %s42, 1
        %s789 = smul.addr %s788, 4
        %s790 = smul.addr %s789, 4
        %s791 = scalar_lea.vmem %s4, %s790
        %p792 = scmp.lt.s32.totalorder %s42, 1
        %s793 = scalar_select %p792, %s42, 1
        %s794 = scalar_lea.vmem %s5, %s793
        %p795 = scmp.lt.s32.totalorder %s42, 1
        %s796 = scalar_select %p795, %s42, 1
        %s797 = smul.addr %s796, 4
        %s798 = smul.addr %s797, 4
        %s799 = scalar_lea.vmem %s6, %s798
        %p800 = scmp.lt.s32.totalorder %s42, 1
        %s801 = scalar_select %p800, %s42, 1
        %s802 = scalar_lea.vmem %s7, %s801
        %p803 = scmp.lt.s32.totalorder %s42, 1
        %s804 = scalar_select %p803, %s42, 1
        %s805 = scalar_lea.vmem %s8, %s804
        %p806 = scmp.lt.s32.totalorder %s42, 1
        %s807 = scalar_select %p806, %s42, 1
        %s808 = smul.addr %s807, 4
        %s809 = smul.addr %s808, 4
        %s810 = scalar_lea.vmem %s10, %s809
        %p811 = scmp.lt.s32.totalorder %s42, 1
        %s812 = scalar_select %p811, %s42, 1
        %s813 = scalar_lea.vmem %s11, %s812
        %p814 = scmp.lt.s32.totalorder %s42, 1
        %s815 = scalar_select %p814, %s42, 1
        %s816 = smul.addr %s815, 8
        %s817 = smul.addr %s816, 4
        %s818 = scalar_lea.vmem %s12, %s817
        %p819 = scmp.lt.s32.totalorder %s42, 1
        %s820 = scalar_select %p819, %s42, 1
        %s821 = scalar_lea.vmem %s13, %s820
        %p822 = scmp.lt.s32.totalorder %s42, 1
        %s823 = scalar_select %p822, %s42, 1
        %s824 = scalar_lea.vmem %s14, %s823
        %s825 = smul.u32 3, %s41
        %p827 = scmp.eq.s32.totalorder %s42, 0
        // Predicated region
        $region105: #{tpu_custom_call.1} parent=83 // pred_check
          %p828 = pneg %p827
        $region106: #{tpu_custom_call.1} parent=83 // pred_check_branch
          %830 = sbr.rel (%p828) target = $region108
        $region107: #{tpu_custom_call.1} parent=83 // pred_region
          %v831 = vld [vmem:[#allocation3] sm:$0xf]
          %v832 = vld [vmem:[#allocation3 + $0x4] sm:$0xf]
          %v833 = vld [vmem:[#allocation3 + $0x8] sm:$0xf]
          %v834 = vunpack.c.l.bf16 %v831
          %v835 = vunpack.c.l.bf16 %v832
          %v836 = vunpack.c.l.bf16 %v833
          %v837 = vld [vmem:[%s2] sm:$0x1]
          %v838 = vld [vmem:[#allocation8] sm:$0x1]
          %vm839 = vcmask 261120
          %v840 = vsel %vm839, %v834, 0.0
          %841 = vadd.xlane.f32.xlu0 %v840
          %v842 = vpop.xlane.xlu0 %841
          %v843 = vsel %vm839, %v835, 0.0
          %844 = vadd.xlane.f32.xlu0 %v843
          %v845 = vpop.xlane.xlu0 %844
          %v846 = vsel %vm839, %v836, 0.0
          %847 = vadd.xlane.f32.xlu0 %v846
          %v848 = vpop.xlane.xlu0 %847
          %v849 = vrcp.pop 32.0
          %v850 = vmul.f32 32.0, %v849
          %v851 = vsub.f32 1.0, %v850
          %v852 = vmul.f32 %v849, %v851
          %v853 = vadd.f32 %v849, %v852
          %vm854 = vweird.f32 %v849
          %v855 = vsel %vm854, %v849, %v853
          %v856 = vmul.f32 %v842, %v855
          %v857 = vmul.f32 %v845, %v855
          %v858 = vmul.f32 %v848, %v855
          %v859 = vsub.f32 %v834, %v856
          %v860 = vsub.f32 %v835, %v857
          %v861 = vsub.f32 %v836, %v858
          %v862 = vmul.f32 %v859, %v859
          %v863 = vmul.f32 %v860, %v860
          %v864 = vmul.f32 %v861, %v861
          %v865 = vsel %vm839, %v862, 0.0
          %866 = vadd.xlane.f32.xlu0 %v865
          %v867 = vpop.xlane.xlu0 %866
          %v868 = vsel %vm839, %v863, 0.0
          %869 = vadd.xlane.f32.xlu0 %v868
          %v870 = vpop.xlane.xlu0 %869
          %v871 = vsel %vm839, %v864, 0.0
          %872 = vadd.xlane.f32.xlu0 %v871
          %v873 = vpop.xlane.xlu0 %872
          %v874 = vmul.f32 %v867, %v855
          %v875 = vmul.f32 %v870, %v855
          %v876 = vmul.f32 %v873, %v855
          %v877 = vadd.f32 %v874, 1e-06
          %v878 = vadd.f32 %v875, 1e-06
          %v879 = vadd.f32 %v876, 1e-06
          %v880 = vrsqrt.pop %v877
          %v881 = vmul.f32 %v880, %v877
          %v882 = vmul.f32 %v881, %v880
          %v883 = vmul.f32 0.5, %v882
          %v884 = vsub.f32 1.5, %v883
          %v885 = vmul.f32 %v880, %v884
          %vm886 = vweird.f32 %v877
          %vm887 = vweird.f32 %v880
          %vm888 = vmor %vm886, %vm887
          %v889 = vsel %vm888, %v880, %v885
          %v890 = vrsqrt.pop %v878
          %v891 = vmul.f32 %v890, %v878
          %v892 = vmul.f32 %v891, %v890
          %v893 = vmul.f32 0.5, %v892
          %v894 = vsub.f32 1.5, %v893
          %v895 = vmul.f32 %v890, %v894
          %vm896 = vweird.f32 %v878
          %vm897 = vweird.f32 %v890
          %vm898 = vmor %vm896, %vm897
          %v899 = vsel %vm898, %v890, %v895
          %v900 = vrsqrt.pop %v879
          %v901 = vmul.f32 %v900, %v879
          %v902 = vmul.f32 %v901, %v900
          %v903 = vmul.f32 0.5, %v902
          %v904 = vsub.f32 1.5, %v903
          %v905 = vmul.f32 %v900, %v904
          %vm906 = vweird.f32 %v879
          %vm907 = vweird.f32 %v900
          %vm908 = vmor %vm906, %vm907
          %v909 = vsel %vm908, %v900, %v905
          %v910 = vmul.f32 %v859, %v889
          %v911 = vmul.f32 %v860, %v899
          %v912 = vmul.f32 %v861, %v909
          %v914 = vperm.slane %v837, 0
          %v916 = vmul.f32 %v910, %v914
          %v917 = vmul.f32 %v911, %v914
          %v918 = vmul.f32 %v912, %v914
          %v920 = vperm.slane %v838, 0
          %v922 = vadd.f32 %v916, %v920
          %v923 = vadd.f32 %v917, %v920
          %v924 = vadd.f32 %v918, %v920
          %925 = vst.msk [vmem:[#allocation2] sm:$0xff] %vm839, %v922
          %926 = vst.msk [vmem:[#allocation2 + $0x8] sm:$0xff] %vm839, %v923
          %927 = vst.msk [vmem:[#allocation2 + $0x10] sm:$0xff] %vm839, %v924
        $region108: #{tpu_custom_call.1} parent=83 // pred_fallthru
          _
        %v928 = vld [vmem:[#allocation2] sm:$0xff]
        %v929 = vld [vmem:[#allocation2 + $0x8] sm:$0xff]
        %v930 = vld [vmem:[#allocation2 + $0x10] sm:$0xff]
        %v931 = vpack.c.bf16 %v929, %v928
        %v932 = vpack.c.bf16 %v930, %v930
        %v933 = vld [vmem:[%s791] sm:$0xf]
        %v934 = vld [vmem:[%s791 + $0x4] sm:$0xf]
        %v935 = vld [vmem:[%s791 + $0x8] sm:$0xf]
        %v936 = vld [vmem:[%s791 + $0xc] sm:$0xf]
        %v937 = vld [vmem:[%s794] sm:$0x1]
        %v939 = vperm.slane %v937, 0
        %v945 = vunpack.c.l.b16 %v933
        %v946 = vunpack.c.l.b16 %v934
        %v947 = vunpack.c.l.b16 %v935
        %v948 = vunpack.c.l.b16 %v936
        %v949 = vpack.c.b16 %v946, %v945
        %v950 = vpack.c.b16 %v948, %v947
        %vm953 = vcmask 261120
        %v955 = vsel %vm953, %v931, 0
        %v958 = vsel %vm953, %v932, 0
        %960 = vmatpush.bf16.msra.mxu0 0
        %961 = vmatpush.bf16.msra.mxu0 0
        %962 = vmatpush.bf16.msra.mxu0 0
        %963 = vmatpush.bf16.msra.mxu0 0
        %964 = vmatpush.bf16.msra.mxu0 0
        %965 = vmatpush.bf16.msra.mxu0 0
        %966 = vmatpush.bf16.msra.mxu0 %v950
        %967 = vmatpush.bf16.msra.mxu0 %v949
        %968 = vmatmul.bf16.gmra.mxu0 %v955
        %v969 = vpop.f32.mrf.mxu0
        %v970 = vadd.f32 %v939, %v969
        %v971 = vpop.f32.mrf.mxu0
        %v972 = vadd.f32 %v939, %v971
        %973 = vmatmul.bf16.gmra.mxu0 %v958
        %v974 = vpop.f32.mrf.mxu0
        %v975 = vadd.f32 %v939, %v974
        %v976 = vpop.f32.mrf.mxu0
        %977 = vdwg.mxu0
        %v978 = vpack.c.bf16 %v970, %v970
        %v979 = vpack.c.bf16 %v972, %v972
        %v980 = vpack.c.bf16 %v975, %v975
        %v981 = vld [vmem:[%s666] sm:$0x1]
        %v982 = vld [vmem:[%s666 + $0x1] sm:$0x1]
        %v983 = vld [vmem:[%s666 + $0x2] sm:$0x1]
        %v987 = vperm.slane %v981, 0
        %v988 = vperm.slane %v982, 0
        %v989 = vperm.slane %v983, 0
        %v994 = vunpack.c.l.b16 %v978
        %v995 = vpack.c.b16 %v994, %v994
        %996 = vrot.lane.b32.xlu0 %v995, 96
        %v997 = vpop.permute.xlu0 %996
        %vm998 = vcmask 64512
        %v1000 = vsel %vm998, %v978, 0
        %v1003 = vsel %vm998, %v997, 0
        %1005 = vmatpush.bf16.xpose.msra.mxu0 0
        %1006 = vmatpush.bf16.xpose.msra.mxu0 0
        %1007 = vmatpush.bf16.xpose.msra.mxu0 0
        %1008 = vmatpush.bf16.xpose.msra.mxu0 0
        %1009 = vmatpush.bf16.xpose.msra.mxu0 0
        %1010 = vmatpush.bf16.xpose.msra.mxu0 0
        %1011 = vmatpush.bf16.xpose.msra.mxu0 0
        %1012 = vmatpush.bf16.xpose.msra.mxu0 %v1003
        %1013 = vmatmul.bf16.gmra.mxu0 %v1000
        %v1014 = vpop.f32.mrf.mxu0
        %v1015 = vadd.f32 %v987, %v1014
        %v1016 = vpop.f32.mrf.mxu0
        %1017 = vdwg.mxu0
        %v1019 = vunpack.c.l.b16 %v979
        %v1020 = vpack.c.b16 %v1019, %v1019
        %1021 = vrot.lane.b32.xlu0 %v1020, 96
        %v1022 = vpop.permute.xlu0 %1021
        %v1024 = vsel %vm998, %v979, 0
        %v1027 = vsel %vm998, %v1022, 0
        %1029 = vmatpush.bf16.xpose.msra.mxu0 0
        %1030 = vmatpush.bf16.xpose.msra.mxu0 0
        %1031 = vmatpush.bf16.xpose.msra.mxu0 0
        %1032 = vmatpush.bf16.xpose.msra.mxu0 0
        %1033 = vmatpush.bf16.xpose.msra.mxu0 0
        %1034 = vmatpush.bf16.xpose.msra.mxu0 0
        %1035 = vmatpush.bf16.xpose.msra.mxu0 0
        %1036 = vmatpush.bf16.xpose.msra.mxu0 %v1027
        %1037 = vmatmul.bf16.gmra.mxu0 %v1024
        %v1038 = vpop.f32.mrf.mxu0
        %v1039 = vadd.f32 %v988, %v1038
        %v1040 = vpop.f32.mrf.mxu0
        %1041 = vdwg.mxu0
        %v1043 = vunpack.c.l.b16 %v980
        %v1044 = vpack.c.b16 %v1043, %v1043
        %1045 = vrot.lane.b32.xlu0 %v1044, 96
        %v1046 = vpop.permute.xlu0 %1045
        %v1048 = vsel %vm998, %v980, 0
        %v1051 = vsel %vm998, %v1046, 0
        %1053 = vmatpush.bf16.xpose.msra.mxu0 0
        %1054 = vmatpush.bf16.xpose.msra.mxu0 0
        %1055 = vmatpush.bf16.xpose.msra.mxu0 0
        %1056 = vmatpush.bf16.xpose.msra.mxu0 0
        %1057 = vmatpush.bf16.xpose.msra.mxu0 0
        %1058 = vmatpush.bf16.xpose.msra.mxu0 0
        %1059 = vmatpush.bf16.xpose.msra.mxu0 0
        %1060 = vmatpush.bf16.xpose.msra.mxu0 %v1051
        %1061 = vmatmul.bf16.gmra.mxu0 %v1048
        %v1062 = vpop.f32.mrf.mxu0
        %v1063 = vadd.f32 %v989, %v1062
        %v1064 = vpop.f32.mrf.mxu0
        %1065 = vdwg.mxu0
        %v1066 = vsel %vm998, %v1015, -inf
        %1067 = vmax.xlane.f32.xlu0 %v1066
        %v1068 = vpop.xlane.xlu0 %1067
        %v1069 = vsel %vm998, %v1039, -inf
        %1070 = vmax.xlane.f32.xlu0 %v1069
        %v1071 = vpop.xlane.xlu0 %1070
        %v1072 = vsel %vm998, %v1063, -inf
        %1073 = vmax.xlane.f32.xlu0 %v1072
        %v1074 = vpop.xlane.xlu0 %1073
        %v1075 = vsub.f32 %v1015, %v1068
        %v1076 = vsub.f32 %v1039, %v1071
        %v1077 = vsub.f32 %v1063, %v1074
        %v1078 = vmul.f32 %v1075, 1.442695
        %v1079 = vpow.pop %v1078
        %v1080 = vmul.f32 %v1076, 1.442695
        %v1081 = vpow.pop %v1080
        %v1082 = vmul.f32 %v1077, 1.442695
        %v1083 = vpow.pop %v1082
        %v1084 = vsel %vm998, %v1079, 0.0
        %1085 = vadd.xlane.f32.xlu0 %v1084
        %v1086 = vpop.xlane.xlu0 %1085
        %v1087 = vsel %vm998, %v1081, 0.0
        %1088 = vadd.xlane.f32.xlu0 %v1087
        %v1089 = vpop.xlane.xlu0 %1088
        %v1090 = vsel %vm998, %v1083, 0.0
        %1091 = vadd.xlane.f32.xlu0 %v1090
        %v1092 = vpop.xlane.xlu0 %1091
        %v1093 = vrcp.pop %v1086
        %v1094 = vrcp.pop %v1089
        %v1095 = vrcp.pop %v1092
        %v1096 = vmul.f32 %v1079, %v1093
        %v1097 = vmul.f32 %v1081, %v1094
        %v1098 = vmul.f32 %v1083, %v1095
        %v1099 = vpack.c.bf16 %v1096, %v1096
        %v1100 = vpack.c.bf16 %v1097, %v1097
        %v1101 = vpack.c.bf16 %v1098, %v1098
        %1102 = vrot.lane.b32.xlu0 %v995, 64
        %v1103 = vpop.permute.xlu0 %1102
        %v1105 = vsel %vm998, %v1099, 0
        %vm1107 = vcmask 1043456
        %v1109 = vsel %vm1107, %v1103, 0
        %1111 = vmatpush.bf16.msra.mxu0 0
        %1112 = vmatpush.bf16.msra.mxu0 0
        %1113 = vmatpush.bf16.msra.mxu0 0
        %1114 = vmatpush.bf16.msra.mxu0 0
        %1115 = vmatpush.bf16.msra.mxu0 0
        %1116 = vmatpush.bf16.msra.mxu0 0
        %1117 = vmatpush.bf16.msra.mxu0 0
        %1118 = vmatpush.bf16.msra.mxu0 %v1109
        %1119 = vmatmul.bf16.gmra.mxu0 %v1105
        %v1120 = vpop.f32.mrf.mxu0
        %v1121 = vadd.f32 0.0, %v1120
        %v1122 = vpop.f32.mrf.mxu0
        %1123 = vdwg.mxu0
        %1124 = vrot.lane.b32.xlu0 %v1020, 64
        %v1125 = vpop.permute.xlu0 %1124
        %v1127 = vsel %vm998, %v1100, 0
        %v1130 = vsel %vm1107, %v1125, 0
        %1132 = vmatpush.bf16.msra.mxu0 0
        %1133 = vmatpush.bf16.msra.mxu0 0
        %1134 = vmatpush.bf16.msra.mxu0 0
        %1135 = vmatpush.bf16.msra.mxu0 0
        %1136 = vmatpush.bf16.msra.mxu0 0
        %1137 = vmatpush.bf16.msra.mxu0 0
        %1138 = vmatpush.bf16.msra.mxu0 0
        %1139 = vmatpush.bf16.msra.mxu0 %v1130
        %1140 = vmatmul.bf16.gmra.mxu0 %v1127
        %v1141 = vpop.f32.mrf.mxu0
        %v1142 = vadd.f32 0.0, %v1141
        %v1143 = vpop.f32.mrf.mxu0
        %1144 = vdwg.mxu0
        %1145 = vrot.lane.b32.xlu0 %v1044, 64
        %v1146 = vpop.permute.xlu0 %1145
        %v1148 = vsel %vm998, %v1101, 0
        %v1151 = vsel %vm1107, %v1146, 0
        %1153 = vmatpush.bf16.msra.mxu0 0
        %1154 = vmatpush.bf16.msra.mxu0 0
        %1155 = vmatpush.bf16.msra.mxu0 0
        %1156 = vmatpush.bf16.msra.mxu0 0
        %1157 = vmatpush.bf16.msra.mxu0 0
        %1158 = vmatpush.bf16.msra.mxu0 0
        %1159 = vmatpush.bf16.msra.mxu0 0
        %1160 = vmatpush.bf16.msra.mxu0 %v1151
        %1161 = vmatmul.bf16.gmra.mxu0 %v1148
        %v1162 = vpop.f32.mrf.mxu0
        %v1163 = vadd.f32 0.0, %v1162
        %v1164 = vpop.f32.mrf.mxu0
        %1165 = vdwg.mxu0
        %v1166 = vpack.c.bf16 %v1142, %v1121
        %v1167 = vpack.c.bf16 %v1163, %v1163
        %v1168 = vld [vmem:[%s799] sm:$0xf]
        %1169 = vrot.lane.b32.xlu0 %v995, 120
        %v1170 = vpop.permute.xlu0 %1169
        %1171 = vrot.lane.b32.xlu0 %v995, 88
        %v1172 = vpop.permute.xlu0 %1171
        %v1174 = vsel %vm998, %v1170, 0
        %v1177 = vsel %vm998, %v1172, 0
        %1179 = vmatpush.bf16.xpose.msra.mxu0 0
        %1180 = vmatpush.bf16.xpose.msra.mxu0 0
        %1181 = vmatpush.bf16.xpose.msra.mxu0 0
        %1182 = vmatpush.bf16.xpose.msra.mxu0 0
        %1183 = vmatpush.bf16.xpose.msra.mxu0 0
        %1184 = vmatpush.bf16.xpose.msra.mxu0 0
        %1185 = vmatpush.bf16.xpose.msra.mxu0 0
        %1186 = vmatpush.bf16.xpose.msra.mxu0 %v1177
        %1187 = vmatmul.bf16.gmra.mxu0 %v1174
        %v1188 = vpop.f32.mrf.mxu0
        %v1189 = vadd.f32 %v987, %v1188
        %v1190 = vpop.f32.mrf.mxu0
        %1191 = vdwg.mxu0
        %1192 = vrot.lane.b32.xlu0 %v1020, 120
        %v1193 = vpop.permute.xlu0 %1192
        %1194 = vrot.lane.b32.xlu0 %v1020, 88
        %v1195 = vpop.permute.xlu0 %1194
        %v1197 = vsel %vm998, %v1193, 0
        %v1200 = vsel %vm998, %v1195, 0
        %1202 = vmatpush.bf16.xpose.msra.mxu0 0
        %1203 = vmatpush.bf16.xpose.msra.mxu0 0
        %1204 = vmatpush.bf16.xpose.msra.mxu0 0
        %1205 = vmatpush.bf16.xpose.msra.mxu0 0
        %1206 = vmatpush.bf16.xpose.msra.mxu0 0
        %1207 = vmatpush.bf16.xpose.msra.mxu0 0
        %1208 = vmatpush.bf16.xpose.msra.mxu0 0
        %1209 = vmatpush.bf16.xpose.msra.mxu0 %v1200
        %1210 = vmatmul.bf16.gmra.mxu0 %v1197
        %v1211 = vpop.f32.mrf.mxu0
        %v1212 = vadd.f32 %v988, %v1211
        %v1213 = vpop.f32.mrf.mxu0
        %1214 = vdwg.mxu0
        %1215 = vrot.lane.b32.xlu0 %v1044, 120
        %v1216 = vpop.permute.xlu0 %1215
        %1217 = vrot.lane.b32.xlu0 %v1044, 88
        %v1218 = vpop.permute.xlu0 %1217
        %v1220 = vsel %vm998, %v1216, 0
        %v1223 = vsel %vm998, %v1218, 0
        %1225 = vmatpush.bf16.xpose.msra.mxu0 0
        %1226 = vmatpush.bf16.xpose.msra.mxu0 0
        %1227 = vmatpush.bf16.xpose.msra.mxu0 0
        %1228 = vmatpush.bf16.xpose.msra.mxu0 0
        %1229 = vmatpush.bf16.xpose.msra.mxu0 0
        %1230 = vmatpush.bf16.xpose.msra.mxu0 0
        %1231 = vmatpush.bf16.xpose.msra.mxu0 0
        %1232 = vmatpush.bf16.xpose.msra.mxu0 %v1223
        %1233 = vmatmul.bf16.gmra.mxu0 %v1220
        %v1234 = vpop.f32.mrf.mxu0
        %v1235 = vadd.f32 %v989, %v1234
        %v1236 = vpop.f32.mrf.mxu0
        %1237 = vdwg.mxu0
        %v1238 = vsel %vm998, %v1189, -inf
        %1239 = vmax.xlane.f32.xlu0 %v1238
        %v1240 = vpop.xlane.xlu0 %1239
        %v1241 = vsel %vm998, %v1212, -inf
        %1242 = vmax.xlane.f32.xlu0 %v1241
        %v1243 = vpop.xlane.xlu0 %1242
        %v1244 = vsel %vm998, %v1235, -inf
        %1245 = vmax.xlane.f32.xlu0 %v1244
        %v1246 = vpop.xlane.xlu0 %1245
        %v1247 = vsub.f32 %v1189, %v1240
        %v1248 = vsub.f32 %v1212, %v1243
        %v1249 = vsub.f32 %v1235, %v1246
        %v1250 = vmul.f32 %v1247, 1.442695
        %v1251 = vpow.pop %v1250
        %v1252 = vmul.f32 %v1248, 1.442695
        %v1253 = vpow.pop %v1252
        %v1254 = vmul.f32 %v1249, 1.442695
        %v1255 = vpow.pop %v1254
        %v1256 = vsel %vm998, %v1251, 0.0
        %1257 = vadd.xlane.f32.xlu0 %v1256
        %v1258 = vpop.xlane.xlu0 %1257
        %v1259 = vsel %vm998, %v1253, 0.0
        %1260 = vadd.xlane.f32.xlu0 %v1259
        %v1261 = vpop.xlane.xlu0 %1260
        %v1262 = vsel %vm998, %v1255, 0.0
        %1263 = vadd.xlane.f32.xlu0 %v1262
        %v1264 = vpop.xlane.xlu0 %1263
        %v1265 = vrcp.pop %v1258
        %v1266 = vrcp.pop %v1261
        %v1267 = vrcp.pop %v1264
        %v1268 = vmul.f32 %v1251, %v1265
        %v1269 = vmul.f32 %v1253, %v1266
        %v1270 = vmul.f32 %v1255, %v1267
        %v1271 = vpack.c.bf16 %v1268, %v1268
        %v1272 = vpack.c.bf16 %v1269, %v1269
        %v1273 = vpack.c.bf16 %v1270, %v1270
        %1274 = vrot.lane.b32.xlu0 %v995, 56
        %v1275 = vpop.permute.xlu0 %1274
        %v1277 = vsel %vm998, %v1271, 0
        %v1280 = vsel %vm1107, %v1275, 0
        %1282 = vmatpush.bf16.msra.mxu0 0
        %1283 = vmatpush.bf16.msra.mxu0 0
        %1284 = vmatpush.bf16.msra.mxu0 0
        %1285 = vmatpush.bf16.msra.mxu0 0
        %1286 = vmatpush.bf16.msra.mxu0 0
        %1287 = vmatpush.bf16.msra.mxu0 0
        %1288 = vmatpush.bf16.msra.mxu0 0
        %1289 = vmatpush.bf16.msra.mxu0 %v1280
        %1290 = vmatmul.bf16.gmra.mxu0 %v1277
        %v1291 = vpop.f32.mrf.mxu0
        %v1292 = vadd.f32 0.0, %v1291
        %v1293 = vpop.f32.mrf.mxu0
        %1294 = vdwg.mxu0
        %1295 = vrot.lane.b32.xlu0 %v1020, 56
        %v1296 = vpop.permute.xlu0 %1295
        %v1298 = vsel %vm998, %v1272, 0
        %v1301 = vsel %vm1107, %v1296, 0
        %1303 = vmatpush.bf16.msra.mxu0 0
        %1304 = vmatpush.bf16.msra.mxu0 0
        %1305 = vmatpush.bf16.msra.mxu0 0
        %1306 = vmatpush.bf16.msra.mxu0 0
        %1307 = vmatpush.bf16.msra.mxu0 0
        %1308 = vmatpush.bf16.msra.mxu0 0
        %1309 = vmatpush.bf16.msra.mxu0 0
        %1310 = vmatpush.bf16.msra.mxu0 %v1301
        %1311 = vmatmul.bf16.gmra.mxu0 %v1298
        %v1312 = vpop.f32.mrf.mxu0
        %v1313 = vadd.f32 0.0, %v1312
        %v1314 = vpop.f32.mrf.mxu0
        %1315 = vdwg.mxu0
        %1316 = vrot.lane.b32.xlu0 %v1044, 56
        %v1317 = vpop.permute.xlu0 %1316
        %v1319 = vsel %vm998, %v1273, 0
        %v1322 = vsel %vm1107, %v1317, 0
        %1324 = vmatpush.bf16.msra.mxu0 0
        %1325 = vmatpush.bf16.msra.mxu0 0
        %1326 = vmatpush.bf16.msra.mxu0 0
        %1327 = vmatpush.bf16.msra.mxu0 0
        %1328 = vmatpush.bf16.msra.mxu0 0
        %1329 = vmatpush.bf16.msra.mxu0 0
        %1330 = vmatpush.bf16.msra.mxu0 0
        %1331 = vmatpush.bf16.msra.mxu0 %v1322
        %1332 = vmatmul.bf16.gmra.mxu0 %v1319
        %v1333 = vpop.f32.mrf.mxu0
        %v1334 = vadd.f32 0.0, %v1333
        %v1335 = vpop.f32.mrf.mxu0
        %1336 = vdwg.mxu0
        %v1337 = vpack.c.bf16 %v1313, %v1292
        %v1338 = vpack.c.bf16 %v1334, %v1334
        %v1339 = vld [vmem:[%s799 + $0x4] sm:$0xf]
        %v1341 = vsel %vm998, %v1337, 0
        %v1344 = vsel %vm998, %v1338, 0
        %v1347 = vsel %vm1107, %v1339, 0
        %1349 = vmatpush.bf16.msra.mxu0 0
        %1350 = vmatpush.bf16.msra.mxu0 0
        %1351 = vmatpush.bf16.msra.mxu0 0
        %1352 = vmatpush.bf16.msra.mxu0 0
        %1353 = vmatpush.bf16.msra.mxu0 0
        %1354 = vmatpush.bf16.msra.mxu0 0
        %1355 = vmatpush.bf16.msra.mxu0 0
        %1356 = vmatpush.bf16.msra.mxu0 %v1347
        %1357 = vmatmul.bf16.gmra.mxu0 %v1341
        %v1358 = vpop.f32.mrf.mxu0
        %v1359 = vadd.f32 0.0, %v1358
        %v1360 = vpop.f32.mrf.mxu0
        %v1361 = vadd.f32 0.0, %v1360
        %1362 = vmatmul.bf16.gmra.mxu0 %v1344
        %v1363 = vpop.f32.mrf.mxu0
        %v1364 = vadd.f32 0.0, %v1363
        %v1365 = vpop.f32.mrf.mxu0
        %1366 = vdwg.mxu0
        %v1368 = vsel %vm998, %v1166, 0
        %v1371 = vsel %vm998, %v1167, 0
        %v1374 = vsel %vm1107, %v1168, 0
        %1376 = vmatpush.bf16.msra.mxu0 0
        %1377 = vmatpush.bf16.msra.mxu0 0
        %1378 = vmatpush.bf16.msra.mxu0 0
        %1379 = vmatpush.bf16.msra.mxu0 0
        %1380 = vmatpush.bf16.msra.mxu0 0
        %1381 = vmatpush.bf16.msra.mxu0 0
        %1382 = vmatpush.bf16.msra.mxu0 0
        %1383 = vmatpush.bf16.msra.mxu0 %v1374
        %1384 = vmatmul.bf16.gmra.mxu0 %v1368
        %v1385 = vpop.f32.mrf.mxu0
        %v1386 = vadd.f32 %v1359, %v1385
        %v1387 = vpop.f32.mrf.mxu0
        %v1388 = vadd.f32 %v1361, %v1387
        %1389 = vmatmul.bf16.gmra.mxu0 %v1371
        %v1390 = vpop.f32.mrf.mxu0
        %v1391 = vadd.f32 %v1364, %v1390
        %v1392 = vpop.f32.mrf.mxu0
        %1393 = vdwg.mxu0
        %1394 = vrot.lane.b32.xlu0 %v995, 112
        %v1395 = vpop.permute.xlu0 %1394
        %1396 = vrot.lane.b32.xlu0 %v995, 80
        %v1397 = vpop.permute.xlu0 %1396
        %v1399 = vsel %vm998, %v1395, 0
        %v1402 = vsel %vm998, %v1397, 0
        %1404 = vmatpush.bf16.xpose.msra.mxu0 0
        %1405 = vmatpush.bf16.xpose.msra.mxu0 0
        %1406 = vmatpush.bf16.xpose.msra.mxu0 0
        %1407 = vmatpush.bf16.xpose.msra.mxu0 0
        %1408 = vmatpush.bf16.xpose.msra.mxu0 0
        %1409 = vmatpush.bf16.xpose.msra.mxu0 0
        %1410 = vmatpush.bf16.xpose.msra.mxu0 0
        %1411 = vmatpush.bf16.xpose.msra.mxu0 %v1402
        %1412 = vmatmul.bf16.gmra.mxu0 %v1399
        %v1413 = vpop.f32.mrf.mxu0
        %v1414 = vadd.f32 %v987, %v1413
        %v1415 = vpop.f32.mrf.mxu0
        %1416 = vdwg.mxu0
        %1417 = vrot.lane.b32.xlu0 %v1020, 112
        %v1418 = vpop.permute.xlu0 %1417
        %1419 = vrot.lane.b32.xlu0 %v1020, 80
        %v1420 = vpop.permute.xlu0 %1419
        %v1422 = vsel %vm998, %v1418, 0
        %v1425 = vsel %vm998, %v1420, 0
        %1427 = vmatpush.bf16.xpose.msra.mxu0 0
        %1428 = vmatpush.bf16.xpose.msra.mxu0 0
        %1429 = vmatpush.bf16.xpose.msra.mxu0 0
        %1430 = vmatpush.bf16.xpose.msra.mxu0 0
        %1431 = vmatpush.bf16.xpose.msra.mxu0 0
        %1432 = vmatpush.bf16.xpose.msra.mxu0 0
        %1433 = vmatpush.bf16.xpose.msra.mxu0 0
        %1434 = vmatpush.bf16.xpose.msra.mxu0 %v1425
        %1435 = vmatmul.bf16.gmra.mxu0 %v1422
        %v1436 = vpop.f32.mrf.mxu0
        %v1437 = vadd.f32 %v988, %v1436
        %v1438 = vpop.f32.mrf.mxu0
        %1439 = vdwg.mxu0
        %1440 = vrot.lane.b32.xlu0 %v1044, 112
        %v1441 = vpop.permute.xlu0 %1440
        %1442 = vrot.lane.b32.xlu0 %v1044, 80
        %v1443 = vpop.permute.xlu0 %1442
        %v1445 = vsel %vm998, %v1441, 0
        %v1448 = vsel %vm998, %v1443, 0
        %1450 = vmatpush.bf16.xpose.msra.mxu0 0
        %1451 = vmatpush.bf16.xpose.msra.mxu0 0
        %1452 = vmatpush.bf16.xpose.msra.mxu0 0
        %1453 = vmatpush.bf16.xpose.msra.mxu0 0
        %1454 = vmatpush.bf16.xpose.msra.mxu0 0
        %1455 = vmatpush.bf16.xpose.msra.mxu0 0
        %1456 = vmatpush.bf16.xpose.msra.mxu0 0
        %1457 = vmatpush.bf16.xpose.msra.mxu0 %v1448
        %1458 = vmatmul.bf16.gmra.mxu0 %v1445
        %v1459 = vpop.f32.mrf.mxu0
        %v1460 = vadd.f32 %v989, %v1459
        %v1461 = vpop.f32.mrf.mxu0
        %1462 = vdwg.mxu0
        %v1463 = vsel %vm998, %v1414, -inf
        %1464 = vmax.xlane.f32.xlu0 %v1463
        %v1465 = vpop.xlane.xlu0 %1464
        %v1466 = vsel %vm998, %v1437, -inf
        %1467 = vmax.xlane.f32.xlu0 %v1466
        %v1468 = vpop.xlane.xlu0 %1467
        %v1469 = vsel %vm998, %v1460, -inf
        %1470 = vmax.xlane.f32.xlu0 %v1469
        %v1471 = vpop.xlane.xlu0 %1470
        %v1472 = vsub.f32 %v1414, %v1465
        %v1473 = vsub.f32 %v1437, %v1468
        %v1474 = vsub.f32 %v1460, %v1471
        %v1475 = vmul.f32 %v1472, 1.442695
        %v1476 = vpow.pop %v1475
        %v1477 = vmul.f32 %v1473, 1.442695
        %v1478 = vpow.pop %v1477
        %v1479 = vmul.f32 %v1474, 1.442695
        %v1480 = vpow.pop %v1479
        %v1481 = vsel %vm998, %v1476, 0.0
        %1482 = vadd.xlane.f32.xlu0 %v1481
        %v1483 = vpop.xlane.xlu0 %1482
        %v1484 = vsel %vm998, %v1478, 0.0
        %1485 = vadd.xlane.f32.xlu0 %v1484
        %v1486 = vpop.xlane.xlu0 %1485
        %v1487 = vsel %vm998, %v1480, 0.0
        %1488 = vadd.xlane.f32.xlu0 %v1487
        %v1489 = vpop.xlane.xlu0 %1488
        %v1490 = vrcp.pop %v1483
        %v1491 = vrcp.pop %v1486
        %v1492 = vrcp.pop %v1489
        %v1493 = vmul.f32 %v1476, %v1490
        %v1494 = vmul.f32 %v1478, %v1491
        %v1495 = vmul.f32 %v1480, %v1492
        %v1496 = vpack.c.bf16 %v1493, %v1493
        %v1497 = vpack.c.bf16 %v1494, %v1494
        %v1498 = vpack.c.bf16 %v1495, %v1495
        %1499 = vrot.lane.b32.xlu0 %v995, 48
        %v1500 = vpop.permute.xlu0 %1499
        %v1502 = vsel %vm998, %v1496, 0
        %v1505 = vsel %vm1107, %v1500, 0
        %1507 = vmatpush.bf16.msra.mxu0 0
        %1508 = vmatpush.bf16.msra.mxu0 0
        %1509 = vmatpush.bf16.msra.mxu0 0
        %1510 = vmatpush.bf16.msra.mxu0 0
        %1511 = vmatpush.bf16.msra.mxu0 0
        %1512 = vmatpush.bf16.msra.mxu0 0
        %1513 = vmatpush.bf16.msra.mxu0 0
        %1514 = vmatpush.bf16.msra.mxu0 %v1505
        %1515 = vmatmul.bf16.gmra.mxu0 %v1502
        %v1516 = vpop.f32.mrf.mxu0
        %v1517 = vadd.f32 0.0, %v1516
        %v1518 = vpop.f32.mrf.mxu0
        %1519 = vdwg.mxu0
        %1520 = vrot.lane.b32.xlu0 %v1020, 48
        %v1521 = vpop.permute.xlu0 %1520
        %v1523 = vsel %vm998, %v1497, 0
        %v1526 = vsel %vm1107, %v1521, 0
        %1528 = vmatpush.bf16.msra.mxu0 0
        %1529 = vmatpush.bf16.msra.mxu0 0
        %1530 = vmatpush.bf16.msra.mxu0 0
        %1531 = vmatpush.bf16.msra.mxu0 0
        %1532 = vmatpush.bf16.msra.mxu0 0
        %1533 = vmatpush.bf16.msra.mxu0 0
        %1534 = vmatpush.bf16.msra.mxu0 0
        %1535 = vmatpush.bf16.msra.mxu0 %v1526
        %1536 = vmatmul.bf16.gmra.mxu0 %v1523
        %v1537 = vpop.f32.mrf.mxu0
        %v1538 = vadd.f32 0.0, %v1537
        %v1539 = vpop.f32.mrf.mxu0
        %1540 = vdwg.mxu0
        %1541 = vrot.lane.b32.xlu0 %v1044, 48
        %v1542 = vpop.permute.xlu0 %1541
        %v1544 = vsel %vm998, %v1498, 0
        %v1547 = vsel %vm1107, %v1542, 0
        %1549 = vmatpush.bf16.msra.mxu0 0
        %1550 = vmatpush.bf16.msra.mxu0 0
        %1551 = vmatpush.bf16.msra.mxu0 0
        %1552 = vmatpush.bf16.msra.mxu0 0
        %1553 = vmatpush.bf16.msra.mxu0 0
        %1554 = vmatpush.bf16.msra.mxu0 0
        %1555 = vmatpush.bf16.msra.mxu0 0
        %1556 = vmatpush.bf16.msra.mxu0 %v1547
        %1557 = vmatmul.bf16.gmra.mxu0 %v1544
        %v1558 = vpop.f32.mrf.mxu0
        %v1559 = vadd.f32 0.0, %v1558
        %v1560 = vpop.f32.mrf.mxu0
        %1561 = vdwg.mxu0
        %v1562 = vpack.c.bf16 %v1538, %v1517
        %v1563 = vpack.c.bf16 %v1559, %v1559
        %v1564 = vld [vmem:[%s799 + $0x8] sm:$0xf]
        %v1566 = vsel %vm998, %v1562, 0
        %v1569 = vsel %vm998, %v1563, 0
        %v1572 = vsel %vm1107, %v1564, 0
        %1574 = vmatpush.bf16.msra.mxu0 0
        %1575 = vmatpush.bf16.msra.mxu0 0
        %1576 = vmatpush.bf16.msra.mxu0 0
        %1577 = vmatpush.bf16.msra.mxu0 0
        %1578 = vmatpush.bf16.msra.mxu0 0
        %1579 = vmatpush.bf16.msra.mxu0 0
        %1580 = vmatpush.bf16.msra.mxu0 0
        %1581 = vmatpush.bf16.msra.mxu0 %v1572
        %1582 = vmatmul.bf16.gmra.mxu0 %v1566
        %v1583 = vpop.f32.mrf.mxu0
        %v1584 = vadd.f32 0.0, %v1583
        %v1585 = vpop.f32.mrf.mxu0
        %v1586 = vadd.f32 0.0, %v1585
        %1587 = vmatmul.bf16.gmra.mxu0 %v1569
        %v1588 = vpop.f32.mrf.mxu0
        %v1589 = vadd.f32 0.0, %v1588
        %v1590 = vpop.f32.mrf.mxu0
        %1591 = vdwg.mxu0
        %v1592 = vadd.f32 %v1386, %v1584
        %v1593 = vadd.f32 %v1388, %v1586
        %v1594 = vadd.f32 %v1391, %v1589
        %1595 = vrot.lane.b32.xlu0 %v995, 104
        %v1596 = vpop.permute.xlu0 %1595
        %1597 = vrot.lane.b32.xlu0 %v995, 72
        %v1598 = vpop.permute.xlu0 %1597
        %v1600 = vsel %vm998, %v1596, 0
        %v1603 = vsel %vm998, %v1598, 0
        %1605 = vmatpush.bf16.xpose.msra.mxu0 0
        %1606 = vmatpush.bf16.xpose.msra.mxu0 0
        %1607 = vmatpush.bf16.xpose.msra.mxu0 0
        %1608 = vmatpush.bf16.xpose.msra.mxu0 0
        %1609 = vmatpush.bf16.xpose.msra.mxu0 0
        %1610 = vmatpush.bf16.xpose.msra.mxu0 0
        %1611 = vmatpush.bf16.xpose.msra.mxu0 0
        %1612 = vmatpush.bf16.xpose.msra.mxu0 %v1603
        %1613 = vmatmul.bf16.gmra.mxu0 %v1600
        %v1614 = vpop.f32.mrf.mxu0
        %v1615 = vadd.f32 %v987, %v1614
        %v1616 = vpop.f32.mrf.mxu0
        %1617 = vdwg.mxu0
        %1618 = vrot.lane.b32.xlu0 %v1020, 104
        %v1619 = vpop.permute.xlu0 %1618
        %1620 = vrot.lane.b32.xlu0 %v1020, 72
        %v1621 = vpop.permute.xlu0 %1620
        %v1623 = vsel %vm998, %v1619, 0
        %v1626 = vsel %vm998, %v1621, 0
        %1628 = vmatpush.bf16.xpose.msra.mxu0 0
        %1629 = vmatpush.bf16.xpose.msra.mxu0 0
        %1630 = vmatpush.bf16.xpose.msra.mxu0 0
        %1631 = vmatpush.bf16.xpose.msra.mxu0 0
        %1632 = vmatpush.bf16.xpose.msra.mxu0 0
        %1633 = vmatpush.bf16.xpose.msra.mxu0 0
        %1634 = vmatpush.bf16.xpose.msra.mxu0 0
        %1635 = vmatpush.bf16.xpose.msra.mxu0 %v1626
        %1636 = vmatmul.bf16.gmra.mxu0 %v1623
        %v1637 = vpop.f32.mrf.mxu0
        %v1638 = vadd.f32 %v988, %v1637
        %v1639 = vpop.f32.mrf.mxu0
        %1640 = vdwg.mxu0
        %1641 = vrot.lane.b32.xlu0 %v1044, 104
        %v1642 = vpop.permute.xlu0 %1641
        %1643 = vrot.lane.b32.xlu0 %v1044, 72
        %v1644 = vpop.permute.xlu0 %1643
        %v1646 = vsel %vm998, %v1642, 0
        %v1649 = vsel %vm998, %v1644, 0
        %1651 = vmatpush.bf16.xpose.msra.mxu0 0
        %1652 = vmatpush.bf16.xpose.msra.mxu0 0
        %1653 = vmatpush.bf16.xpose.msra.mxu0 0
        %1654 = vmatpush.bf16.xpose.msra.mxu0 0
        %1655 = vmatpush.bf16.xpose.msra.mxu0 0
        %1656 = vmatpush.bf16.xpose.msra.mxu0 0
        %1657 = vmatpush.bf16.xpose.msra.mxu0 0
        %1658 = vmatpush.bf16.xpose.msra.mxu0 %v1649
        %1659 = vmatmul.bf16.gmra.mxu0 %v1646
        %v1660 = vpop.f32.mrf.mxu0
        %v1661 = vadd.f32 %v989, %v1660
        %v1662 = vpop.f32.mrf.mxu0
        %1663 = vdwg.mxu0
        %v1664 = vsel %vm998, %v1615, -inf
        %1665 = vmax.xlane.f32.xlu0 %v1664
        %v1666 = vpop.xlane.xlu0 %1665
        %v1667 = vsel %vm998, %v1638, -inf
        %1668 = vmax.xlane.f32.xlu0 %v1667
        %v1669 = vpop.xlane.xlu0 %1668
        %v1670 = vsel %vm998, %v1661, -inf
        %1671 = vmax.xlane.f32.xlu0 %v1670
        %v1672 = vpop.xlane.xlu0 %1671
        %v1673 = vsub.f32 %v1615, %v1666
        %v1674 = vsub.f32 %v1638, %v1669
        %v1675 = vsub.f32 %v1661, %v1672
        %v1676 = vmul.f32 %v1673, 1.442695
        %v1677 = vpow.pop %v1676
        %v1678 = vmul.f32 %v1674, 1.442695
        %v1679 = vpow.pop %v1678
        %v1680 = vmul.f32 %v1675, 1.442695
        %v1681 = vpow.pop %v1680
        %v1682 = vsel %vm998, %v1677, 0.0
        %1683 = vadd.xlane.f32.xlu0 %v1682
        %v1684 = vpop.xlane.xlu0 %1683
        %v1685 = vsel %vm998, %v1679, 0.0
        %1686 = vadd.xlane.f32.xlu0 %v1685
        %v1687 = vpop.xlane.xlu0 %1686
        %v1688 = vsel %vm998, %v1681, 0.0
        %1689 = vadd.xlane.f32.xlu0 %v1688
        %v1690 = vpop.xlane.xlu0 %1689
        %v1691 = vrcp.pop %v1684
        %v1692 = vrcp.pop %v1687
        %v1693 = vrcp.pop %v1690
        %v1694 = vmul.f32 %v1677, %v1691
        %v1695 = vmul.f32 %v1679, %v1692
        %v1696 = vmul.f32 %v1681, %v1693
        %v1697 = vpack.c.bf16 %v1694, %v1694
        %v1698 = vpack.c.bf16 %v1695, %v1695
        %v1699 = vpack.c.bf16 %v1696, %v1696
        %1700 = vrot.lane.b32.xlu0 %v995, 40
        %v1701 = vpop.permute.xlu0 %1700
        %v1703 = vsel %vm998, %v1697, 0
        %v1706 = vsel %vm1107, %v1701, 0
        %1708 = vmatpush.bf16.msra.mxu0 0
        %1709 = vmatpush.bf16.msra.mxu0 0
        %1710 = vmatpush.bf16.msra.mxu0 0
        %1711 = vmatpush.bf16.msra.mxu0 0
        %1712 = vmatpush.bf16.msra.mxu0 0
        %1713 = vmatpush.bf16.msra.mxu0 0
        %1714 = vmatpush.bf16.msra.mxu0 0
        %1715 = vmatpush.bf16.msra.mxu0 %v1706
        %1716 = vmatmul.bf16.gmra.mxu0 %v1703
        %v1717 = vpop.f32.mrf.mxu0
        %v1718 = vadd.f32 0.0, %v1717
        %v1719 = vpop.f32.mrf.mxu0
        %1720 = vdwg.mxu0
        %1721 = vrot.lane.b32.xlu0 %v1020, 40
        %v1722 = vpop.permute.xlu0 %1721
        %v1724 = vsel %vm998, %v1698, 0
        %v1727 = vsel %vm1107, %v1722, 0
        %1729 = vmatpush.bf16.msra.mxu0 0
        %1730 = vmatpush.bf16.msra.mxu0 0
        %1731 = vmatpush.bf16.msra.mxu0 0
        %1732 = vmatpush.bf16.msra.mxu0 0
        %1733 = vmatpush.bf16.msra.mxu0 0
        %1734 = vmatpush.bf16.msra.mxu0 0
        %1735 = vmatpush.bf16.msra.mxu0 0
        %1736 = vmatpush.bf16.msra.mxu0 %v1727
        %1737 = vmatmul.bf16.gmra.mxu0 %v1724
        %v1738 = vpop.f32.mrf.mxu0
        %v1739 = vadd.f32 0.0, %v1738
        %v1740 = vpop.f32.mrf.mxu0
        %1741 = vdwg.mxu0
        %1742 = vrot.lane.b32.xlu0 %v1044, 40
        %v1743 = vpop.permute.xlu0 %1742
        %v1745 = vsel %vm998, %v1699, 0
        %v1748 = vsel %vm1107, %v1743, 0
        %1750 = vmatpush.bf16.msra.mxu0 0
        %1751 = vmatpush.bf16.msra.mxu0 0
        %1752 = vmatpush.bf16.msra.mxu0 0
        %1753 = vmatpush.bf16.msra.mxu0 0
        %1754 = vmatpush.bf16.msra.mxu0 0
        %1755 = vmatpush.bf16.msra.mxu0 0
        %1756 = vmatpush.bf16.msra.mxu0 0
        %1757 = vmatpush.bf16.msra.mxu0 %v1748
        %1758 = vmatmul.bf16.gmra.mxu0 %v1745
        %v1759 = vpop.f32.mrf.mxu0
        %v1760 = vadd.f32 0.0, %v1759
        %v1761 = vpop.f32.mrf.mxu0
        %1762 = vdwg.mxu0
        %v1763 = vpack.c.bf16 %v1739, %v1718
        %v1764 = vpack.c.bf16 %v1760, %v1760
        %v1765 = vld [vmem:[%s799 + $0xc] sm:$0xf]
        %v1767 = vsel %vm998, %v1763, 0
        %v1770 = vsel %vm998, %v1764, 0
        %v1773 = vsel %vm1107, %v1765, 0
        %1775 = vmatpush.bf16.msra.mxu0 0
        %1776 = vmatpush.bf16.msra.mxu0 0
        %1777 = vmatpush.bf16.msra.mxu0 0
        %1778 = vmatpush.bf16.msra.mxu0 0
        %1779 = vmatpush.bf16.msra.mxu0 0
        %1780 = vmatpush.bf16.msra.mxu0 0
        %1781 = vmatpush.bf16.msra.mxu0 0
        %1782 = vmatpush.bf16.msra.mxu0 %v1773
        %1783 = vmatmul.bf16.gmra.mxu0 %v1767
        %v1784 = vpop.f32.mrf.mxu0
        %v1785 = vadd.f32 0.0, %v1784
        %v1786 = vpop.f32.mrf.mxu0
        %v1787 = vadd.f32 0.0, %v1786
        %1788 = vmatmul.bf16.gmra.mxu0 %v1770
        %v1789 = vpop.f32.mrf.mxu0
        %v1790 = vadd.f32 0.0, %v1789
        %v1791 = vpop.f32.mrf.mxu0
        %1792 = vdwg.mxu0
        %v1793 = vadd.f32 %v1592, %v1785
        %v1794 = vadd.f32 %v1593, %v1787
        %v1795 = vadd.f32 %v1594, %v1790
        %v1796 = vld [vmem:[%s802] sm:$0x1]
        %v1798 = vperm.slane %v1796, 0
        %v1800 = vadd.f32 %v1793, %v1798
        %v1801 = vadd.f32 %v1794, %v1798
        %v1802 = vadd.f32 %v1795, %v1798
        %v1803 = vadd.f32 %v928, %v1800
        %v1804 = vadd.f32 %v929, %v1801
        %v1805 = vadd.f32 %v930, %v1802
        %v1806 = vld [vmem:[%s805] sm:$0x1]
        %v1807 = vld [vmem:[%s680] sm:$0x1]
        %v1808 = vsel %vm953, %v1803, 0.0
        %1809 = vadd.xlane.f32.xlu0 %v1808
        %v1810 = vpop.xlane.xlu0 %1809
        %v1811 = vsel %vm953, %v1804, 0.0
        %1812 = vadd.xlane.f32.xlu0 %v1811
        %v1813 = vpop.xlane.xlu0 %1812
        %v1814 = vsel %vm953, %v1805, 0.0
        %1815 = vadd.xlane.f32.xlu0 %v1814
        %v1816 = vpop.xlane.xlu0 %1815
        %v1817 = vrcp.pop 32.0
        %v1818 = vmul.f32 32.0, %v1817
        %v1819 = vsub.f32 1.0, %v1818
        %v1820 = vmul.f32 %v1817, %v1819
        %v1821 = vadd.f32 %v1817, %v1820
        %vm1822 = vweird.f32 %v1817
        %v1823 = vsel %vm1822, %v1817, %v1821
        %v1824 = vmul.f32 %v1810, %v1823
        %v1825 = vmul.f32 %v1813, %v1823
        %v1826 = vmul.f32 %v1816, %v1823
        %v1827 = vsub.f32 %v1803, %v1824
        %v1828 = vsub.f32 %v1804, %v1825
        %v1829 = vsub.f32 %v1805, %v1826
        %v1830 = vmul.f32 %v1827, %v1827
        %v1831 = vmul.f32 %v1828, %v1828
        %v1832 = vmul.f32 %v1829, %v1829
        %v1833 = vsel %vm953, %v1830, 0.0
        %1834 = vadd.xlane.f32.xlu0 %v1833
        %v1835 = vpop.xlane.xlu0 %1834
        %v1836 = vsel %vm953, %v1831, 0.0
        %1837 = vadd.xlane.f32.xlu0 %v1836
        %v1838 = vpop.xlane.xlu0 %1837
        %v1839 = vsel %vm953, %v1832, 0.0
        %1840 = vadd.xlane.f32.xlu0 %v1839
        %v1841 = vpop.xlane.xlu0 %1840
        %v1842 = vmul.f32 %v1835, %v1823
        %v1843 = vmul.f32 %v1838, %v1823
        %v1844 = vmul.f32 %v1841, %v1823
        %v1845 = vadd.f32 %v1842, 1e-06
        %v1846 = vadd.f32 %v1843, 1e-06
        %v1847 = vadd.f32 %v1844, 1e-06
        %v1848 = vrsqrt.pop %v1845
        %v1849 = vmul.f32 %v1848, %v1845
        %v1850 = vmul.f32 %v1849, %v1848
        %v1851 = vmul.f32 0.5, %v1850
        %v1852 = vsub.f32 1.5, %v1851
        %v1853 = vmul.f32 %v1848, %v1852
        %vm1854 = vweird.f32 %v1845
        %vm1855 = vweird.f32 %v1848
        %vm1856 = vmor %vm1854, %vm1855
        %v1857 = vsel %vm1856, %v1848, %v1853
        %v1858 = vrsqrt.pop %v1846
        %v1859 = vmul.f32 %v1858, %v1846
        %v1860 = vmul.f32 %v1859, %v1858
        %v1861 = vmul.f32 0.5, %v1860
        %v1862 = vsub.f32 1.5, %v1861
        %v1863 = vmul.f32 %v1858, %v1862
        %vm1864 = vweird.f32 %v1846
        %vm1865 = vweird.f32 %v1858
        %vm1866 = vmor %vm1864, %vm1865
        %v1867 = vsel %vm1866, %v1858, %v1863
        %v1868 = vrsqrt.pop %v1847
        %v1869 = vmul.f32 %v1868, %v1847
        %v1870 = vmul.f32 %v1869, %v1868
        %v1871 = vmul.f32 0.5, %v1870
        %v1872 = vsub.f32 1.5, %v1871
        %v1873 = vmul.f32 %v1868, %v1872
        %vm1874 = vweird.f32 %v1847
        %vm1875 = vweird.f32 %v1868
        %vm1876 = vmor %vm1874, %vm1875
        %v1877 = vsel %vm1876, %v1868, %v1873
        %v1878 = vmul.f32 %v1827, %v1857
        %v1879 = vmul.f32 %v1828, %v1867
        %v1880 = vmul.f32 %v1829, %v1877
        %v1882 = vperm.slane %v1806, 0
        %v1884 = vmul.f32 %v1878, %v1882
        %v1885 = vmul.f32 %v1879, %v1882
        %v1886 = vmul.f32 %v1880, %v1882
        %v1888 = vperm.slane %v1807, 0
        %v1890 = vadd.f32 %v1884, %v1888
        %v1891 = vadd.f32 %v1885, %v1888
        %v1892 = vadd.f32 %v1886, %v1888
        %v1893 = vpack.c.bf16 %v1891, %v1890
        %v1894 = vpack.c.bf16 %v1892, %v1892
        %v1895 = vld [vmem:[%s810] sm:$0xf]
        %v1896 = vld [vmem:[%s810 + $0x4] sm:$0xf]
        %v1897 = vld [vmem:[%s810 + $0x8] sm:$0xf]
        %v1898 = vld [vmem:[%s810 + $0xc] sm:$0xf]
        %v1899 = vld [vmem:[%s813] sm:$0x1]
        %v1901 = vperm.slane %v1899, 0
        %v1907 = vunpack.c.l.b16 %v1895
        %v1908 = vunpack.c.l.b16 %v1896
        %v1909 = vunpack.c.l.b16 %v1897
        %v1910 = vunpack.c.l.b16 %v1898
        %v1911 = vpack.c.b16 %v1908, %v1907
        %v1912 = vpack.c.b16 %v1910, %v1909
        %v1916 = vsel %vm953, %v1893, 0
        %v1919 = vsel %vm953, %v1894, 0
        %1921 = vmatpush.bf16.msra.mxu0 0
        %1922 = vmatpush.bf16.msra.mxu0 0
        %1923 = vmatpush.bf16.msra.mxu0 0
        %1924 = vmatpush.bf16.msra.mxu0 0
        %1925 = vmatpush.bf16.msra.mxu0 0
        %1926 = vmatpush.bf16.msra.mxu0 0
        %1927 = vmatpush.bf16.msra.mxu0 %v1912
        %1928 = vmatpush.bf16.msra.mxu0 %v1911
        %1929 = vmatmul.bf16.gmra.mxu0 %v1916
        %v1930 = vpop.f32.mrf.mxu0
        %v1931 = vadd.f32 %v1901, %v1930
        %v1932 = vpop.f32.mrf.mxu0
        %v1933 = vadd.f32 %v1901, %v1932
        %1934 = vmatmul.bf16.gmra.mxu0 %v1919
        %v1935 = vpop.f32.mrf.mxu0
        %v1936 = vadd.f32 %v1901, %v1935
        %v1937 = vpop.f32.mrf.mxu0
        %1938 = vdwg.mxu0
        %v1939 = vmul.f32 %v1931, %v1931
        %v1940 = vmul.f32 %v1933, %v1933
        %v1941 = vmul.f32 %v1936, %v1936
        %v1942 = vmul.f32 %v1931, %v1939
        %v1943 = vmul.f32 %v1933, %v1940
        %v1944 = vmul.f32 %v1936, %v1941
        %v1945 = vmul.f32 %v1942, 0.044715
        %v1946 = vmul.f32 %v1943, 0.044715
        %v1947 = vmul.f32 %v1944, 0.044715
        %v1948 = vadd.f32 %v1931, %v1945
        %v1949 = vadd.f32 %v1933, %v1946
        %v1950 = vadd.f32 %v1936, %v1947
        %v1951 = vmul.f32 %v1948, 0.7978846
        %v1952 = vmul.f32 %v1949, 0.7978846
        %v1953 = vmul.f32 %v1950, 0.7978846
        %v1954 = vtanh.pop %v1951
        %v1955 = vtanh.pop %v1952
        %v1956 = vtanh.pop %v1953
        %v1957 = vadd.f32 %v1954, 1.0
        %v1958 = vadd.f32 %v1955, 1.0
        %v1959 = vadd.f32 %v1956, 1.0
        %v1960 = vmul.f32 %v1957, 0.5
        %v1961 = vmul.f32 %v1958, 0.5
        %v1962 = vmul.f32 %v1959, 0.5
        %v1963 = vmul.f32 %v1931, %v1960
        %v1964 = vmul.f32 %v1933, %v1961
        %v1965 = vmul.f32 %v1936, %v1962
        %v1966 = vpack.c.bf16 %v1964, %v1963
        %v1967 = vpack.c.bf16 %v1965, %v1965
        %v1968 = vld [vmem:[%s818] sm:$0xf]
        %v1969 = vld [vmem:[%s818 + $0x4] sm:$0xf]
        %v1970 = vld [vmem:[%s818 + $0x8] sm:$0xf]
        %v1971 = vld [vmem:[%s818 + $0xc] sm:$0xf]
        %v1972 = vld [vmem:[%s818 + $0x10] sm:$0xf]
        %v1973 = vld [vmem:[%s818 + $0x14] sm:$0xf]
        %v1974 = vld [vmem:[%s818 + $0x18] sm:$0xf]
        %v1975 = vld [vmem:[%s818 + $0x1c] sm:$0xf]
        %v1976 = vld [vmem:[%s821] sm:$0x1]
        %v1978 = vperm.slane %v1976, 0
        %v1988 = vunpack.c.l.b16 %v1968
        %v1989 = vunpack.c.l.b16 %v1969
        %v1990 = vunpack.c.l.b16 %v1970
        %v1991 = vunpack.c.l.b16 %v1971
        %v1992 = vunpack.c.l.b16 %v1972
        %v1993 = vunpack.c.l.b16 %v1973
        %v1994 = vunpack.c.l.b16 %v1974
        %v1995 = vunpack.c.l.b16 %v1975
        %v1996 = vpack.c.b16 %v1989, %v1988
        %v1997 = vpack.c.b16 %v1991, %v1990
        %v1998 = vpack.c.b16 %v1993, %v1992
        %v1999 = vpack.c.b16 %v1995, %v1994
        %vm2004 = vcmask 523264
        %v2006 = vsel %vm2004, %v1966, 0
        %v2009 = vsel %vm2004, %v1967, 0
        %2011 = vmatpush.bf16.msra.mxu0 0
        %2012 = vmatpush.bf16.msra.mxu0 0
        %2013 = vmatpush.bf16.msra.mxu0 0
        %2014 = vmatpush.bf16.msra.mxu0 0
        %2015 = vmatpush.bf16.msra.mxu0 %v1999
        %2016 = vmatpush.bf16.msra.mxu0 %v1998
        %2017 = vmatpush.bf16.msra.mxu0 %v1997
        %2018 = vmatpush.bf16.msra.mxu0 %v1996
        %2019 = vmatmul.bf16.gmra.mxu0 %v2006
        %v2020 = vpop.f32.mrf.mxu0
        %v2021 = vadd.f32 %v1978, %v2020
        %v2022 = vpop.f32.mrf.mxu0
        %v2023 = vadd.f32 %v1978, %v2022
        %2024 = vmatmul.bf16.gmra.mxu0 %v2009
        %v2025 = vpop.f32.mrf.mxu0
        %v2026 = vadd.f32 %v1978, %v2025
        %v2027 = vpop.f32.mrf.mxu0
        %2028 = vdwg.mxu0
        %v2029 = vadd.f32 %v1890, %v2021
        %v2030 = vadd.f32 %v1891, %v2023
        %v2031 = vadd.f32 %v1892, %v2026
        %v2032 = vld [vmem:[%s824] sm:$0x1]
        %v2033 = vld [vmem:[%s689] sm:$0x1]
        %v2034 = vsel %vm953, %v2029, 0.0
        %2035 = vadd.xlane.f32.xlu0 %v2034
        %v2036 = vpop.xlane.xlu0 %2035
        %v2037 = vsel %vm953, %v2030, 0.0
        %2038 = vadd.xlane.f32.xlu0 %v2037
        %v2039 = vpop.xlane.xlu0 %2038
        %v2040 = vsel %vm953, %v2031, 0.0
        %2041 = vadd.xlane.f32.xlu0 %v2040
        %v2042 = vpop.xlane.xlu0 %2041
        %v2043 = vmul.f32 %v2036, %v1823
        %v2044 = vmul.f32 %v2039, %v1823
        %v2045 = vmul.f32 %v2042, %v1823
        %v2046 = vsub.f32 %v2029, %v2043
        %v2047 = vsub.f32 %v2030, %v2044
        %v2048 = vsub.f32 %v2031, %v2045
        %v2049 = vmul.f32 %v2046, %v2046
        %v2050 = vmul.f32 %v2047, %v2047
        %v2051 = vmul.f32 %v2048, %v2048
        %v2052 = vsel %vm953, %v2049, 0.0
        %2053 = vadd.xlane.f32.xlu0 %v2052
        %v2054 = vpop.xlane.xlu0 %2053
        %v2055 = vsel %vm953, %v2050, 0.0
        %2056 = vadd.xlane.f32.xlu0 %v2055
        %v2057 = vpop.xlane.xlu0 %2056
        %v2058 = vsel %vm953, %v2051, 0.0
        %2059 = vadd.xlane.f32.xlu0 %v2058
        %v2060 = vpop.xlane.xlu0 %2059
        %v2061 = vmul.f32 %v2054, %v1823
        %v2062 = vmul.f32 %v2057, %v1823
        %v2063 = vmul.f32 %v2060, %v1823
        %v2064 = vadd.f32 %v2061, 1e-06
        %v2065 = vadd.f32 %v2062, 1e-06
        %v2066 = vadd.f32 %v2063, 1e-06
        %v2067 = vrsqrt.pop %v2064
        %v2068 = vmul.f32 %v2067, %v2064
        %v2069 = vmul.f32 %v2068, %v2067
        %v2070 = vmul.f32 0.5, %v2069
        %v2071 = vsub.f32 1.5, %v2070
        %v2072 = vmul.f32 %v2067, %v2071
        %vm2073 = vweird.f32 %v2064
        %vm2074 = vweird.f32 %v2067
        %vm2075 = vmor %vm2073, %vm2074
        %v2076 = vsel %vm2075, %v2067, %v2072
        %v2077 = vrsqrt.pop %v2065
        %v2078 = vmul.f32 %v2077, %v2065
        %v2079 = vmul.f32 %v2078, %v2077
        %v2080 = vmul.f32 0.5, %v2079
        %v2081 = vsub.f32 1.5, %v2080
        %v2082 = vmul.f32 %v2077, %v2081
        %vm2083 = vweird.f32 %v2065
        %vm2084 = vweird.f32 %v2077
        %vm2085 = vmor %vm2083, %vm2084
        %v2086 = vsel %vm2085, %v2077, %v2082
        %v2087 = vrsqrt.pop %v2066
        %v2088 = vmul.f32 %v2087, %v2066
        %v2089 = vmul.f32 %v2088, %v2087
        %v2090 = vmul.f32 0.5, %v2089
        %v2091 = vsub.f32 1.5, %v2090
        %v2092 = vmul.f32 %v2087, %v2091
        %vm2093 = vweird.f32 %v2066
        %vm2094 = vweird.f32 %v2087
        %vm2095 = vmor %vm2093, %vm2094
        %v2096 = vsel %vm2095, %v2087, %v2092
        %v2097 = vmul.f32 %v2046, %v2076
        %v2098 = vmul.f32 %v2047, %v2086
        %v2099 = vmul.f32 %v2048, %v2096
        %v2101 = vperm.slane %v2032, 0
        %v2103 = vmul.f32 %v2097, %v2101
        %v2104 = vmul.f32 %v2098, %v2101
        %v2105 = vmul.f32 %v2099, %v2101
        %v2107 = vperm.slane %v2033, 0
        %v2109 = vadd.f32 %v2103, %v2107
        %v2110 = vadd.f32 %v2104, %v2107
        %v2111 = vadd.f32 %v2105, %v2107
        %2112 = vst.msk [vmem:[#allocation2] sm:$0xff] %vm953, %v2109
        %2113 = vst.msk [vmem:[#allocation2 + $0x8] sm:$0xff] %vm953, %v2110
        %2114 = vst.msk [vmem:[#allocation2 + $0x10] sm:$0xff] %vm953, %v2111
        %p2115 = scmp.eq.s32.totalorder %s42, 1
        // Predicated region
        $region109: #{tpu_custom_call.1} parent=83 // pred_check
          %p2116 = pneg %p2115
        $region110: #{tpu_custom_call.1} parent=83 // pred_check_branch
          %2118 = sbr.rel (%p2116) target = $region112
        $region111: #{tpu_custom_call.1} parent=83 // pred_region
          %v2119 = vld [vmem:[#allocation2] sm:$0x1]
          %v2120 = vld [vmem:[#allocation2 + $0x8] sm:$0x1]
          %v2121 = vld [vmem:[#allocation2 + $0x10] sm:$0x1]
          %vm2122 = vcmask 253952
          %2123 = vst.msk [vmem:[%s784] sm:$0x1] %vm2122, %v2119
          %2124 = vst.msk [vmem:[%s784 + $0x1] sm:$0x1] %vm2122, %v2120
          %2125 = vst.msk [vmem:[%s784 + $0x2] sm:$0x1] %vm2122, %v2121
        $region112: #{tpu_custom_call.1} parent=83 // pred_fallthru
          _
        %s2126 = sand.u32 %s463, 1
        %s2127 = scalar_lea.sflag [#allocation5], %s2126
        %s2128 = sand.u32 %s463, 1
        %s2129 = smul.addr %s2128, 3
        %s2130 = scalar_lea.vmem [#allocation12], %s2129
        // Predicated region
        $region113: #{tpu_custom_call.1} parent=83 // pred_check
          %p2131 = pneg %p473
        $region114: #{tpu_custom_call.1} parent=83 // pred_check_branch
          %2133 = sbr.rel (%p2131) target = $region116
        $region115: #{tpu_custom_call.1} parent=83 // pred_region
          %s2134 = smul.u32 3, %s41
          %2136 = vsyncadd %s2127, 0
          %s2137 = scalar_lea.hbm %s16, %s2134
          %s2138 = sshll.u32 %s2130, 4
          %s2139 = int_to_ptr.vmem [resolvable:$true] %s2138
          %s2140 = sshll.u32 %s2137, 4
          %s2141 = int_to_ptr.hbm [resolvable:$true] %s2140
          %2146 = dma.vmem_to_hbm [thread:$0]  %s2139, 48, %s2141, %s2127, 16, 16, 1
        $region116: #{tpu_custom_call.1} parent=83 // pred_fallthru
          _
      $region84: #{tpu_custom_call.1} parent=5 // pred_fallthru
        _
      %p2147 = scmp.le.s32.totalorder 2, %s32
      // Predicated region
      $region117: #{tpu_custom_call.1} parent=5 // pred_check
        %p2148 = pneg %p2147
      $region118: #{tpu_custom_call.1} parent=5 // pred_check_branch
        %2150 = sbr.rel (%p2148) target = $region120
      $region119: #{tpu_custom_call.1} parent=5 // pred_region
        %s2151 = ssub.s32 %s32, 2
        // Predicated region
        $region121: #{tpu_custom_call.1} parent=119 // pred_check
          %p2152 = pneg %p479
        $region122: #{tpu_custom_call.1} parent=119 // pred_check_branch
          %2154 = sbr.rel (%p2152) target = $region124
        $region123: #{tpu_custom_call.1} parent=119 // pred_region
          %s2155 = sand.u32 %s464, 1
          %s2156 = scalar_lea.sflag [#allocation5], %s2155
          %s2157 = sand.u32 %s464, 1
          %s2158 = smul.addr %s2157, 3
          %s2159 = scalar_lea.vmem [#allocation12], %s2158
          %2161 = dma.done %s2156, 48
        $region124: #{tpu_custom_call.1} parent=119 // pred_fallthru
          _
      $region120: #{tpu_custom_call.1} parent=5 // pred_fallthru
        _
    $region6: #{tpu_custom_call.1} parent=1 // loop_footer
      %s36 = sadd.s32 1, %s32
    $region7: #{tpu_custom_call.1} parent=1 // loop_footer_branch
      %31 = sbr.rel target = $region3
    $region8: #{tpu_custom_call.1} parent=1 // loop_exit
      _
    %2162 = vsyncpa [#allocation4], 1
    %s2163 = scalar_lea.sflag [#allocation4], 1
    %2164 = vsyncpa %s2163, 1
    %2165 = vsyncpa [#allocation7], 1
    %s2166 = scalar_lea.sflag [#allocation7], 1
    %2167 = vsyncpa %s2166, 1
    %2168 = vsyncpa [#allocation10], 1
    %s2169 = scalar_lea.sflag [#allocation10], 1
    %2170 = vsyncpa %s2169, 1
    %2171 = vsyncpa [#allocation5], 1
    %s2172 = scalar_lea.sflag [#allocation5], 1
    %2173 = vsyncpa %s2172, 1

// kernel: tpu_custom_call.1
$region0: #{tpu_custom_call.1}
  #allocation0 [shape = 'u32[]', space=smem, size = 0x4, offset = 0x4, fixed_abs, tag = 'smem constant byte address 0x4 - core index']
  #allocation1 [shape = 'u32[72,128]{1,0:T(1,128)}', space=vmem, size = 0x9000, scoped, tag = 'internal scratch']
  #allocation2 [shape = 'f32[3,8,32]{2,1,0:T(8,128)}', space=vmem, size = 0x3000, scoped, tag = 'scratch operand']
  %s0 = inlined_call_operand.hbm [shape: bf16[6,8,32], index: 0, kind: input, shape index: {}]
  %s1 = inlined_call_operand.hbm [shape: f32[6,1,8], index: 1, kind: input, shape index: {}]
  %s2 = inlined_call_operand.vmem [shape: f32[1,32], index: 2, kind: input, shape index: {}]
  %s3 = inlined_call_operand.hbm [shape: f32[1,32], index: 3, kind: input, shape index: {}]
  %s4 = inlined_call_operand.vmem [shape: bf16[2,32,96], index: 4, kind: input, shape index: {}]
  %s5 = inlined_call_operand.vmem [shape: f32[2,1,96], index: 5, kind: input, shape index: {}]
  %s6 = inlined_call_operand.vmem [shape: bf16[2,32,32], index: 6, kind: input, shape index: {}]
  %s7 = inlined_call_operand.vmem [shape: f32[2,1,32], index: 7, kind: input, shape index: {}]
  %s8 = inlined_call_operand.vmem [shape: f32[2,1,32], index: 8, kind: input, shape index: {}]
  %s9 = inlined_call_operand.hbm [shape: f32[2,1,32], index: 9, kind: input, shape index: {}]
  %s10 = inlined_call_operand.vmem [shape: bf16[2,32,64], index: 10, kind: input, shape index: {}]
  %s11 = inlined_call_operand.vmem [shape: f32[2,1,64], index: 11, kind: input, shape index: {}]
  %s12 = inlined_call_operand.vmem [shape: bf16[2,64,32], index: 12, kind: input, shape index: {}]
  %s13 = inlined_call_operand.vmem [shape: f32[2,1,32], index: 13, kind: input, shape index: {}]
  %s14 = inlined_call_operand.vmem [shape: f32[2,1,32], index: 14, kind: input, shape index: {}]
  %s15 = inlined_call_operand.hbm [shape: f32[2,1,32], index: 15, kind: input, shape index: {}]
  %s16 = inlined_call_operand.hbm [shape: f32[6,1,32], index: 16, kind: output, shape index: {}]
  %s17 = sld [smem:[#allocation0]]
  $region125: #{tpu_custom_call.1} parent=0
    _
  %s19 = ssub.s32 1, %s17
  %s20 = scalar_select 0, %s19, %s17
  $region1: #{tpu_custom_call.1} parent=0
    #allocation3 [shape = 'u8[12288]{0}', space=vmem, size = 0x3000, scoped, tag = 'input window, operand 0']
    #allocation4 [shape = 's32[2]{0}', space=sflag, size = 0x8, scoped, tag = 'scoped memory for tpu_custom_call.1']
    #allocation5 [shape = 's32[2]{0}', space=sflag, size = 0x8, scoped, tag = 'scoped memory for tpu_custom_call.1']
    #allocation6 [shape = 'u8[3072]{0}', space=vmem, size = 0xc00, scoped, tag = 'input window, operand 1']
    #allocation7 [shape = 's32[2]{0}', space=sflag, size = 0x8, scoped, tag = 'scoped memory for tpu_custom_call.1']
    #allocation8 [shape = 'u8[512]{0}', space=vmem, size = 0x400, scoped, tag = 'input window, operand 3, single buffered']
    #allocation9 [shape = 'u8[1024]{0}', space=vmem, size = 0x400, scoped, tag = 'input window, operand 9']
    #allocation10 [shape = 's32[2]{0}', space=sflag, size = 0x8, scoped, tag = 'scoped memory for tpu_custom_call.1']
    #allocation11 [shape = 'u8[1024]{0}', space=vmem, size = 0x400, scoped, tag = 'input window, operand 15']
    #allocation12 [shape = 'u8[3072]{0}', space=vmem, size = 0xc00, scoped, tag = 'output window, operand 0']
    %21 = vsyncpa [#allocation4], 0
    %s22 = scalar_lea.sflag [#allocation4], 1
    %23 = vsyncpa %s22, 0
    %24 = vsyncpa [#allocation7], 0
    %s25 = scalar_lea.sflag [#allocation7], 1
    %26 = vsyncpa %s25, 0
    %27 = vsyncpa [#allocation10], 0
    %s28 = scalar_lea.sflag [#allocation10], 1
    %29 = vsyncpa %s28, 0
    %30 = vsyncpa [#allocation5], 0
    %s31 = scalar_lea.sflag [#allocation5], 1
    %32 = vsyncpa %s31, 0
    loop: start=0, step=1, limit=6
    $region2: #{tpu_custom_call.1} parent=1 // loop_pre_header
      _
    $region3: #{tpu_custom_call.1} parent=1 // loop_header
      %s34 = sphi 0, %s38
      %p35 = scmp.ge.s32.totalorder %s34, 6
      %s41 = sphi 0, %s53
      %s42 = sphi 0, %s49
      %s43 = sphi 0, %s41
      %s44 = sphi 0, %s42
      %s45 = sphi 0, %s43
      %s46 = sphi 0, %s44
      %s56 = sphi 0, %s58
      %s59 = sphi 0, %s56
      %s60 = sphi 0, %s59
      %s76 = sphi 0, %s60
      %s82 = sphi 0, %s84
      %s85 = sphi 0, %s82
      %s86 = sphi 0, %s85
      %s102 = sphi 0, %s86
      %s106 = sphi 0, %s106
      %s108 = sphi 0, %s106
      %s109 = sphi 0, %s108
      %s123 = sphi 0, %s109
      %s127 = sphi 0, %s127
      %s129 = sphi 0, %s127
      %s130 = sphi 0, %s129
      %s144 = sphi 0, %s130
      %s150 = sphi 0, %s152
      %s153 = sphi 0, %s150
      %s154 = sphi 0, %s153
      %s170 = sphi 0, %s154
      %s176 = sphi 0, %s178
      %s179 = sphi 0, %s176
      %s180 = sphi 0, %s179
      %s196 = sphi 0, %s180
      %s202 = sphi 0, %s204
      %s205 = sphi 0, %s202
      %s206 = sphi 0, %s205
      %s222 = sphi 0, %s206
      %s228 = sphi 0, %s230
      %s231 = sphi 0, %s228
      %s232 = sphi 0, %s231
      %s248 = sphi 0, %s232
      %s254 = sphi 0, %s256
      %s257 = sphi 0, %s254
      %s258 = sphi 0, %s257
      %s274 = sphi 0, %s258
      %s280 = sphi 0, %s282
      %s283 = sphi 0, %s280
      %s284 = sphi 0, %s283
      %s300 = sphi 0, %s284
      %s306 = sphi 0, %s308
      %s309 = sphi 0, %s306
      %s310 = sphi 0, %s309
      %s326 = sphi 0, %s310
      %s332 = sphi 0, %s334
      %s335 = sphi 0, %s332
      %s336 = sphi 0, %s335
      %s352 = sphi 0, %s336
      %s358 = sphi 0, %s360
      %s361 = sphi 0, %s358
      %s362 = sphi 0, %s361
      %s378 = sphi 0, %s362
      %s384 = sphi 0, %s386
      %s387 = sphi 0, %s384
      %s388 = sphi 0, %s387
      %s404 = sphi 0, %s388
      %s410 = sphi 0, %s412
      %s413 = sphi 0, %s410
      %s414 = sphi 0, %s413
      %s430 = sphi 0, %s414
      %s436 = sphi 0, %s438
      %s439 = sphi 0, %s436
      %s440 = sphi 0, %s439
      %s456 = sphi 0, %s440
      %s462 = sphi 0, %s464
      %s465 = sphi 0, %s462
      %s466 = sphi 0, %s465
      %s482 = sphi 0, %s466
    $region4: #{tpu_custom_call.1} parent=1 // loop_header_branch
      %37 = sbr.rel (%p35) target = $region8
    $region5: #{tpu_custom_call.1} parent=1 // loop_body
      %s39 = ssub.s32 %s34, 1
      %s40 = ssub.s32 %s34, 2
      %s47 = sadd.s32 1, %s42
      %p48 = scmp.ge.s32.totalorder %s47, 2
      %s49 = scalar_select %p48, 0, %s47
      %s50 = sadd.s32 1, %s41
      %s51 = scalar_select %p48, %s50, %s41
      %p52 = scmp.ge.s32.totalorder %s51, 2
      %s53 = scalar_select %p52, 0, %s51
      %s54 = ssub.s32 %s41, %s53
      %p55 = scmp.eq.s32.totalorder %s54, 0
      %s57 = sadd.s32 %s56, 1
      %s58 = scalar_select %p55, %s56, %s57
      %p61 = pneg %p55
      %p62 = scmp.eq.s32.totalorder %s34, 3
      %p63 = por %p61, %p62
      %p64 = scmp.ne.s32.totalorder %s56, %s59
      %p65 = scmp.eq.s32.totalorder %s34, 0
      %p66 = por %p64, %p65
      %p67 = scmp.ne.s32.totalorder %s56, %s59
      %p68 = scmp.eq.s32.totalorder %s39, 3
      %p69 = por %p67, %p68
      %p70 = scmp.ne.s32.totalorder %s59, %s60
      %p71 = scmp.eq.s32.totalorder %s39, 0
      %p72 = por %p70, %p71
      %p73 = scmp.ne.s32.totalorder %s59, %s60
      %p74 = scmp.eq.s32.totalorder %s40, 3
      %p75 = por %p73, %p74
      %p77 = scmp.ne.s32.totalorder %s60, %s76
      %p78 = scmp.eq.s32.totalorder %s40, 0
      %p79 = por %p77, %p78
      %s80 = ssub.s32 %s41, %s53
      %p81 = scmp.eq.s32.totalorder %s80, 0
      %s83 = sadd.s32 %s82, 1
      %s84 = scalar_select %p81, %s82, %s83
      %p87 = pneg %p81
      %p88 = scmp.eq.s32.totalorder %s34, 3
      %p89 = por %p87, %p88
      %p90 = scmp.ne.s32.totalorder %s82, %s85
      %p91 = scmp.eq.s32.totalorder %s34, 0
      %p92 = por %p90, %p91
      %p93 = scmp.ne.s32.totalorder %s82, %s85
      %p94 = scmp.eq.s32.totalorder %s39, 3
      %p95 = por %p93, %p94
      %p96 = scmp.ne.s32.totalorder %s85, %s86
      %p97 = scmp.eq.s32.totalorder %s39, 0
      %p98 = por %p96, %p97
      %p99 = scmp.ne.s32.totalorder %s85, %s86
      %p100 = scmp.eq.s32.totalorder %s40, 3
      %p101 = por %p99, %p100
      %p103 = scmp.ne.s32.totalorder %s86, %s102
      %p104 = scmp.eq.s32.totalorder %s40, 0
      %p105 = por %p103, %p104
      %s107 = sadd.s32 %s106, 1
      %p110 = scmp.eq.s32.totalorder %s34, 3
      %p111 = scmp.ne.s32.totalorder %s106, %s108
      %p112 = scmp.eq.s32.totalorder %s34, 0
      %p113 = por %p111, %p112
      %p114 = scmp.ne.s32.totalorder %s106, %s108
      %p115 = scmp.eq.s32.totalorder %s39, 3
      %p116 = por %p114, %p115
      %p117 = scmp.ne.s32.totalorder %s108, %s109
      %p118 = scmp.eq.s32.totalorder %s39, 0
      %p119 = por %p117, %p118
      %p120 = scmp.ne.s32.totalorder %s108, %s109
      %p121 = scmp.eq.s32.totalorder %s40, 3
      %p122 = por %p120, %p121
      %p124 = scmp.ne.s32.totalorder %s109, %s123
      %p125 = scmp.eq.s32.totalorder %s40, 0
      %p126 = por %p124, %p125
      %s128 = sadd.s32 %s127, 1
      %p131 = scmp.eq.s32.totalorder %s34, 3
      %p132 = scmp.ne.s32.totalorder %s127, %s129
      %p133 = scmp.eq.s32.totalorder %s34, 0
      %p134 = por %p132, %p133
      %p135 = scmp.ne.s32.totalorder %s127, %s129
      %p136 = scmp.eq.s32.totalorder %s39, 3
      %p137 = por %p135, %p136
      %p138 = scmp.ne.s32.totalorder %s129, %s130
      %p139 = scmp.eq.s32.totalorder %s39, 0
      %p140 = por %p138, %p139
      %p141 = scmp.ne.s32.totalorder %s129, %s130
      %p142 = scmp.eq.s32.totalorder %s40, 3
      %p143 = por %p141, %p142
      %p145 = scmp.ne.s32.totalorder %s130, %s144
      %p146 = scmp.eq.s32.totalorder %s40, 0
      %p147 = por %p145, %p146
      %s148 = ssub.s32 %s42, %s49
      %p149 = scmp.eq.s32.totalorder %s148, 0
      %s151 = sadd.s32 %s150, 1
      %s152 = scalar_select %p149, %s150, %s151
      %p155 = pneg %p149
      %p156 = scmp.eq.s32.totalorder %s34, 3
      %p157 = por %p155, %p156
      %p158 = scmp.ne.s32.totalorder %s150, %s153
      %p159 = scmp.eq.s32.totalorder %s34, 0
      %p160 = por %p158, %p159
      %p161 = scmp.ne.s32.totalorder %s150, %s153
      %p162 = scmp.eq.s32.totalorder %s39, 3
      %p163 = por %p161, %p162
      %p164 = scmp.ne.s32.totalorder %s153, %s154
      %p165 = scmp.eq.s32.totalorder %s39, 0
      %p166 = por %p164, %p165
      %p167 = scmp.ne.s32.totalorder %s153, %s154
      %p168 = scmp.eq.s32.totalorder %s40, 3
      %p169 = por %p167, %p168
      %p171 = scmp.ne.s32.totalorder %s154, %s170
      %p172 = scmp.eq.s32.totalorder %s40, 0
      %p173 = por %p171, %p172
      %s174 = ssub.s32 %s42, %s49
      %p175 = scmp.eq.s32.totalorder %s174, 0
      %s177 = sadd.s32 %s176, 1
      %s178 = scalar_select %p175, %s176, %s177
      %p181 = pneg %p175
      %p182 = scmp.eq.s32.totalorder %s34, 3
      %p183 = por %p181, %p182
      %p184 = scmp.ne.s32.totalorder %s176, %s179
      %p185 = scmp.eq.s32.totalorder %s34, 0
      %p186 = por %p184, %p185
      %p187 = scmp.ne.s32.totalorder %s176, %s179
      %p188 = scmp.eq.s32.totalorder %s39, 3
      %p189 = por %p187, %p188
      %p190 = scmp.ne.s32.totalorder %s179, %s180
      %p191 = scmp.eq.s32.totalorder %s39, 0
      %p192 = por %p190, %p191
      %p193 = scmp.ne.s32.totalorder %s179, %s180
      %p194 = scmp.eq.s32.totalorder %s40, 3
      %p195 = por %p193, %p194
      %p197 = scmp.ne.s32.totalorder %s180, %s196
      %p198 = scmp.eq.s32.totalorder %s40, 0
      %p199 = por %p197, %p198
      %s200 = ssub.s32 %s42, %s49
      %p201 = scmp.eq.s32.totalorder %s200, 0
      %s203 = sadd.s32 %s202, 1
      %s204 = scalar_select %p201, %s202, %s203
      %p207 = pneg %p201
      %p208 = scmp.eq.s32.totalorder %s34, 3
      %p209 = por %p207, %p208
      %p210 = scmp.ne.s32.totalorder %s202, %s205
      %p211 = scmp.eq.s32.totalorder %s34, 0
      %p212 = por %p210, %p211
      %p213 = scmp.ne.s32.totalorder %s202, %s205
      %p214 = scmp.eq.s32.totalorder %s39, 3
      %p215 = por %p213, %p214
      %p216 = scmp.ne.s32.totalorder %s205, %s206
      %p217 = scmp.eq.s32.totalorder %s39, 0
      %p218 = por %p216, %p217
      %p219 = scmp.ne.s32.totalorder %s205, %s206
      %p220 = scmp.eq.s32.totalorder %s40, 3
      %p221 = por %p219, %p220
      %p223 = scmp.ne.s32.totalorder %s206, %s222
      %p224 = scmp.eq.s32.totalorder %s40, 0
      %p225 = por %p223, %p224
      %s226 = ssub.s32 %s42, %s49
      %p227 = scmp.eq.s32.totalorder %s226, 0
      %s229 = sadd.s32 %s228, 1
      %s230 = scalar_select %p227, %s228, %s229
      %p233 = pneg %p227
      %p234 = scmp.eq.s32.totalorder %s34, 3
      %p235 = por %p233, %p234
      %p236 = scmp.ne.s32.totalorder %s228, %s231
      %p237 = scmp.eq.s32.totalorder %s34, 0
      %p238 = por %p236, %p237
      %p239 = scmp.ne.s32.totalorder %s228, %s231
      %p240 = scmp.eq.s32.totalorder %s39, 3
      %p241 = por %p239, %p240
      %p242 = scmp.ne.s32.totalorder %s231, %s232
      %p243 = scmp.eq.s32.totalorder %s39, 0
      %p244 = por %p242, %p243
      %p245 = scmp.ne.s32.totalorder %s231, %s232
      %p246 = scmp.eq.s32.totalorder %s40, 3
      %p247 = por %p245, %p246
      %p249 = scmp.ne.s32.totalorder %s232, %s248
      %p250 = scmp.eq.s32.totalorder %s40, 0
      %p251 = por %p249, %p250
      %s252 = ssub.s32 %s42, %s49
      %p253 = scmp.eq.s32.totalorder %s252, 0
      %s255 = sadd.s32 %s254, 1
      %s256 = scalar_select %p253, %s254, %s255
      %p259 = pneg %p253
      %p260 = scmp.eq.s32.totalorder %s34, 3
      %p261 = por %p259, %p260
      %p262 = scmp.ne.s32.totalorder %s254, %s257
      %p263 = scmp.eq.s32.totalorder %s34, 0
      %p264 = por %p262, %p263
      %p265 = scmp.ne.s32.totalorder %s254, %s257
      %p266 = scmp.eq.s32.totalorder %s39, 3
      %p267 = por %p265, %p266
      %p268 = scmp.ne.s32.totalorder %s257, %s258
      %p269 = scmp.eq.s32.totalorder %s39, 0
      %p270 = por %p268, %p269
      %p271 = scmp.ne.s32.totalorder %s257, %s258
      %p272 = scmp.eq.s32.totalorder %s40, 3
      %p273 = por %p271, %p272
      %p275 = scmp.ne.s32.totalorder %s258, %s274
      %p276 = scmp.eq.s32.totalorder %s40, 0
      %p277 = por %p275, %p276
      %s278 = ssub.s32 %s42, %s49
      %p279 = scmp.eq.s32.totalorder %s278, 0
      %s281 = sadd.s32 %s280, 1
      %s282 = scalar_select %p279, %s280, %s281
      %p285 = pneg %p279
      %p286 = scmp.eq.s32.totalorder %s34, 3
      %p287 = por %p285, %p286
      %p288 = scmp.ne.s32.totalorder %s280, %s283
      %p289 = scmp.eq.s32.totalorder %s34, 0
      %p290 = por %p288, %p289
      %p291 = scmp.ne.s32.totalorder %s280, %s283
      %p292 = scmp.eq.s32.totalorder %s39, 3
      %p293 = por %p291, %p292
      %p294 = scmp.ne.s32.totalorder %s283, %s284
      %p295 = scmp.eq.s32.totalorder %s39, 0
      %p296 = por %p294, %p295
      %p297 = scmp.ne.s32.totalorder %s283, %s284
      %p298 = scmp.eq.s32.totalorder %s40, 3
      %p299 = por %p297, %p298
      %p301 = scmp.ne.s32.totalorder %s284, %s300
      %p302 = scmp.eq.s32.totalorder %s40, 0
      %p303 = por %p301, %p302
      %s304 = ssub.s32 %s42, %s49
      %p305 = scmp.eq.s32.totalorder %s304, 0
      %s307 = sadd.s32 %s306, 1
      %s308 = scalar_select %p305, %s306, %s307
      %p311 = pneg %p305
      %p312 = scmp.eq.s32.totalorder %s34, 3
      %p313 = por %p311, %p312
      %p314 = scmp.ne.s32.totalorder %s306, %s309
      %p315 = scmp.eq.s32.totalorder %s34, 0
      %p316 = por %p314, %p315
      %p317 = scmp.ne.s32.totalorder %s306, %s309
      %p318 = scmp.eq.s32.totalorder %s39, 3
      %p319 = por %p317, %p318
      %p320 = scmp.ne.s32.totalorder %s309, %s310
      %p321 = scmp.eq.s32.totalorder %s39, 0
      %p322 = por %p320, %p321
      %p323 = scmp.ne.s32.totalorder %s309, %s310
      %p324 = scmp.eq.s32.totalorder %s40, 3
      %p325 = por %p323, %p324
      %p327 = scmp.ne.s32.totalorder %s310, %s326
      %p328 = scmp.eq.s32.totalorder %s40, 0
      %p329 = por %p327, %p328
      %s330 = ssub.s32 %s42, %s49
      %p331 = scmp.eq.s32.totalorder %s330, 0
      %s333 = sadd.s32 %s332, 1
      %s334 = scalar_select %p331, %s332, %s333
      %p337 = pneg %p331
      %p338 = scmp.eq.s32.totalorder %s34, 3
      %p339 = por %p337, %p338
      %p340 = scmp.ne.s32.totalorder %s332, %s335
      %p341 = scmp.eq.s32.totalorder %s34, 0
      %p342 = por %p340, %p341
      %p343 = scmp.ne.s32.totalorder %s332, %s335
      %p344 = scmp.eq.s32.totalorder %s39, 3
      %p345 = por %p343, %p344
      %p346 = scmp.ne.s32.totalorder %s335, %s336
      %p347 = scmp.eq.s32.totalorder %s39, 0
      %p348 = por %p346, %p347
      %p349 = scmp.ne.s32.totalorder %s335, %s336
      %p350 = scmp.eq.s32.totalorder %s40, 3
      %p351 = por %p349, %p350
      %p353 = scmp.ne.s32.totalorder %s336, %s352
      %p354 = scmp.eq.s32.totalorder %s40, 0
      %p355 = por %p353, %p354
      %s356 = ssub.s32 %s42, %s49
      %p357 = scmp.eq.s32.totalorder %s356, 0
      %s359 = sadd.s32 %s358, 1
      %s360 = scalar_select %p357, %s358, %s359
      %p363 = pneg %p357
      %p364 = scmp.eq.s32.totalorder %s34, 3
      %p365 = por %p363, %p364
      %p366 = scmp.ne.s32.totalorder %s358, %s361
      %p367 = scmp.eq.s32.totalorder %s34, 0
      %p368 = por %p366, %p367
      %p369 = scmp.ne.s32.totalorder %s358, %s361
      %p370 = scmp.eq.s32.totalorder %s39, 3
      %p371 = por %p369, %p370
      %p372 = scmp.ne.s32.totalorder %s361, %s362
      %p373 = scmp.eq.s32.totalorder %s39, 0
      %p374 = por %p372, %p373
      %p375 = scmp.ne.s32.totalorder %s361, %s362
      %p376 = scmp.eq.s32.totalorder %s40, 3
      %p377 = por %p375, %p376
      %p379 = scmp.ne.s32.totalorder %s362, %s378
      %p380 = scmp.eq.s32.totalorder %s40, 0
      %p381 = por %p379, %p380
      %s382 = ssub.s32 %s42, %s49
      %p383 = scmp.eq.s32.totalorder %s382, 0
      %s385 = sadd.s32 %s384, 1
      %s386 = scalar_select %p383, %s384, %s385
      %p389 = pneg %p383
      %p390 = scmp.eq.s32.totalorder %s34, 3
      %p391 = por %p389, %p390
      %p392 = scmp.ne.s32.totalorder %s384, %s387
      %p393 = scmp.eq.s32.totalorder %s34, 0
      %p394 = por %p392, %p393
      %p395 = scmp.ne.s32.totalorder %s384, %s387
      %p396 = scmp.eq.s32.totalorder %s39, 3
      %p397 = por %p395, %p396
      %p398 = scmp.ne.s32.totalorder %s387, %s388
      %p399 = scmp.eq.s32.totalorder %s39, 0
      %p400 = por %p398, %p399
      %p401 = scmp.ne.s32.totalorder %s387, %s388
      %p402 = scmp.eq.s32.totalorder %s40, 3
      %p403 = por %p401, %p402
      %p405 = scmp.ne.s32.totalorder %s388, %s404
      %p406 = scmp.eq.s32.totalorder %s40, 0
      %p407 = por %p405, %p406
      %s408 = ssub.s32 %s42, %s49
      %p409 = scmp.eq.s32.totalorder %s408, 0
      %s411 = sadd.s32 %s410, 1
      %s412 = scalar_select %p409, %s410, %s411
      %p415 = pneg %p409
      %p416 = scmp.eq.s32.totalorder %s34, 3
      %p417 = por %p415, %p416
      %p418 = scmp.ne.s32.totalorder %s410, %s413
      %p419 = scmp.eq.s32.totalorder %s34, 0
      %p420 = por %p418, %p419
      %p421 = scmp.ne.s32.totalorder %s410, %s413
      %p422 = scmp.eq.s32.totalorder %s39, 3
      %p423 = por %p421, %p422
      %p424 = scmp.ne.s32.totalorder %s413, %s414
      %p425 = scmp.eq.s32.totalorder %s39, 0
      %p426 = por %p424, %p425
      %p427 = scmp.ne.s32.totalorder %s413, %s414
      %p428 = scmp.eq.s32.totalorder %s40, 3
      %p429 = por %p427, %p428
      %p431 = scmp.ne.s32.totalorder %s414, %s430
      %p432 = scmp.eq.s32.totalorder %s40, 0
      %p433 = por %p431, %p432
      %s434 = ssub.s32 %s42, %s49
      %p435 = scmp.eq.s32.totalorder %s434, 0
      %s437 = sadd.s32 %s436, 1
      %s438 = scalar_select %p435, %s436, %s437
      %p441 = pneg %p435
      %p442 = scmp.eq.s32.totalorder %s34, 3
      %p443 = por %p441, %p442
      %p444 = scmp.ne.s32.totalorder %s436, %s439
      %p445 = scmp.eq.s32.totalorder %s34, 0
      %p446 = por %p444, %p445
      %p447 = scmp.ne.s32.totalorder %s436, %s439
      %p448 = scmp.eq.s32.totalorder %s39, 3
      %p449 = por %p447, %p448
      %p450 = scmp.ne.s32.totalorder %s439, %s440
      %p451 = scmp.eq.s32.totalorder %s39, 0
      %p452 = por %p450, %p451
      %p453 = scmp.ne.s32.totalorder %s439, %s440
      %p454 = scmp.eq.s32.totalorder %s40, 3
      %p455 = por %p453, %p454
      %p457 = scmp.ne.s32.totalorder %s440, %s456
      %p458 = scmp.eq.s32.totalorder %s40, 0
      %p459 = por %p457, %p458
      %s460 = ssub.s32 %s41, %s53
      %p461 = scmp.eq.s32.totalorder %s460, 0
      %s463 = sadd.s32 %s462, 1
      %s464 = scalar_select %p461, %s462, %s463
      %p467 = pneg %p461
      %p468 = scmp.eq.s32.totalorder %s34, 3
      %p469 = por %p467, %p468
      %p470 = scmp.ne.s32.totalorder %s462, %s465
      %p471 = scmp.eq.s32.totalorder %s34, 0
      %p472 = por %p470, %p471
      %p473 = scmp.ne.s32.totalorder %s462, %s465
      %p474 = scmp.eq.s32.totalorder %s39, 3
      %p475 = por %p473, %p474
      %p476 = scmp.ne.s32.totalorder %s465, %s466
      %p477 = scmp.eq.s32.totalorder %s39, 0
      %p478 = por %p476, %p477
      %p479 = scmp.ne.s32.totalorder %s465, %s466
      %p480 = scmp.eq.s32.totalorder %s40, 3
      %p481 = por %p479, %p480
      %p483 = scmp.ne.s32.totalorder %s466, %s482
      %p484 = scmp.eq.s32.totalorder %s40, 0
      %p485 = por %p483, %p484
      %p486 = scmp.le.s32.totalorder 1, %s34
      %p487 = scmp.lt.s32.totalorder %s34, 5
      %p488 = pnand %p486, %p487
      %p489 = pneg %p488
      // Predicated region
      $region9: #{tpu_custom_call.1} parent=5 // pred_check
        _
      $region10: #{tpu_custom_call.1} parent=5 // pred_check_branch
        %491 = sbr.rel (%p488) target = $region12
      $region11: #{tpu_custom_call.1} parent=5 // pred_region
        %s492 = ssub.s32 %s34, 1
        // Predicated region
        $region13: #{tpu_custom_call.1} parent=11 // pred_check
          %p493 = pneg %p119
        $region14: #{tpu_custom_call.1} parent=11 // pred_check_branch
          %495 = sbr.rel (%p493) target = $region16
        $region15: #{tpu_custom_call.1} parent=11 // pred_region
          _
        $region16: #{tpu_custom_call.1} parent=11 // pred_fallthru
          _
        // Predicated region
        $region17: #{tpu_custom_call.1} parent=11 // pred_check
          %p496 = pneg %p140
        $region18: #{tpu_custom_call.1} parent=11 // pred_check_branch
          %498 = sbr.rel (%p496) target = $region20
        $region19: #{tpu_custom_call.1} parent=11 // pred_region
          %500 = vsyncadd [#allocation7], 0
          %s502 = sshll.u32 %s3, 4
          %s503 = int_to_ptr.hbm [resolvable:$true] %s502
          %s504 = sshll.u32 [#allocation8], 4
          %s505 = int_to_ptr.vmem [resolvable:$true] %s504
          %507 = dma.hbm_to_vmem [thread:$0]  %s503, 16, %s505, [#allocation7]
        $region20: #{tpu_custom_call.1} parent=11 // pred_fallthru
          _
      $region12: #{tpu_custom_call.1} parent=5 // pred_fallthru
        _
      %p508 = scmp.lt.s32.totalorder %s34, 4
      // Predicated region
      $region21: #{tpu_custom_call.1} parent=5 // pred_check
        %p509 = pneg %p508
      $region22: #{tpu_custom_call.1} parent=5 // pred_check_branch
        %511 = sbr.rel (%p509) target = $region24
      $region23: #{tpu_custom_call.1} parent=5 // pred_region
        // Predicated region
        $region25: #{tpu_custom_call.1} parent=23 // pred_check
          %p512 = pneg %p66
        $region26: #{tpu_custom_call.1} parent=23 // pred_check_branch
          %514 = sbr.rel (%p512) target = $region28
        $region27: #{tpu_custom_call.1} parent=23 // pred_region
          %s515 = sand.u32 %s56, 1
          %s516 = scalar_lea.sflag [#allocation4], %s515
          %s517 = sand.u32 %s56, 1
          %s518 = smul.addr %s517, 12
          %s519 = scalar_lea.vmem [#allocation3], %s518
          %s520 = smul.u32 3, %s41
          %522 = vsyncadd %s516, 0
          %s523 = smul.addr %s520, 4
          %s524 = scalar_lea.hbm %s0, %s523
          %s525 = sshll.u32 %s524, 4
          %s526 = int_to_ptr.hbm [resolvable:$true] %s525
          %s527 = sshll.u32 %s519, 4
          %s528 = int_to_ptr.vmem [resolvable:$true] %s527
          %533 = dma.hbm_to_vmem [thread:$0]  %s526, 192, %s528, %s516, 64, 64, 4
        $region28: #{tpu_custom_call.1} parent=23 // pred_fallthru
          _
        // Predicated region
        $region29: #{tpu_custom_call.1} parent=23 // pred_check
          %p534 = pneg %p92
        $region30: #{tpu_custom_call.1} parent=23 // pred_check_branch
          %536 = sbr.rel (%p534) target = $region32
        $region31: #{tpu_custom_call.1} parent=23 // pred_region
          %s537 = sand.u32 %s34, 1
          %s538 = scalar_lea.sflag [#allocation7], %s537
          %s539 = sand.u32 %s82, 1
          %s540 = smul.addr %s539, 3
          %s541 = scalar_lea.vmem [#allocation6], %s540
          %s542 = smul.u32 3, %s41
          %544 = vsyncadd %s538, 0
          %s545 = scalar_lea.hbm %s1, %s542
          %s546 = sshll.u32 %s545, 4
          %s547 = int_to_ptr.hbm [resolvable:$true] %s546
          %s548 = sshll.u32 %s541, 4
          %s549 = int_to_ptr.vmem [resolvable:$true] %s548
          %554 = dma.hbm_to_vmem [thread:$0]  %s547, 48, %s549, %s538, 16, 16, 1
        $region32: #{tpu_custom_call.1} parent=23 // pred_fallthru
          _
        // Predicated region
        $region33: #{tpu_custom_call.1} parent=23 // pred_check
          %p555 = pneg %p160
        $region34: #{tpu_custom_call.1} parent=23 // pred_check_branch
          %557 = sbr.rel (%p555) target = $region36
        $region35: #{tpu_custom_call.1} parent=23 // pred_region
          %p558 = scmp.lt.s32.totalorder %s42, 1
          %s559 = scalar_select %p558, %s42, 1
          %s560 = smul.addr %s559, 4
          %s561 = smul.addr %s560, 4
          %s562 = scalar_lea.vmem %s4, %s561
        $region36: #{tpu_custom_call.1} parent=23 // pred_fallthru
          _
        // Predicated region
        $region37: #{tpu_custom_call.1} parent=23 // pred_check
          %p563 = pneg %p186
        $region38: #{tpu_custom_call.1} parent=23 // pred_check_branch
          %565 = sbr.rel (%p563) target = $region40
        $region39: #{tpu_custom_call.1} parent=23 // pred_region
          %p566 = scmp.lt.s32.totalorder %s42, 1
          %s567 = scalar_select %p566, %s42, 1
          %s568 = scalar_lea.vmem %s5, %s567
        $region40: #{tpu_custom_call.1} parent=23 // pred_fallthru
          _
        // Predicated region
        $region41: #{tpu_custom_call.1} parent=23 // pred_check
          %p569 = pneg %p212
        $region42: #{tpu_custom_call.1} parent=23 // pred_check_branch
          %571 = sbr.rel (%p569) target = $region44
        $region43: #{tpu_custom_call.1} parent=23 // pred_region
          %p572 = scmp.lt.s32.totalorder %s42, 1
          %s573 = scalar_select %p572, %s42, 1
          %s574 = smul.addr %s573, 4
          %s575 = smul.addr %s574, 4
          %s576 = scalar_lea.vmem %s6, %s575
        $region44: #{tpu_custom_call.1} parent=23 // pred_fallthru
          _
        // Predicated region
        $region45: #{tpu_custom_call.1} parent=23 // pred_check
          %p577 = pneg %p238
        $region46: #{tpu_custom_call.1} parent=23 // pred_check_branch
          %579 = sbr.rel (%p577) target = $region48
        $region47: #{tpu_custom_call.1} parent=23 // pred_region
          %p580 = scmp.lt.s32.totalorder %s42, 1
          %s581 = scalar_select %p580, %s42, 1
          %s582 = scalar_lea.vmem %s7, %s581
        $region48: #{tpu_custom_call.1} parent=23 // pred_fallthru
          _
        // Predicated region
        $region49: #{tpu_custom_call.1} parent=23 // pred_check
          %p583 = pneg %p264
        $region50: #{tpu_custom_call.1} parent=23 // pred_check_branch
          %585 = sbr.rel (%p583) target = $region52
        $region51: #{tpu_custom_call.1} parent=23 // pred_region
          %p586 = scmp.lt.s32.totalorder %s42, 1
          %s587 = scalar_select %p586, %s42, 1
          %s588 = scalar_lea.vmem %s8, %s587
        $region52: #{tpu_custom_call.1} parent=23 // pred_fallthru
          _
        // Predicated region
        $region53: #{tpu_custom_call.1} parent=23 // pred_check
          %p589 = pneg %p290
        $region54: #{tpu_custom_call.1} parent=23 // pred_check_branch
          %591 = sbr.rel (%p589) target = $region56
        $region55: #{tpu_custom_call.1} parent=23 // pred_region
          %s592 = sand.u32 %s34, 1
          %s593 = scalar_lea.sflag [#allocation10], %s592
          %s594 = sand.u32 %s280, 1
          %s595 = scalar_lea.vmem [#allocation9], %s594
          %597 = vsyncadd %s593, 0
          %s598 = scalar_lea.hbm %s9, %s42
          %s600 = sshll.u32 %s598, 4
          %s601 = int_to_ptr.hbm [resolvable:$true] %s600
          %s602 = sshll.u32 %s595, 4
          %s603 = int_to_ptr.vmem [resolvable:$true] %s602
          %605 = dma.hbm_to_vmem [thread:$0]  %s601, 16, %s603, %s593
        $region56: #{tpu_custom_call.1} parent=23 // pred_fallthru
          _
        // Predicated region
        $region57: #{tpu_custom_call.1} parent=23 // pred_check
          %p606 = pneg %p316
        $region58: #{tpu_custom_call.1} parent=23 // pred_check_branch
          %608 = sbr.rel (%p606) target = $region60
        $region59: #{tpu_custom_call.1} parent=23 // pred_region
          %p609 = scmp.lt.s32.totalorder %s42, 1
          %s610 = scalar_select %p609, %s42, 1
          %s611 = smul.addr %s610, 4
          %s612 = smul.addr %s611, 4
          %s613 = scalar_lea.vmem %s10, %s612
        $region60: #{tpu_custom_call.1} parent=23 // pred_fallthru
          _
        // Predicated region
        $region61: #{tpu_custom_call.1} parent=23 // pred_check
          %p614 = pneg %p342
        $region62: #{tpu_custom_call.1} parent=23 // pred_check_branch
          %616 = sbr.rel (%p614) target = $region64
        $region63: #{tpu_custom_call.1} parent=23 // pred_region
          %p617 = scmp.lt.s32.totalorder %s42, 1
          %s618 = scalar_select %p617, %s42, 1
          %s619 = scalar_lea.vmem %s11, %s618
        $region64: #{tpu_custom_call.1} parent=23 // pred_fallthru
          _
        // Predicated region
        $region65: #{tpu_custom_call.1} parent=23 // pred_check
          %p620 = pneg %p368
        $region66: #{tpu_custom_call.1} parent=23 // pred_check_branch
          %622 = sbr.rel (%p620) target = $region68
        $region67: #{tpu_custom_call.1} parent=23 // pred_region
          %p623 = scmp.lt.s32.totalorder %s42, 1
          %s624 = scalar_select %p623, %s42, 1
          %s625 = smul.addr %s624, 8
          %s626 = smul.addr %s625, 4
          %s627 = scalar_lea.vmem %s12, %s626
        $region68: #{tpu_custom_call.1} parent=23 // pred_fallthru
          _
        // Predicated region
        $region69: #{tpu_custom_call.1} parent=23 // pred_check
          %p628 = pneg %p394
        $region70: #{tpu_custom_call.1} parent=23 // pred_check_branch
          %630 = sbr.rel (%p628) target = $region72
        $region71: #{tpu_custom_call.1} parent=23 // pred_region
          %p631 = scmp.lt.s32.totalorder %s42, 1
          %s632 = scalar_select %p631, %s42, 1
          %s633 = scalar_lea.vmem %s13, %s632
        $region72: #{tpu_custom_call.1} parent=23 // pred_fallthru
          _
        // Predicated region
        $region73: #{tpu_custom_call.1} parent=23 // pred_check
          %p634 = pneg %p420
        $region74: #{tpu_custom_call.1} parent=23 // pred_check_branch
          %636 = sbr.rel (%p634) target = $region76
        $region75: #{tpu_custom_call.1} parent=23 // pred_region
          %p637 = scmp.lt.s32.totalorder %s42, 1
          %s638 = scalar_select %p637, %s42, 1
          %s639 = scalar_lea.vmem %s14, %s638
        $region76: #{tpu_custom_call.1} parent=23 // pred_fallthru
          _
        // Predicated region
        $region77: #{tpu_custom_call.1} parent=23 // pred_check
          %p640 = pneg %p446
        $region78: #{tpu_custom_call.1} parent=23 // pred_check_branch
          %642 = sbr.rel (%p640) target = $region80
        $region79: #{tpu_custom_call.1} parent=23 // pred_region
          %s643 = sand.u32 %s34, 1
          %s644 = scalar_lea.sflag [#allocation10], %s643
          %s645 = sand.u32 %s436, 1
          %s646 = scalar_lea.vmem [#allocation11], %s645
          %648 = vsyncadd %s644, 0
          %s649 = scalar_lea.hbm %s15, %s42
          %s651 = sshll.u32 %s649, 4
          %s652 = int_to_ptr.hbm [resolvable:$true] %s651
          %s653 = sshll.u32 %s646, 4
          %s654 = int_to_ptr.vmem [resolvable:$true] %s653
          %656 = dma.hbm_to_vmem [thread:$0]  %s652, 16, %s654, %s644
        $region80: #{tpu_custom_call.1} parent=23 // pred_fallthru
          _
      $region24: #{tpu_custom_call.1} parent=5 // pred_fallthru
        _
      %p657 = scmp.le.s32.totalorder 1, %s34
      %p658 = scmp.lt.s32.totalorder %s34, 5
      %p659 = pnand %p657, %p658
      %p660 = pneg %p659
      // Predicated region
      $region81: #{tpu_custom_call.1} parent=5 // pred_check
        _
      $region82: #{tpu_custom_call.1} parent=5 // pred_check_branch
        %662 = sbr.rel (%p659) target = $region84
      $region83: #{tpu_custom_call.1} parent=5 // pred_region
        %s663 = ssub.s32 %s34, 1
        %s664 = sand.u32 %s59, 1
        %s665 = scalar_lea.sflag [#allocation4], %s664
        %s666 = sand.u32 %s59, 1
        %s667 = smul.addr %s666, 12
        %s668 = scalar_lea.vmem [#allocation3], %s667
        // Predicated region
        $region85: #{tpu_custom_call.1} parent=83 // pred_check
          %p669 = pneg %p72
        $region86: #{tpu_custom_call.1} parent=83 // pred_check_branch
          %671 = sbr.rel (%p669) target = $region88
        $region87: #{tpu_custom_call.1} parent=83 // pred_region
          %673 = dma.done %s665, 192
        $region88: #{tpu_custom_call.1} parent=83 // pred_fallthru
          _
        %s674 = sand.u32 %s39, 1
        %s675 = scalar_lea.sflag [#allocation7], %s674
        %s676 = sand.u32 %s85, 1
        %s677 = smul.addr %s676, 3
        %s678 = scalar_lea.vmem [#allocation6], %s677
        // Predicated region
        $region89: #{tpu_custom_call.1} parent=83 // pred_check
          %p679 = pneg %p98
        $region90: #{tpu_custom_call.1} parent=83 // pred_check_branch
          %681 = sbr.rel (%p679) target = $region92
        $region91: #{tpu_custom_call.1} parent=83 // pred_region
          %683 = dma.done %s675, 48
        $region92: #{tpu_custom_call.1} parent=83 // pred_fallthru
          _
        // Predicated region
        $region93: #{tpu_custom_call.1} parent=83 // pred_check
          %p684 = pneg %p140
        $region94: #{tpu_custom_call.1} parent=83 // pred_check_branch
          %686 = sbr.rel (%p684) target = $region96
        $region95: #{tpu_custom_call.1} parent=83 // pred_region
          %688 = dma.done [#allocation7], 16
        $region96: #{tpu_custom_call.1} parent=83 // pred_fallthru
          _
        %s689 = sand.u32 %s39, 1
        %s690 = scalar_lea.sflag [#allocation10], %s689
        %s691 = sand.u32 %s283, 1
        %s692 = scalar_lea.vmem [#allocation9], %s691
        // Predicated region
        $region97: #{tpu_custom_call.1} parent=83 // pred_check
          %p693 = pneg %p296
        $region98: #{tpu_custom_call.1} parent=83 // pred_check_branch
          %695 = sbr.rel (%p693) target = $region100
        $region99: #{tpu_custom_call.1} parent=83 // pred_region
          %697 = dma.done %s690, 16
        $region100: #{tpu_custom_call.1} parent=83 // pred_fallthru
          _
        %s698 = sand.u32 %s39, 1
        %s699 = scalar_lea.sflag [#allocation10], %s698
        %s700 = sand.u32 %s439, 1
        %s701 = scalar_lea.vmem [#allocation11], %s700
        // Predicated region
        $region101: #{tpu_custom_call.1} parent=83 // pred_check
          %p702 = pneg %p452
        $region102: #{tpu_custom_call.1} parent=83 // pred_check_branch
          %704 = sbr.rel (%p702) target = $region104
        $region103: #{tpu_custom_call.1} parent=83 // pred_region
          %706 = dma.done %s699, 16
        $region104: #{tpu_custom_call.1} parent=83 // pred_fallthru
          _
        %s707 = sand.u32 %s59, 1
        %s708 = scalar_lea.sflag [#allocation4], %s707
        %s709 = sand.u32 %s59, 1
        %s710 = smul.addr %s709, 12
        %s711 = scalar_lea.vmem [#allocation3], %s710
        %p712 = pneg %p72
        %p713 = pneg %p69
        %s714 = sand.u32 %s39, 1
        %s715 = scalar_lea.sflag [#allocation7], %s714
        %s716 = sand.u32 %s85, 1
        %s717 = smul.addr %s716, 3
        %s718 = scalar_lea.vmem [#allocation6], %s717
        %p719 = pneg %p98
        %p720 = pneg %p95
        %p721 = pneg %p119
        %p722 = pneg %p116
        %p723 = pneg %p140
        %p724 = pneg %p137
        %p725 = scmp.lt.s32.totalorder %s44, 1
        %s726 = scalar_select %p725, %s44, 1
        %s727 = smul.addr %s726, 4
        %s728 = smul.addr %s727, 4
        %s729 = scalar_lea.vmem %s4, %s728
        %p730 = pneg %p166
        %p731 = pneg %p163
        %p732 = scmp.lt.s32.totalorder %s44, 1
        %s733 = scalar_select %p732, %s44, 1
        %s734 = scalar_lea.vmem %s5, %s733
        %p735 = pneg %p192
        %p736 = pneg %p189
        %p737 = scmp.lt.s32.totalorder %s44, 1
        %s738 = scalar_select %p737, %s44, 1
        %s739 = smul.addr %s738, 4
        %s740 = smul.addr %s739, 4
        %s741 = scalar_lea.vmem %s6, %s740
        %p742 = pneg %p218
        %p743 = pneg %p215
        %p744 = scmp.lt.s32.totalorder %s44, 1
        %s745 = scalar_select %p744, %s44, 1
        %s746 = scalar_lea.vmem %s7, %s745
        %p747 = pneg %p244
        %p748 = pneg %p241
        %p749 = scmp.lt.s32.totalorder %s44, 1
        %s750 = scalar_select %p749, %s44, 1
        %s751 = scalar_lea.vmem %s8, %s750
        %p752 = pneg %p270
        %p753 = pneg %p267
        %s754 = sand.u32 %s39, 1
        %s755 = scalar_lea.sflag [#allocation10], %s754
        %s756 = sand.u32 %s283, 1
        %s757 = scalar_lea.vmem [#allocation9], %s756
        %p758 = pneg %p296
        %p759 = pneg %p293
        %p760 = scmp.lt.s32.totalorder %s44, 1
        %s761 = scalar_select %p760, %s44, 1
        %s762 = smul.addr %s761, 4
        %s763 = smul.addr %s762, 4
        %s764 = scalar_lea.vmem %s10, %s763
        %p765 = pneg %p322
        %p766 = pneg %p319
        %p767 = scmp.lt.s32.totalorder %s44, 1
        %s768 = scalar_select %p767, %s44, 1
        %s769 = scalar_lea.vmem %s11, %s768
        %p770 = pneg %p348
        %p771 = pneg %p345
        %p772 = scmp.lt.s32.totalorder %s44, 1
        %s773 = scalar_select %p772, %s44, 1
        %s774 = smul.addr %s773, 8
        %s775 = smul.addr %s774, 4
        %s776 = scalar_lea.vmem %s12, %s775
        %p777 = pneg %p374
        %p778 = pneg %p371
        %p779 = scmp.lt.s32.totalorder %s44, 1
        %s780 = scalar_select %p779, %s44, 1
        %s781 = scalar_lea.vmem %s13, %s780
        %p782 = pneg %p400
        %p783 = pneg %p397
        %p784 = scmp.lt.s32.totalorder %s44, 1
        %s785 = scalar_select %p784, %s44, 1
        %s786 = scalar_lea.vmem %s14, %s785
        %p787 = pneg %p426
        %p788 = pneg %p423
        %s789 = sand.u32 %s39, 1
        %s790 = scalar_lea.sflag [#allocation10], %s789
        %s791 = sand.u32 %s439, 1
        %s792 = scalar_lea.vmem [#allocation11], %s791
        %p793 = pneg %p452
        %p794 = pneg %p449
        %p795 = pneg %p478
        %p796 = pneg %p475
        %s797 = sand.u32 %s465, 1
        %s798 = scalar_lea.sflag [#allocation5], %s797
        %s799 = sand.u32 %s465, 1
        %s800 = smul.addr %s799, 3
        %s801 = scalar_lea.vmem [#allocation12], %s800
        %s802 = smul.u32 3, %s43
        %s803 = smul.u32 3, %s43
        %p804 = scmp.lt.s32.totalorder %s44, 1
        %s805 = scalar_select %p804, %s44, 1
        %s806 = smul.addr %s805, 4
        %s807 = smul.addr %s806, 4
        %s808 = scalar_lea.vmem %s4, %s807
        %p809 = scmp.lt.s32.totalorder %s44, 1
        %s810 = scalar_select %p809, %s44, 1
        %s811 = scalar_lea.vmem %s5, %s810
        %p812 = scmp.lt.s32.totalorder %s44, 1
        %s813 = scalar_select %p812, %s44, 1
        %s814 = smul.addr %s813, 4
        %s815 = smul.addr %s814, 4
        %s816 = scalar_lea.vmem %s6, %s815
        %p817 = scmp.lt.s32.totalorder %s44, 1
        %s818 = scalar_select %p817, %s44, 1
        %s819 = scalar_lea.vmem %s7, %s818
        %p820 = scmp.lt.s32.totalorder %s44, 1
        %s821 = scalar_select %p820, %s44, 1
        %s822 = scalar_lea.vmem %s8, %s821
        %p823 = scmp.lt.s32.totalorder %s44, 1
        %s824 = scalar_select %p823, %s44, 1
        %s825 = smul.addr %s824, 4
        %s826 = smul.addr %s825, 4
        %s827 = scalar_lea.vmem %s10, %s826
        %p828 = scmp.lt.s32.totalorder %s44, 1
        %s829 = scalar_select %p828, %s44, 1
        %s830 = scalar_lea.vmem %s11, %s829
        %p831 = scmp.lt.s32.totalorder %s44, 1
        %s832 = scalar_select %p831, %s44, 1
        %s833 = smul.addr %s832, 8
        %s834 = smul.addr %s833, 4
        %s835 = scalar_lea.vmem %s12, %s834
        %p836 = scmp.lt.s32.totalorder %s44, 1
        %s837 = scalar_select %p836, %s44, 1
        %s838 = scalar_lea.vmem %s13, %s837
        %p839 = scmp.lt.s32.totalorder %s44, 1
        %s840 = scalar_select %p839, %s44, 1
        %s841 = scalar_lea.vmem %s14, %s840
        %s842 = smul.u32 3, %s43
        %p844 = scmp.eq.s32.totalorder %s44, 0
        // Predicated region
        $region105: #{tpu_custom_call.1} parent=83 // pred_check
          %p845 = pneg %p844
        $region106: #{tpu_custom_call.1} parent=83 // pred_check_branch
          %847 = sbr.rel (%p845) target = $region108
        $region107: #{tpu_custom_call.1} parent=83 // pred_region
          %v848 = vld [vmem:[%s668] sm:$0xf]
          %v849 = vld [vmem:[%s668 + $0x4] sm:$0xf]
          %v850 = vld [vmem:[%s668 + $0x8] sm:$0xf]
          %v851 = vunpack.c.l.bf16 %v848
          %v852 = vunpack.c.l.bf16 %v849
          %v853 = vunpack.c.l.bf16 %v850
          %v854 = vld [vmem:[%s2] sm:$0x1]
          %v855 = vld [vmem:[#allocation8] sm:$0x1]
          %vm856 = vcmask 261120
          %v857 = vsel %vm856, %v851, 0.0
          %858 = vadd.xlane.f32.xlu0 %v857
          %v859 = vpop.xlane.xlu0 %858
          %v860 = vsel %vm856, %v852, 0.0
          %861 = vadd.xlane.f32.xlu0 %v860
          %v862 = vpop.xlane.xlu0 %861
          %v863 = vsel %vm856, %v853, 0.0
          %864 = vadd.xlane.f32.xlu0 %v863
          %v865 = vpop.xlane.xlu0 %864
          %v866 = vrcp.pop 32.0
          %v867 = vmul.f32 32.0, %v866
          %v868 = vsub.f32 1.0, %v867
          %v869 = vmul.f32 %v866, %v868
          %v870 = vadd.f32 %v866, %v869
          %vm871 = vweird.f32 %v866
          %v872 = vsel %vm871, %v866, %v870
          %v873 = vmul.f32 %v859, %v872
          %v874 = vmul.f32 %v862, %v872
          %v875 = vmul.f32 %v865, %v872
          %v876 = vsub.f32 %v851, %v873
          %v877 = vsub.f32 %v852, %v874
          %v878 = vsub.f32 %v853, %v875
          %v879 = vmul.f32 %v876, %v876
          %v880 = vmul.f32 %v877, %v877
          %v881 = vmul.f32 %v878, %v878
          %v882 = vsel %vm856, %v879, 0.0
          %883 = vadd.xlane.f32.xlu0 %v882
          %v884 = vpop.xlane.xlu0 %883
          %v885 = vsel %vm856, %v880, 0.0
          %886 = vadd.xlane.f32.xlu0 %v885
          %v887 = vpop.xlane.xlu0 %886
          %v888 = vsel %vm856, %v881, 0.0
          %889 = vadd.xlane.f32.xlu0 %v888
          %v890 = vpop.xlane.xlu0 %889
          %v891 = vmul.f32 %v884, %v872
          %v892 = vmul.f32 %v887, %v872
          %v893 = vmul.f32 %v890, %v872
          %v894 = vadd.f32 %v891, 1e-06
          %v895 = vadd.f32 %v892, 1e-06
          %v896 = vadd.f32 %v893, 1e-06
          %v897 = vrsqrt.pop %v894
          %v898 = vmul.f32 %v897, %v894
          %v899 = vmul.f32 %v898, %v897
          %v900 = vmul.f32 0.5, %v899
          %v901 = vsub.f32 1.5, %v900
          %v902 = vmul.f32 %v897, %v901
          %vm903 = vweird.f32 %v894
          %vm904 = vweird.f32 %v897
          %vm905 = vmor %vm903, %vm904
          %v906 = vsel %vm905, %v897, %v902
          %v907 = vrsqrt.pop %v895
          %v908 = vmul.f32 %v907, %v895
          %v909 = vmul.f32 %v908, %v907
          %v910 = vmul.f32 0.5, %v909
          %v911 = vsub.f32 1.5, %v910
          %v912 = vmul.f32 %v907, %v911
          %vm913 = vweird.f32 %v895
          %vm914 = vweird.f32 %v907
          %vm915 = vmor %vm913, %vm914
          %v916 = vsel %vm915, %v907, %v912
          %v917 = vrsqrt.pop %v896
          %v918 = vmul.f32 %v917, %v896
          %v919 = vmul.f32 %v918, %v917
          %v920 = vmul.f32 0.5, %v919
          %v921 = vsub.f32 1.5, %v920
          %v922 = vmul.f32 %v917, %v921
          %vm923 = vweird.f32 %v896
          %vm924 = vweird.f32 %v917
          %vm925 = vmor %vm923, %vm924
          %v926 = vsel %vm925, %v917, %v922
          %v927 = vmul.f32 %v876, %v906
          %v928 = vmul.f32 %v877, %v916
          %v929 = vmul.f32 %v878, %v926
          %v931 = vperm.slane %v854, 0
          %v933 = vmul.f32 %v927, %v931
          %v934 = vmul.f32 %v928, %v931
          %v935 = vmul.f32 %v929, %v931
          %v937 = vperm.slane %v855, 0
          %v939 = vadd.f32 %v933, %v937
          %v940 = vadd.f32 %v934, %v937
          %v941 = vadd.f32 %v935, %v937
          %942 = vst.msk [vmem:[#allocation2] sm:$0xff] %vm856, %v939
          %943 = vst.msk [vmem:[#allocation2 + $0x8] sm:$0xff] %vm856, %v940
          %944 = vst.msk [vmem:[#allocation2 + $0x10] sm:$0xff] %vm856, %v941
        $region108: #{tpu_custom_call.1} parent=83 // pred_fallthru
          _
        %v945 = vld [vmem:[#allocation2] sm:$0xff]
        %v946 = vld [vmem:[#allocation2 + $0x8] sm:$0xff]
        %v947 = vld [vmem:[#allocation2 + $0x10] sm:$0xff]
        %v948 = vpack.c.bf16 %v946, %v945
        %v949 = vpack.c.bf16 %v947, %v947
        %v950 = vld [vmem:[%s808] sm:$0xf]
        %v951 = vld [vmem:[%s808 + $0x4] sm:$0xf]
        %v952 = vld [vmem:[%s808 + $0x8] sm:$0xf]
        %v953 = vld [vmem:[%s808 + $0xc] sm:$0xf]
        %v954 = vld [vmem:[%s811] sm:$0x1]
        %v956 = vperm.slane %v954, 0
        %v962 = vunpack.c.l.b16 %v950
        %v963 = vunpack.c.l.b16 %v951
        %v964 = vunpack.c.l.b16 %v952
        %v965 = vunpack.c.l.b16 %v953
        %v966 = vpack.c.b16 %v963, %v962
        %v967 = vpack.c.b16 %v965, %v964
        %vm970 = vcmask 261120
        %v972 = vsel %vm970, %v948, 0
        %v975 = vsel %vm970, %v949, 0
        %977 = vmatpush.bf16.msra.mxu0 0
        %978 = vmatpush.bf16.msra.mxu0 0
        %979 = vmatpush.bf16.msra.mxu0 0
        %980 = vmatpush.bf16.msra.mxu0 0
        %981 = vmatpush.bf16.msra.mxu0 0
        %982 = vmatpush.bf16.msra.mxu0 0
        %983 = vmatpush.bf16.msra.mxu0 %v967
        %984 = vmatpush.bf16.msra.mxu0 %v966
        %985 = vmatmul.bf16.gmra.mxu0 %v972
        %v986 = vpop.f32.mrf.mxu0
        %v987 = vadd.f32 %v956, %v986
        %v988 = vpop.f32.mrf.mxu0
        %v989 = vadd.f32 %v956, %v988
        %990 = vmatmul.bf16.gmra.mxu0 %v975
        %v991 = vpop.f32.mrf.mxu0
        %v992 = vadd.f32 %v956, %v991
        %v993 = vpop.f32.mrf.mxu0
        %994 = vdwg.mxu0
        %v995 = vpack.c.bf16 %v987, %v987
        %v996 = vpack.c.bf16 %v989, %v989
        %v997 = vpack.c.bf16 %v992, %v992
        %v998 = vld [vmem:[%s678] sm:$0x1]
        %v999 = vld [vmem:[%s678 + $0x1] sm:$0x1]
        %v1000 = vld [vmem:[%s678 + $0x2] sm:$0x1]
        %v1004 = vperm.slane %v998, 0
        %v1005 = vperm.slane %v999, 0
        %v1006 = vperm.slane %v1000, 0
        %v1011 = vunpack.c.l.b16 %v995
        %v1012 = vpack.c.b16 %v1011, %v1011
        %1013 = vrot.lane.b32.xlu0 %v1012, 96
        %v1014 = vpop.permute.xlu0 %1013
        %vm1015 = vcmask 64512
        %v1017 = vsel %vm1015, %v995, 0
        %v1020 = vsel %vm1015, %v1014, 0
        %1022 = vmatpush.bf16.xpose.msra.mxu0 0
        %1023 = vmatpush.bf16.xpose.msra.mxu0 0
        %1024 = vmatpush.bf16.xpose.msra.mxu0 0
        %1025 = vmatpush.bf16.xpose.msra.mxu0 0
        %1026 = vmatpush.bf16.xpose.msra.mxu0 0
        %1027 = vmatpush.bf16.xpose.msra.mxu0 0
        %1028 = vmatpush.bf16.xpose.msra.mxu0 0
        %1029 = vmatpush.bf16.xpose.msra.mxu0 %v1020
        %1030 = vmatmul.bf16.gmra.mxu0 %v1017
        %v1031 = vpop.f32.mrf.mxu0
        %v1032 = vadd.f32 %v1004, %v1031
        %v1033 = vpop.f32.mrf.mxu0
        %1034 = vdwg.mxu0
        %v1036 = vunpack.c.l.b16 %v996
        %v1037 = vpack.c.b16 %v1036, %v1036
        %1038 = vrot.lane.b32.xlu0 %v1037, 96
        %v1039 = vpop.permute.xlu0 %1038
        %v1041 = vsel %vm1015, %v996, 0
        %v1044 = vsel %vm1015, %v1039, 0
        %1046 = vmatpush.bf16.xpose.msra.mxu0 0
        %1047 = vmatpush.bf16.xpose.msra.mxu0 0
        %1048 = vmatpush.bf16.xpose.msra.mxu0 0
        %1049 = vmatpush.bf16.xpose.msra.mxu0 0
        %1050 = vmatpush.bf16.xpose.msra.mxu0 0
        %1051 = vmatpush.bf16.xpose.msra.mxu0 0
        %1052 = vmatpush.bf16.xpose.msra.mxu0 0
        %1053 = vmatpush.bf16.xpose.msra.mxu0 %v1044
        %1054 = vmatmul.bf16.gmra.mxu0 %v1041
        %v1055 = vpop.f32.mrf.mxu0
        %v1056 = vadd.f32 %v1005, %v1055
        %v1057 = vpop.f32.mrf.mxu0
        %1058 = vdwg.mxu0
        %v1060 = vunpack.c.l.b16 %v997
        %v1061 = vpack.c.b16 %v1060, %v1060
        %1062 = vrot.lane.b32.xlu0 %v1061, 96
        %v1063 = vpop.permute.xlu0 %1062
        %v1065 = vsel %vm1015, %v997, 0
        %v1068 = vsel %vm1015, %v1063, 0
        %1070 = vmatpush.bf16.xpose.msra.mxu0 0
        %1071 = vmatpush.bf16.xpose.msra.mxu0 0
        %1072 = vmatpush.bf16.xpose.msra.mxu0 0
        %1073 = vmatpush.bf16.xpose.msra.mxu0 0
        %1074 = vmatpush.bf16.xpose.msra.mxu0 0
        %1075 = vmatpush.bf16.xpose.msra.mxu0 0
        %1076 = vmatpush.bf16.xpose.msra.mxu0 0
        %1077 = vmatpush.bf16.xpose.msra.mxu0 %v1068
        %1078 = vmatmul.bf16.gmra.mxu0 %v1065
        %v1079 = vpop.f32.mrf.mxu0
        %v1080 = vadd.f32 %v1006, %v1079
        %v1081 = vpop.f32.mrf.mxu0
        %1082 = vdwg.mxu0
        %v1083 = vsel %vm1015, %v1032, -inf
        %1084 = vmax.xlane.f32.xlu0 %v1083
        %v1085 = vpop.xlane.xlu0 %1084
        %v1086 = vsel %vm1015, %v1056, -inf
        %1087 = vmax.xlane.f32.xlu0 %v1086
        %v1088 = vpop.xlane.xlu0 %1087
        %v1089 = vsel %vm1015, %v1080, -inf
        %1090 = vmax.xlane.f32.xlu0 %v1089
        %v1091 = vpop.xlane.xlu0 %1090
        %v1092 = vsub.f32 %v1032, %v1085
        %v1093 = vsub.f32 %v1056, %v1088
        %v1094 = vsub.f32 %v1080, %v1091
        %v1095 = vmul.f32 %v1092, 1.442695
        %v1096 = vpow.pop %v1095
        %v1097 = vmul.f32 %v1093, 1.442695
        %v1098 = vpow.pop %v1097
        %v1099 = vmul.f32 %v1094, 1.442695
        %v1100 = vpow.pop %v1099
        %v1101 = vsel %vm1015, %v1096, 0.0
        %1102 = vadd.xlane.f32.xlu0 %v1101
        %v1103 = vpop.xlane.xlu0 %1102
        %v1104 = vsel %vm1015, %v1098, 0.0
        %1105 = vadd.xlane.f32.xlu0 %v1104
        %v1106 = vpop.xlane.xlu0 %1105
        %v1107 = vsel %vm1015, %v1100, 0.0
        %1108 = vadd.xlane.f32.xlu0 %v1107
        %v1109 = vpop.xlane.xlu0 %1108
        %v1110 = vrcp.pop %v1103
        %v1111 = vrcp.pop %v1106
        %v1112 = vrcp.pop %v1109
        %v1113 = vmul.f32 %v1096, %v1110
        %v1114 = vmul.f32 %v1098, %v1111
        %v1115 = vmul.f32 %v1100, %v1112
        %v1116 = vpack.c.bf16 %v1113, %v1113
        %v1117 = vpack.c.bf16 %v1114, %v1114
        %v1118 = vpack.c.bf16 %v1115, %v1115
        %1119 = vrot.lane.b32.xlu0 %v1012, 64
        %v1120 = vpop.permute.xlu0 %1119
        %v1122 = vsel %vm1015, %v1116, 0
        %vm1124 = vcmask 1043456
        %v1126 = vsel %vm1124, %v1120, 0
        %1128 = vmatpush.bf16.msra.mxu0 0
        %1129 = vmatpush.bf16.msra.mxu0 0
        %1130 = vmatpush.bf16.msra.mxu0 0
        %1131 = vmatpush.bf16.msra.mxu0 0
        %1132 = vmatpush.bf16.msra.mxu0 0
        %1133 = vmatpush.bf16.msra.mxu0 0
        %1134 = vmatpush.bf16.msra.mxu0 0
        %1135 = vmatpush.bf16.msra.mxu0 %v1126
        %1136 = vmatmul.bf16.gmra.mxu0 %v1122
        %v1137 = vpop.f32.mrf.mxu0
        %v1138 = vadd.f32 0.0, %v1137
        %v1139 = vpop.f32.mrf.mxu0
        %1140 = vdwg.mxu0
        %1141 = vrot.lane.b32.xlu0 %v1037, 64
        %v1142 = vpop.permute.xlu0 %1141
        %v1144 = vsel %vm1015, %v1117, 0
        %v1147 = vsel %vm1124, %v1142, 0
        %1149 = vmatpush.bf16.msra.mxu0 0
        %1150 = vmatpush.bf16.msra.mxu0 0
        %1151 = vmatpush.bf16.msra.mxu0 0
        %1152 = vmatpush.bf16.msra.mxu0 0
        %1153 = vmatpush.bf16.msra.mxu0 0
        %1154 = vmatpush.bf16.msra.mxu0 0
        %1155 = vmatpush.bf16.msra.mxu0 0
        %1156 = vmatpush.bf16.msra.mxu0 %v1147
        %1157 = vmatmul.bf16.gmra.mxu0 %v1144
        %v1158 = vpop.f32.mrf.mxu0
        %v1159 = vadd.f32 0.0, %v1158
        %v1160 = vpop.f32.mrf.mxu0
        %1161 = vdwg.mxu0
        %1162 = vrot.lane.b32.xlu0 %v1061, 64
        %v1163 = vpop.permute.xlu0 %1162
        %v1165 = vsel %vm1015, %v1118, 0
        %v1168 = vsel %vm1124, %v1163, 0
        %1170 = vmatpush.bf16.msra.mxu0 0
        %1171 = vmatpush.bf16.msra.mxu0 0
        %1172 = vmatpush.bf16.msra.mxu0 0
        %1173 = vmatpush.bf16.msra.mxu0 0
        %1174 = vmatpush.bf16.msra.mxu0 0
        %1175 = vmatpush.bf16.msra.mxu0 0
        %1176 = vmatpush.bf16.msra.mxu0 0
        %1177 = vmatpush.bf16.msra.mxu0 %v1168
        %1178 = vmatmul.bf16.gmra.mxu0 %v1165
        %v1179 = vpop.f32.mrf.mxu0
        %v1180 = vadd.f32 0.0, %v1179
        %v1181 = vpop.f32.mrf.mxu0
        %1182 = vdwg.mxu0
        %v1183 = vpack.c.bf16 %v1159, %v1138
        %v1184 = vpack.c.bf16 %v1180, %v1180
        %v1185 = vld [vmem:[%s816] sm:$0xf]
        %1186 = vrot.lane.b32.xlu0 %v1012, 120
        %v1187 = vpop.permute.xlu0 %1186
        %1188 = vrot.lane.b32.xlu0 %v1012, 88
        %v1189 = vpop.permute.xlu0 %1188
        %v1191 = vsel %vm1015, %v1187, 0
        %v1194 = vsel %vm1015, %v1189, 0
        %1196 = vmatpush.bf16.xpose.msra.mxu0 0
        %1197 = vmatpush.bf16.xpose.msra.mxu0 0
        %1198 = vmatpush.bf16.xpose.msra.mxu0 0
        %1199 = vmatpush.bf16.xpose.msra.mxu0 0
        %1200 = vmatpush.bf16.xpose.msra.mxu0 0
        %1201 = vmatpush.bf16.xpose.msra.mxu0 0
        %1202 = vmatpush.bf16.xpose.msra.mxu0 0
        %1203 = vmatpush.bf16.xpose.msra.mxu0 %v1194
        %1204 = vmatmul.bf16.gmra.mxu0 %v1191
        %v1205 = vpop.f32.mrf.mxu0
        %v1206 = vadd.f32 %v1004, %v1205
        %v1207 = vpop.f32.mrf.mxu0
        %1208 = vdwg.mxu0
        %1209 = vrot.lane.b32.xlu0 %v1037, 120
        %v1210 = vpop.permute.xlu0 %1209
        %1211 = vrot.lane.b32.xlu0 %v1037, 88
        %v1212 = vpop.permute.xlu0 %1211
        %v1214 = vsel %vm1015, %v1210, 0
        %v1217 = vsel %vm1015, %v1212, 0
        %1219 = vmatpush.bf16.xpose.msra.mxu0 0
        %1220 = vmatpush.bf16.xpose.msra.mxu0 0
        %1221 = vmatpush.bf16.xpose.msra.mxu0 0
        %1222 = vmatpush.bf16.xpose.msra.mxu0 0
        %1223 = vmatpush.bf16.xpose.msra.mxu0 0
        %1224 = vmatpush.bf16.xpose.msra.mxu0 0
        %1225 = vmatpush.bf16.xpose.msra.mxu0 0
        %1226 = vmatpush.bf16.xpose.msra.mxu0 %v1217
        %1227 = vmatmul.bf16.gmra.mxu0 %v1214
        %v1228 = vpop.f32.mrf.mxu0
        %v1229 = vadd.f32 %v1005, %v1228
        %v1230 = vpop.f32.mrf.mxu0
        %1231 = vdwg.mxu0
        %1232 = vrot.lane.b32.xlu0 %v1061, 120
        %v1233 = vpop.permute.xlu0 %1232
        %1234 = vrot.lane.b32.xlu0 %v1061, 88
        %v1235 = vpop.permute.xlu0 %1234
        %v1237 = vsel %vm1015, %v1233, 0
        %v1240 = vsel %vm1015, %v1235, 0
        %1242 = vmatpush.bf16.xpose.msra.mxu0 0
        %1243 = vmatpush.bf16.xpose.msra.mxu0 0
        %1244 = vmatpush.bf16.xpose.msra.mxu0 0
        %1245 = vmatpush.bf16.xpose.msra.mxu0 0
        %1246 = vmatpush.bf16.xpose.msra.mxu0 0
        %1247 = vmatpush.bf16.xpose.msra.mxu0 0
        %1248 = vmatpush.bf16.xpose.msra.mxu0 0
        %1249 = vmatpush.bf16.xpose.msra.mxu0 %v1240
        %1250 = vmatmul.bf16.gmra.mxu0 %v1237
        %v1251 = vpop.f32.mrf.mxu0
        %v1252 = vadd.f32 %v1006, %v1251
        %v1253 = vpop.f32.mrf.mxu0
        %1254 = vdwg.mxu0
        %v1255 = vsel %vm1015, %v1206, -inf
        %1256 = vmax.xlane.f32.xlu0 %v1255
        %v1257 = vpop.xlane.xlu0 %1256
        %v1258 = vsel %vm1015, %v1229, -inf
        %1259 = vmax.xlane.f32.xlu0 %v1258
        %v1260 = vpop.xlane.xlu0 %1259
        %v1261 = vsel %vm1015, %v1252, -inf
        %1262 = vmax.xlane.f32.xlu0 %v1261
        %v1263 = vpop.xlane.xlu0 %1262
        %v1264 = vsub.f32 %v1206, %v1257
        %v1265 = vsub.f32 %v1229, %v1260
        %v1266 = vsub.f32 %v1252, %v1263
        %v1267 = vmul.f32 %v1264, 1.442695
        %v1268 = vpow.pop %v1267
        %v1269 = vmul.f32 %v1265, 1.442695
        %v1270 = vpow.pop %v1269
        %v1271 = vmul.f32 %v1266, 1.442695
        %v1272 = vpow.pop %v1271
        %v1273 = vsel %vm1015, %v1268, 0.0
        %1274 = vadd.xlane.f32.xlu0 %v1273
        %v1275 = vpop.xlane.xlu0 %1274
        %v1276 = vsel %vm1015, %v1270, 0.0
        %1277 = vadd.xlane.f32.xlu0 %v1276
        %v1278 = vpop.xlane.xlu0 %1277
        %v1279 = vsel %vm1015, %v1272, 0.0
        %1280 = vadd.xlane.f32.xlu0 %v1279
        %v1281 = vpop.xlane.xlu0 %1280
        %v1282 = vrcp.pop %v1275
        %v1283 = vrcp.pop %v1278
        %v1284 = vrcp.pop %v1281
        %v1285 = vmul.f32 %v1268, %v1282
        %v1286 = vmul.f32 %v1270, %v1283
        %v1287 = vmul.f32 %v1272, %v1284
        %v1288 = vpack.c.bf16 %v1285, %v1285
        %v1289 = vpack.c.bf16 %v1286, %v1286
        %v1290 = vpack.c.bf16 %v1287, %v1287
        %1291 = vrot.lane.b32.xlu0 %v1012, 56
        %v1292 = vpop.permute.xlu0 %1291
        %v1294 = vsel %vm1015, %v1288, 0
        %v1297 = vsel %vm1124, %v1292, 0
        %1299 = vmatpush.bf16.msra.mxu0 0
        %1300 = vmatpush.bf16.msra.mxu0 0
        %1301 = vmatpush.bf16.msra.mxu0 0
        %1302 = vmatpush.bf16.msra.mxu0 0
        %1303 = vmatpush.bf16.msra.mxu0 0
        %1304 = vmatpush.bf16.msra.mxu0 0
        %1305 = vmatpush.bf16.msra.mxu0 0
        %1306 = vmatpush.bf16.msra.mxu0 %v1297
        %1307 = vmatmul.bf16.gmra.mxu0 %v1294
        %v1308 = vpop.f32.mrf.mxu0
        %v1309 = vadd.f32 0.0, %v1308
        %v1310 = vpop.f32.mrf.mxu0
        %1311 = vdwg.mxu0
        %1312 = vrot.lane.b32.xlu0 %v1037, 56
        %v1313 = vpop.permute.xlu0 %1312
        %v1315 = vsel %vm1015, %v1289, 0
        %v1318 = vsel %vm1124, %v1313, 0
        %1320 = vmatpush.bf16.msra.mxu0 0
        %1321 = vmatpush.bf16.msra.mxu0 0
        %1322 = vmatpush.bf16.msra.mxu0 0
        %1323 = vmatpush.bf16.msra.mxu0 0
        %1324 = vmatpush.bf16.msra.mxu0 0
        %1325 = vmatpush.bf16.msra.mxu0 0
        %1326 = vmatpush.bf16.msra.mxu0 0
        %1327 = vmatpush.bf16.msra.mxu0 %v1318
        %1328 = vmatmul.bf16.gmra.mxu0 %v1315
        %v1329 = vpop.f32.mrf.mxu0
        %v1330 = vadd.f32 0.0, %v1329
        %v1331 = vpop.f32.mrf.mxu0
        %1332 = vdwg.mxu0
        %1333 = vrot.lane.b32.xlu0 %v1061, 56
        %v1334 = vpop.permute.xlu0 %1333
        %v1336 = vsel %vm1015, %v1290, 0
        %v1339 = vsel %vm1124, %v1334, 0
        %1341 = vmatpush.bf16.msra.mxu0 0
        %1342 = vmatpush.bf16.msra.mxu0 0
        %1343 = vmatpush.bf16.msra.mxu0 0
        %1344 = vmatpush.bf16.msra.mxu0 0
        %1345 = vmatpush.bf16.msra.mxu0 0
        %1346 = vmatpush.bf16.msra.mxu0 0
        %1347 = vmatpush.bf16.msra.mxu0 0
        %1348 = vmatpush.bf16.msra.mxu0 %v1339
        %1349 = vmatmul.bf16.gmra.mxu0 %v1336
        %v1350 = vpop.f32.mrf.mxu0
        %v1351 = vadd.f32 0.0, %v1350
        %v1352 = vpop.f32.mrf.mxu0
        %1353 = vdwg.mxu0
        %v1354 = vpack.c.bf16 %v1330, %v1309
        %v1355 = vpack.c.bf16 %v1351, %v1351
        %v1356 = vld [vmem:[%s816 + $0x4] sm:$0xf]
        %v1358 = vsel %vm1015, %v1354, 0
        %v1361 = vsel %vm1015, %v1355, 0
        %v1364 = vsel %vm1124, %v1356, 0
        %1366 = vmatpush.bf16.msra.mxu0 0
        %1367 = vmatpush.bf16.msra.mxu0 0
        %1368 = vmatpush.bf16.msra.mxu0 0
        %1369 = vmatpush.bf16.msra.mxu0 0
        %1370 = vmatpush.bf16.msra.mxu0 0
        %1371 = vmatpush.bf16.msra.mxu0 0
        %1372 = vmatpush.bf16.msra.mxu0 0
        %1373 = vmatpush.bf16.msra.mxu0 %v1364
        %1374 = vmatmul.bf16.gmra.mxu0 %v1358
        %v1375 = vpop.f32.mrf.mxu0
        %v1376 = vadd.f32 0.0, %v1375
        %v1377 = vpop.f32.mrf.mxu0
        %v1378 = vadd.f32 0.0, %v1377
        %1379 = vmatmul.bf16.gmra.mxu0 %v1361
        %v1380 = vpop.f32.mrf.mxu0
        %v1381 = vadd.f32 0.0, %v1380
        %v1382 = vpop.f32.mrf.mxu0
        %1383 = vdwg.mxu0
        %v1385 = vsel %vm1015, %v1183, 0
        %v1388 = vsel %vm1015, %v1184, 0
        %v1391 = vsel %vm1124, %v1185, 0
        %1393 = vmatpush.bf16.msra.mxu0 0
        %1394 = vmatpush.bf16.msra.mxu0 0
        %1395 = vmatpush.bf16.msra.mxu0 0
        %1396 = vmatpush.bf16.msra.mxu0 0
        %1397 = vmatpush.bf16.msra.mxu0 0
        %1398 = vmatpush.bf16.msra.mxu0 0
        %1399 = vmatpush.bf16.msra.mxu0 0
        %1400 = vmatpush.bf16.msra.mxu0 %v1391
        %1401 = vmatmul.bf16.gmra.mxu0 %v1385
        %v1402 = vpop.f32.mrf.mxu0
        %v1403 = vadd.f32 %v1376, %v1402
        %v1404 = vpop.f32.mrf.mxu0
        %v1405 = vadd.f32 %v1378, %v1404
        %1406 = vmatmul.bf16.gmra.mxu0 %v1388
        %v1407 = vpop.f32.mrf.mxu0
        %v1408 = vadd.f32 %v1381, %v1407
        %v1409 = vpop.f32.mrf.mxu0
        %1410 = vdwg.mxu0
        %1411 = vrot.lane.b32.xlu0 %v1012, 112
        %v1412 = vpop.permute.xlu0 %1411
        %1413 = vrot.lane.b32.xlu0 %v1012, 80
        %v1414 = vpop.permute.xlu0 %1413
        %v1416 = vsel %vm1015, %v1412, 0
        %v1419 = vsel %vm1015, %v1414, 0
        %1421 = vmatpush.bf16.xpose.msra.mxu0 0
        %1422 = vmatpush.bf16.xpose.msra.mxu0 0
        %1423 = vmatpush.bf16.xpose.msra.mxu0 0
        %1424 = vmatpush.bf16.xpose.msra.mxu0 0
        %1425 = vmatpush.bf16.xpose.msra.mxu0 0
        %1426 = vmatpush.bf16.xpose.msra.mxu0 0
        %1427 = vmatpush.bf16.xpose.msra.mxu0 0
        %1428 = vmatpush.bf16.xpose.msra.mxu0 %v1419
        %1429 = vmatmul.bf16.gmra.mxu0 %v1416
        %v1430 = vpop.f32.mrf.mxu0
        %v1431 = vadd.f32 %v1004, %v1430
        %v1432 = vpop.f32.mrf.mxu0
        %1433 = vdwg.mxu0
        %1434 = vrot.lane.b32.xlu0 %v1037, 112
        %v1435 = vpop.permute.xlu0 %1434
        %1436 = vrot.lane.b32.xlu0 %v1037, 80
        %v1437 = vpop.permute.xlu0 %1436
        %v1439 = vsel %vm1015, %v1435, 0
        %v1442 = vsel %vm1015, %v1437, 0
        %1444 = vmatpush.bf16.xpose.msra.mxu0 0
        %1445 = vmatpush.bf16.xpose.msra.mxu0 0
        %1446 = vmatpush.bf16.xpose.msra.mxu0 0
        %1447 = vmatpush.bf16.xpose.msra.mxu0 0
        %1448 = vmatpush.bf16.xpose.msra.mxu0 0
        %1449 = vmatpush.bf16.xpose.msra.mxu0 0
        %1450 = vmatpush.bf16.xpose.msra.mxu0 0
        %1451 = vmatpush.bf16.xpose.msra.mxu0 %v1442
        %1452 = vmatmul.bf16.gmra.mxu0 %v1439
        %v1453 = vpop.f32.mrf.mxu0
        %v1454 = vadd.f32 %v1005, %v1453
        %v1455 = vpop.f32.mrf.mxu0
        %1456 = vdwg.mxu0
        %1457 = vrot.lane.b32.xlu0 %v1061, 112
        %v1458 = vpop.permute.xlu0 %1457
        %1459 = vrot.lane.b32.xlu0 %v1061, 80
        %v1460 = vpop.permute.xlu0 %1459
        %v1462 = vsel %vm1015, %v1458, 0
        %v1465 = vsel %vm1015, %v1460, 0
        %1467 = vmatpush.bf16.xpose.msra.mxu0 0
        %1468 = vmatpush.bf16.xpose.msra.mxu0 0
        %1469 = vmatpush.bf16.xpose.msra.mxu0 0
        %1470 = vmatpush.bf16.xpose.msra.mxu0 0
        %1471 = vmatpush.bf16.xpose.msra.mxu0 0
        %1472 = vmatpush.bf16.xpose.msra.mxu0 0
        %1473 = vmatpush.bf16.xpose.msra.mxu0 0
        %1474 = vmatpush.bf16.xpose.msra.mxu0 %v1465
        %1475 = vmatmul.bf16.gmra.mxu0 %v1462
        %v1476 = vpop.f32.mrf.mxu0
        %v1477 = vadd.f32 %v1006, %v1476
        %v1478 = vpop.f32.mrf.mxu0
        %1479 = vdwg.mxu0
        %v1480 = vsel %vm1015, %v1431, -inf
        %1481 = vmax.xlane.f32.xlu0 %v1480
        %v1482 = vpop.xlane.xlu0 %1481
        %v1483 = vsel %vm1015, %v1454, -inf
        %1484 = vmax.xlane.f32.xlu0 %v1483
        %v1485 = vpop.xlane.xlu0 %1484
        %v1486 = vsel %vm1015, %v1477, -inf
        %1487 = vmax.xlane.f32.xlu0 %v1486
        %v1488 = vpop.xlane.xlu0 %1487
        %v1489 = vsub.f32 %v1431, %v1482
        %v1490 = vsub.f32 %v1454, %v1485
        %v1491 = vsub.f32 %v1477, %v1488
        %v1492 = vmul.f32 %v1489, 1.442695
        %v1493 = vpow.pop %v1492
        %v1494 = vmul.f32 %v1490, 1.442695
        %v1495 = vpow.pop %v1494
        %v1496 = vmul.f32 %v1491, 1.442695
        %v1497 = vpow.pop %v1496
        %v1498 = vsel %vm1015, %v1493, 0.0
        %1499 = vadd.xlane.f32.xlu0 %v1498
        %v1500 = vpop.xlane.xlu0 %1499
        %v1501 = vsel %vm1015, %v1495, 0.0
        %1502 = vadd.xlane.f32.xlu0 %v1501
        %v1503 = vpop.xlane.xlu0 %1502
        %v1504 = vsel %vm1015, %v1497, 0.0
        %1505 = vadd.xlane.f32.xlu0 %v1504
        %v1506 = vpop.xlane.xlu0 %1505
        %v1507 = vrcp.pop %v1500
        %v1508 = vrcp.pop %v1503
        %v1509 = vrcp.pop %v1506
        %v1510 = vmul.f32 %v1493, %v1507
        %v1511 = vmul.f32 %v1495, %v1508
        %v1512 = vmul.f32 %v1497, %v1509
        %v1513 = vpack.c.bf16 %v1510, %v1510
        %v1514 = vpack.c.bf16 %v1511, %v1511
        %v1515 = vpack.c.bf16 %v1512, %v1512
        %1516 = vrot.lane.b32.xlu0 %v1012, 48
        %v1517 = vpop.permute.xlu0 %1516
        %v1519 = vsel %vm1015, %v1513, 0
        %v1522 = vsel %vm1124, %v1517, 0
        %1524 = vmatpush.bf16.msra.mxu0 0
        %1525 = vmatpush.bf16.msra.mxu0 0
        %1526 = vmatpush.bf16.msra.mxu0 0
        %1527 = vmatpush.bf16.msra.mxu0 0
        %1528 = vmatpush.bf16.msra.mxu0 0
        %1529 = vmatpush.bf16.msra.mxu0 0
        %1530 = vmatpush.bf16.msra.mxu0 0
        %1531 = vmatpush.bf16.msra.mxu0 %v1522
        %1532 = vmatmul.bf16.gmra.mxu0 %v1519
        %v1533 = vpop.f32.mrf.mxu0
        %v1534 = vadd.f32 0.0, %v1533
        %v1535 = vpop.f32.mrf.mxu0
        %1536 = vdwg.mxu0
        %1537 = vrot.lane.b32.xlu0 %v1037, 48
        %v1538 = vpop.permute.xlu0 %1537
        %v1540 = vsel %vm1015, %v1514, 0
        %v1543 = vsel %vm1124, %v1538, 0
        %1545 = vmatpush.bf16.msra.mxu0 0
        %1546 = vmatpush.bf16.msra.mxu0 0
        %1547 = vmatpush.bf16.msra.mxu0 0
        %1548 = vmatpush.bf16.msra.mxu0 0
        %1549 = vmatpush.bf16.msra.mxu0 0
        %1550 = vmatpush.bf16.msra.mxu0 0
        %1551 = vmatpush.bf16.msra.mxu0 0
        %1552 = vmatpush.bf16.msra.mxu0 %v1543
        %1553 = vmatmul.bf16.gmra.mxu0 %v1540
        %v1554 = vpop.f32.mrf.mxu0
        %v1555 = vadd.f32 0.0, %v1554
        %v1556 = vpop.f32.mrf.mxu0
        %1557 = vdwg.mxu0
        %1558 = vrot.lane.b32.xlu0 %v1061, 48
        %v1559 = vpop.permute.xlu0 %1558
        %v1561 = vsel %vm1015, %v1515, 0
        %v1564 = vsel %vm1124, %v1559, 0
        %1566 = vmatpush.bf16.msra.mxu0 0
        %1567 = vmatpush.bf16.msra.mxu0 0
        %1568 = vmatpush.bf16.msra.mxu0 0
        %1569 = vmatpush.bf16.msra.mxu0 0
        %1570 = vmatpush.bf16.msra.mxu0 0
        %1571 = vmatpush.bf16.msra.mxu0 0
        %1572 = vmatpush.bf16.msra.mxu0 0
        %1573 = vmatpush.bf16.msra.mxu0 %v1564
        %1574 = vmatmul.bf16.gmra.mxu0 %v1561
        %v1575 = vpop.f32.mrf.mxu0
        %v1576 = vadd.f32 0.0, %v1575
        %v1577 = vpop.f32.mrf.mxu0
        %1578 = vdwg.mxu0
        %v1579 = vpack.c.bf16 %v1555, %v1534
        %v1580 = vpack.c.bf16 %v1576, %v1576
        %v1581 = vld [vmem:[%s816 + $0x8] sm:$0xf]
        %v1583 = vsel %vm1015, %v1579, 0
        %v1586 = vsel %vm1015, %v1580, 0
        %v1589 = vsel %vm1124, %v1581, 0
        %1591 = vmatpush.bf16.msra.mxu0 0
        %1592 = vmatpush.bf16.msra.mxu0 0
        %1593 = vmatpush.bf16.msra.mxu0 0
        %1594 = vmatpush.bf16.msra.mxu0 0
        %1595 = vmatpush.bf16.msra.mxu0 0
        %1596 = vmatpush.bf16.msra.mxu0 0
        %1597 = vmatpush.bf16.msra.mxu0 0
        %1598 = vmatpush.bf16.msra.mxu0 %v1589
        %1599 = vmatmul.bf16.gmra.mxu0 %v1583
        %v1600 = vpop.f32.mrf.mxu0
        %v1601 = vadd.f32 0.0, %v1600
        %v1602 = vpop.f32.mrf.mxu0
        %v1603 = vadd.f32 0.0, %v1602
        %1604 = vmatmul.bf16.gmra.mxu0 %v1586
        %v1605 = vpop.f32.mrf.mxu0
        %v1606 = vadd.f32 0.0, %v1605
        %v1607 = vpop.f32.mrf.mxu0
        %1608 = vdwg.mxu0
        %v1609 = vadd.f32 %v1403, %v1601
        %v1610 = vadd.f32 %v1405, %v1603
        %v1611 = vadd.f32 %v1408, %v1606
        %1612 = vrot.lane.b32.xlu0 %v1012, 104
        %v1613 = vpop.permute.xlu0 %1612
        %1614 = vrot.lane.b32.xlu0 %v1012, 72
        %v1615 = vpop.permute.xlu0 %1614
        %v1617 = vsel %vm1015, %v1613, 0
        %v1620 = vsel %vm1015, %v1615, 0
        %1622 = vmatpush.bf16.xpose.msra.mxu0 0
        %1623 = vmatpush.bf16.xpose.msra.mxu0 0
        %1624 = vmatpush.bf16.xpose.msra.mxu0 0
        %1625 = vmatpush.bf16.xpose.msra.mxu0 0
        %1626 = vmatpush.bf16.xpose.msra.mxu0 0
        %1627 = vmatpush.bf16.xpose.msra.mxu0 0
        %1628 = vmatpush.bf16.xpose.msra.mxu0 0
        %1629 = vmatpush.bf16.xpose.msra.mxu0 %v1620
        %1630 = vmatmul.bf16.gmra.mxu0 %v1617
        %v1631 = vpop.f32.mrf.mxu0
        %v1632 = vadd.f32 %v1004, %v1631
        %v1633 = vpop.f32.mrf.mxu0
        %1634 = vdwg.mxu0
        %1635 = vrot.lane.b32.xlu0 %v1037, 104
        %v1636 = vpop.permute.xlu0 %1635
        %1637 = vrot.lane.b32.xlu0 %v1037, 72
        %v1638 = vpop.permute.xlu0 %1637
        %v1640 = vsel %vm1015, %v1636, 0
        %v1643 = vsel %vm1015, %v1638, 0
        %1645 = vmatpush.bf16.xpose.msra.mxu0 0
        %1646 = vmatpush.bf16.xpose.msra.mxu0 0
        %1647 = vmatpush.bf16.xpose.msra.mxu0 0
        %1648 = vmatpush.bf16.xpose.msra.mxu0 0
        %1649 = vmatpush.bf16.xpose.msra.mxu0 0
        %1650 = vmatpush.bf16.xpose.msra.mxu0 0
        %1651 = vmatpush.bf16.xpose.msra.mxu0 0
        %1652 = vmatpush.bf16.xpose.msra.mxu0 %v1643
        %1653 = vmatmul.bf16.gmra.mxu0 %v1640
        %v1654 = vpop.f32.mrf.mxu0
        %v1655 = vadd.f32 %v1005, %v1654
        %v1656 = vpop.f32.mrf.mxu0
        %1657 = vdwg.mxu0
        %1658 = vrot.lane.b32.xlu0 %v1061, 104
        %v1659 = vpop.permute.xlu0 %1658
        %1660 = vrot.lane.b32.xlu0 %v1061, 72
        %v1661 = vpop.permute.xlu0 %1660
        %v1663 = vsel %vm1015, %v1659, 0
        %v1666 = vsel %vm1015, %v1661, 0
        %1668 = vmatpush.bf16.xpose.msra.mxu0 0
        %1669 = vmatpush.bf16.xpose.msra.mxu0 0
        %1670 = vmatpush.bf16.xpose.msra.mxu0 0
        %1671 = vmatpush.bf16.xpose.msra.mxu0 0
        %1672 = vmatpush.bf16.xpose.msra.mxu0 0
        %1673 = vmatpush.bf16.xpose.msra.mxu0 0
        %1674 = vmatpush.bf16.xpose.msra.mxu0 0
        %1675 = vmatpush.bf16.xpose.msra.mxu0 %v1666
        %1676 = vmatmul.bf16.gmra.mxu0 %v1663
        %v1677 = vpop.f32.mrf.mxu0
        %v1678 = vadd.f32 %v1006, %v1677
        %v1679 = vpop.f32.mrf.mxu0
        %1680 = vdwg.mxu0
        %v1681 = vsel %vm1015, %v1632, -inf
        %1682 = vmax.xlane.f32.xlu0 %v1681
        %v1683 = vpop.xlane.xlu0 %1682
        %v1684 = vsel %vm1015, %v1655, -inf
        %1685 = vmax.xlane.f32.xlu0 %v1684
        %v1686 = vpop.xlane.xlu0 %1685
        %v1687 = vsel %vm1015, %v1678, -inf
        %1688 = vmax.xlane.f32.xlu0 %v1687
        %v1689 = vpop.xlane.xlu0 %1688
        %v1690 = vsub.f32 %v1632, %v1683
        %v1691 = vsub.f32 %v1655, %v1686
        %v1692 = vsub.f32 %v1678, %v1689
        %v1693 = vmul.f32 %v1690, 1.442695
        %v1694 = vpow.pop %v1693
        %v1695 = vmul.f32 %v1691, 1.442695
        %v1696 = vpow.pop %v1695
        %v1697 = vmul.f32 %v1692, 1.442695
        %v1698 = vpow.pop %v1697
        %v1699 = vsel %vm1015, %v1694, 0.0
        %1700 = vadd.xlane.f32.xlu0 %v1699
        %v1701 = vpop.xlane.xlu0 %1700
        %v1702 = vsel %vm1015, %v1696, 0.0
        %1703 = vadd.xlane.f32.xlu0 %v1702
        %v1704 = vpop.xlane.xlu0 %1703
        %v1705 = vsel %vm1015, %v1698, 0.0
        %1706 = vadd.xlane.f32.xlu0 %v1705
        %v1707 = vpop.xlane.xlu0 %1706
        %v1708 = vrcp.pop %v1701
        %v1709 = vrcp.pop %v1704
        %v1710 = vrcp.pop %v1707
        %v1711 = vmul.f32 %v1694, %v1708
        %v1712 = vmul.f32 %v1696, %v1709
        %v1713 = vmul.f32 %v1698, %v1710
        %v1714 = vpack.c.bf16 %v1711, %v1711
        %v1715 = vpack.c.bf16 %v1712, %v1712
        %v1716 = vpack.c.bf16 %v1713, %v1713
        %1717 = vrot.lane.b32.xlu0 %v1012, 40
        %v1718 = vpop.permute.xlu0 %1717
        %v1720 = vsel %vm1015, %v1714, 0
        %v1723 = vsel %vm1124, %v1718, 0
        %1725 = vmatpush.bf16.msra.mxu0 0
        %1726 = vmatpush.bf16.msra.mxu0 0
        %1727 = vmatpush.bf16.msra.mxu0 0
        %1728 = vmatpush.bf16.msra.mxu0 0
        %1729 = vmatpush.bf16.msra.mxu0 0
        %1730 = vmatpush.bf16.msra.mxu0 0
        %1731 = vmatpush.bf16.msra.mxu0 0
        %1732 = vmatpush.bf16.msra.mxu0 %v1723
        %1733 = vmatmul.bf16.gmra.mxu0 %v1720
        %v1734 = vpop.f32.mrf.mxu0
        %v1735 = vadd.f32 0.0, %v1734
        %v1736 = vpop.f32.mrf.mxu0
        %1737 = vdwg.mxu0
        %1738 = vrot.lane.b32.xlu0 %v1037, 40
        %v1739 = vpop.permute.xlu0 %1738
        %v1741 = vsel %vm1015, %v1715, 0
        %v1744 = vsel %vm1124, %v1739, 0
        %1746 = vmatpush.bf16.msra.mxu0 0
        %1747 = vmatpush.bf16.msra.mxu0 0
        %1748 = vmatpush.bf16.msra.mxu0 0
        %1749 = vmatpush.bf16.msra.mxu0 0
        %1750 = vmatpush.bf16.msra.mxu0 0
        %1751 = vmatpush.bf16.msra.mxu0 0
        %1752 = vmatpush.bf16.msra.mxu0 0
        %1753 = vmatpush.bf16.msra.mxu0 %v1744
        %1754 = vmatmul.bf16.gmra.mxu0 %v1741
        %v1755 = vpop.f32.mrf.mxu0
        %v1756 = vadd.f32 0.0, %v1755
        %v1757 = vpop.f32.mrf.mxu0
        %1758 = vdwg.mxu0
        %1759 = vrot.lane.b32.xlu0 %v1061, 40
        %v1760 = vpop.permute.xlu0 %1759
        %v1762 = vsel %vm1015, %v1716, 0
        %v1765 = vsel %vm1124, %v1760, 0
        %1767 = vmatpush.bf16.msra.mxu0 0
        %1768 = vmatpush.bf16.msra.mxu0 0
        %1769 = vmatpush.bf16.msra.mxu0 0
        %1770 = vmatpush.bf16.msra.mxu0 0
        %1771 = vmatpush.bf16.msra.mxu0 0
        %1772 = vmatpush.bf16.msra.mxu0 0
        %1773 = vmatpush.bf16.msra.mxu0 0
        %1774 = vmatpush.bf16.msra.mxu0 %v1765
        %1775 = vmatmul.bf16.gmra.mxu0 %v1762
        %v1776 = vpop.f32.mrf.mxu0
        %v1777 = vadd.f32 0.0, %v1776
        %v1778 = vpop.f32.mrf.mxu0
        %1779 = vdwg.mxu0
        %v1780 = vpack.c.bf16 %v1756, %v1735
        %v1781 = vpack.c.bf16 %v1777, %v1777
        %v1782 = vld [vmem:[%s816 + $0xc] sm:$0xf]
        %v1784 = vsel %vm1015, %v1780, 0
        %v1787 = vsel %vm1015, %v1781, 0
        %v1790 = vsel %vm1124, %v1782, 0
        %1792 = vmatpush.bf16.msra.mxu0 0
        %1793 = vmatpush.bf16.msra.mxu0 0
        %1794 = vmatpush.bf16.msra.mxu0 0
        %1795 = vmatpush.bf16.msra.mxu0 0
        %1796 = vmatpush.bf16.msra.mxu0 0
        %1797 = vmatpush.bf16.msra.mxu0 0
        %1798 = vmatpush.bf16.msra.mxu0 0
        %1799 = vmatpush.bf16.msra.mxu0 %v1790
        %1800 = vmatmul.bf16.gmra.mxu0 %v1784
        %v1801 = vpop.f32.mrf.mxu0
        %v1802 = vadd.f32 0.0, %v1801
        %v1803 = vpop.f32.mrf.mxu0
        %v1804 = vadd.f32 0.0, %v1803
        %1805 = vmatmul.bf16.gmra.mxu0 %v1787
        %v1806 = vpop.f32.mrf.mxu0
        %v1807 = vadd.f32 0.0, %v1806
        %v1808 = vpop.f32.mrf.mxu0
        %1809 = vdwg.mxu0
        %v1810 = vadd.f32 %v1609, %v1802
        %v1811 = vadd.f32 %v1610, %v1804
        %v1812 = vadd.f32 %v1611, %v1807
        %v1813 = vld [vmem:[%s819] sm:$0x1]
        %v1815 = vperm.slane %v1813, 0
        %v1817 = vadd.f32 %v1810, %v1815
        %v1818 = vadd.f32 %v1811, %v1815
        %v1819 = vadd.f32 %v1812, %v1815
        %v1820 = vadd.f32 %v945, %v1817
        %v1821 = vadd.f32 %v946, %v1818
        %v1822 = vadd.f32 %v947, %v1819
        %v1823 = vld [vmem:[%s822] sm:$0x1]
        %v1824 = vld [vmem:[%s692] sm:$0x1]
        %v1825 = vsel %vm970, %v1820, 0.0
        %1826 = vadd.xlane.f32.xlu0 %v1825
        %v1827 = vpop.xlane.xlu0 %1826
        %v1828 = vsel %vm970, %v1821, 0.0
        %1829 = vadd.xlane.f32.xlu0 %v1828
        %v1830 = vpop.xlane.xlu0 %1829
        %v1831 = vsel %vm970, %v1822, 0.0
        %1832 = vadd.xlane.f32.xlu0 %v1831
        %v1833 = vpop.xlane.xlu0 %1832
        %v1834 = vrcp.pop 32.0
        %v1835 = vmul.f32 32.0, %v1834
        %v1836 = vsub.f32 1.0, %v1835
        %v1837 = vmul.f32 %v1834, %v1836
        %v1838 = vadd.f32 %v1834, %v1837
        %vm1839 = vweird.f32 %v1834
        %v1840 = vsel %vm1839, %v1834, %v1838
        %v1841 = vmul.f32 %v1827, %v1840
        %v1842 = vmul.f32 %v1830, %v1840
        %v1843 = vmul.f32 %v1833, %v1840
        %v1844 = vsub.f32 %v1820, %v1841
        %v1845 = vsub.f32 %v1821, %v1842
        %v1846 = vsub.f32 %v1822, %v1843
        %v1847 = vmul.f32 %v1844, %v1844
        %v1848 = vmul.f32 %v1845, %v1845
        %v1849 = vmul.f32 %v1846, %v1846
        %v1850 = vsel %vm970, %v1847, 0.0
        %1851 = vadd.xlane.f32.xlu0 %v1850
        %v1852 = vpop.xlane.xlu0 %1851
        %v1853 = vsel %vm970, %v1848, 0.0
        %1854 = vadd.xlane.f32.xlu0 %v1853
        %v1855 = vpop.xlane.xlu0 %1854
        %v1856 = vsel %vm970, %v1849, 0.0
        %1857 = vadd.xlane.f32.xlu0 %v1856
        %v1858 = vpop.xlane.xlu0 %1857
        %v1859 = vmul.f32 %v1852, %v1840
        %v1860 = vmul.f32 %v1855, %v1840
        %v1861 = vmul.f32 %v1858, %v1840
        %v1862 = vadd.f32 %v1859, 1e-06
        %v1863 = vadd.f32 %v1860, 1e-06
        %v1864 = vadd.f32 %v1861, 1e-06
        %v1865 = vrsqrt.pop %v1862
        %v1866 = vmul.f32 %v1865, %v1862
        %v1867 = vmul.f32 %v1866, %v1865
        %v1868 = vmul.f32 0.5, %v1867
        %v1869 = vsub.f32 1.5, %v1868
        %v1870 = vmul.f32 %v1865, %v1869
        %vm1871 = vweird.f32 %v1862
        %vm1872 = vweird.f32 %v1865
        %vm1873 = vmor %vm1871, %vm1872
        %v1874 = vsel %vm1873, %v1865, %v1870
        %v1875 = vrsqrt.pop %v1863
        %v1876 = vmul.f32 %v1875, %v1863
        %v1877 = vmul.f32 %v1876, %v1875
        %v1878 = vmul.f32 0.5, %v1877
        %v1879 = vsub.f32 1.5, %v1878
        %v1880 = vmul.f32 %v1875, %v1879
        %vm1881 = vweird.f32 %v1863
        %vm1882 = vweird.f32 %v1875
        %vm1883 = vmor %vm1881, %vm1882
        %v1884 = vsel %vm1883, %v1875, %v1880
        %v1885 = vrsqrt.pop %v1864
        %v1886 = vmul.f32 %v1885, %v1864
        %v1887 = vmul.f32 %v1886, %v1885
        %v1888 = vmul.f32 0.5, %v1887
        %v1889 = vsub.f32 1.5, %v1888
        %v1890 = vmul.f32 %v1885, %v1889
        %vm1891 = vweird.f32 %v1864
        %vm1892 = vweird.f32 %v1885
        %vm1893 = vmor %vm1891, %vm1892
        %v1894 = vsel %vm1893, %v1885, %v1890
        %v1895 = vmul.f32 %v1844, %v1874
        %v1896 = vmul.f32 %v1845, %v1884
        %v1897 = vmul.f32 %v1846, %v1894
        %v1899 = vperm.slane %v1823, 0
        %v1901 = vmul.f32 %v1895, %v1899
        %v1902 = vmul.f32 %v1896, %v1899
        %v1903 = vmul.f32 %v1897, %v1899
        %v1905 = vperm.slane %v1824, 0
        %v1907 = vadd.f32 %v1901, %v1905
        %v1908 = vadd.f32 %v1902, %v1905
        %v1909 = vadd.f32 %v1903, %v1905
        %v1910 = vpack.c.bf16 %v1908, %v1907
        %v1911 = vpack.c.bf16 %v1909, %v1909
        %v1912 = vld [vmem:[%s827] sm:$0xf]
        %v1913 = vld [vmem:[%s827 + $0x4] sm:$0xf]
        %v1914 = vld [vmem:[%s827 + $0x8] sm:$0xf]
        %v1915 = vld [vmem:[%s827 + $0xc] sm:$0xf]
        %v1916 = vld [vmem:[%s830] sm:$0x1]
        %v1918 = vperm.slane %v1916, 0
        %v1924 = vunpack.c.l.b16 %v1912
        %v1925 = vunpack.c.l.b16 %v1913
        %v1926 = vunpack.c.l.b16 %v1914
        %v1927 = vunpack.c.l.b16 %v1915
        %v1928 = vpack.c.b16 %v1925, %v1924
        %v1929 = vpack.c.b16 %v1927, %v1926
        %v1933 = vsel %vm970, %v1910, 0
        %v1936 = vsel %vm970, %v1911, 0
        %1938 = vmatpush.bf16.msra.mxu0 0
        %1939 = vmatpush.bf16.msra.mxu0 0
        %1940 = vmatpush.bf16.msra.mxu0 0
        %1941 = vmatpush.bf16.msra.mxu0 0
        %1942 = vmatpush.bf16.msra.mxu0 0
        %1943 = vmatpush.bf16.msra.mxu0 0
        %1944 = vmatpush.bf16.msra.mxu0 %v1929
        %1945 = vmatpush.bf16.msra.mxu0 %v1928
        %1946 = vmatmul.bf16.gmra.mxu0 %v1933
        %v1947 = vpop.f32.mrf.mxu0
        %v1948 = vadd.f32 %v1918, %v1947
        %v1949 = vpop.f32.mrf.mxu0
        %v1950 = vadd.f32 %v1918, %v1949
        %1951 = vmatmul.bf16.gmra.mxu0 %v1936
        %v1952 = vpop.f32.mrf.mxu0
        %v1953 = vadd.f32 %v1918, %v1952
        %v1954 = vpop.f32.mrf.mxu0
        %1955 = vdwg.mxu0
        %v1956 = vmul.f32 %v1948, %v1948
        %v1957 = vmul.f32 %v1950, %v1950
        %v1958 = vmul.f32 %v1953, %v1953
        %v1959 = vmul.f32 %v1948, %v1956
        %v1960 = vmul.f32 %v1950, %v1957
        %v1961 = vmul.f32 %v1953, %v1958
        %v1962 = vmul.f32 %v1959, 0.044715
        %v1963 = vmul.f32 %v1960, 0.044715
        %v1964 = vmul.f32 %v1961, 0.044715
        %v1965 = vadd.f32 %v1948, %v1962
        %v1966 = vadd.f32 %v1950, %v1963
        %v1967 = vadd.f32 %v1953, %v1964
        %v1968 = vmul.f32 %v1965, 0.7978846
        %v1969 = vmul.f32 %v1966, 0.7978846
        %v1970 = vmul.f32 %v1967, 0.7978846
        %v1971 = vtanh.pop %v1968
        %v1972 = vtanh.pop %v1969
        %v1973 = vtanh.pop %v1970
        %v1974 = vadd.f32 %v1971, 1.0
        %v1975 = vadd.f32 %v1972, 1.0
        %v1976 = vadd.f32 %v1973, 1.0
        %v1977 = vmul.f32 %v1974, 0.5
        %v1978 = vmul.f32 %v1975, 0.5
        %v1979 = vmul.f32 %v1976, 0.5
        %v1980 = vmul.f32 %v1948, %v1977
        %v1981 = vmul.f32 %v1950, %v1978
        %v1982 = vmul.f32 %v1953, %v1979
        %v1983 = vpack.c.bf16 %v1981, %v1980
        %v1984 = vpack.c.bf16 %v1982, %v1982
        %v1985 = vld [vmem:[%s835] sm:$0xf]
        %v1986 = vld [vmem:[%s835 + $0x4] sm:$0xf]
        %v1987 = vld [vmem:[%s835 + $0x8] sm:$0xf]
        %v1988 = vld [vmem:[%s835 + $0xc] sm:$0xf]
        %v1989 = vld [vmem:[%s835 + $0x10] sm:$0xf]
        %v1990 = vld [vmem:[%s835 + $0x14] sm:$0xf]
        %v1991 = vld [vmem:[%s835 + $0x18] sm:$0xf]
        %v1992 = vld [vmem:[%s835 + $0x1c] sm:$0xf]
        %v1993 = vld [vmem:[%s838] sm:$0x1]
        %v1995 = vperm.slane %v1993, 0
        %v2005 = vunpack.c.l.b16 %v1985
        %v2006 = vunpack.c.l.b16 %v1986
        %v2007 = vunpack.c.l.b16 %v1987
        %v2008 = vunpack.c.l.b16 %v1988
        %v2009 = vunpack.c.l.b16 %v1989
        %v2010 = vunpack.c.l.b16 %v1990
        %v2011 = vunpack.c.l.b16 %v1991
        %v2012 = vunpack.c.l.b16 %v1992
        %v2013 = vpack.c.b16 %v2006, %v2005
        %v2014 = vpack.c.b16 %v2008, %v2007
        %v2015 = vpack.c.b16 %v2010, %v2009
        %v2016 = vpack.c.b16 %v2012, %v2011
        %vm2021 = vcmask 523264
        %v2023 = vsel %vm2021, %v1983, 0
        %v2026 = vsel %vm2021, %v1984, 0
        %2028 = vmatpush.bf16.msra.mxu0 0
        %2029 = vmatpush.bf16.msra.mxu0 0
        %2030 = vmatpush.bf16.msra.mxu0 0
        %2031 = vmatpush.bf16.msra.mxu0 0
        %2032 = vmatpush.bf16.msra.mxu0 %v2016
        %2033 = vmatpush.bf16.msra.mxu0 %v2015
        %2034 = vmatpush.bf16.msra.mxu0 %v2014
        %2035 = vmatpush.bf16.msra.mxu0 %v2013
        %2036 = vmatmul.bf16.gmra.mxu0 %v2023
        %v2037 = vpop.f32.mrf.mxu0
        %v2038 = vadd.f32 %v1995, %v2037
        %v2039 = vpop.f32.mrf.mxu0
        %v2040 = vadd.f32 %v1995, %v2039
        %2041 = vmatmul.bf16.gmra.mxu0 %v2026
        %v2042 = vpop.f32.mrf.mxu0
        %v2043 = vadd.f32 %v1995, %v2042
        %v2044 = vpop.f32.mrf.mxu0
        %2045 = vdwg.mxu0
        %v2046 = vadd.f32 %v1907, %v2038
        %v2047 = vadd.f32 %v1908, %v2040
        %v2048 = vadd.f32 %v1909, %v2043
        %v2049 = vld [vmem:[%s841] sm:$0x1]
        %v2050 = vld [vmem:[%s701] sm:$0x1]
        %v2051 = vsel %vm970, %v2046, 0.0
        %2052 = vadd.xlane.f32.xlu0 %v2051
        %v2053 = vpop.xlane.xlu0 %2052
        %v2054 = vsel %vm970, %v2047, 0.0
        %2055 = vadd.xlane.f32.xlu0 %v2054
        %v2056 = vpop.xlane.xlu0 %2055
        %v2057 = vsel %vm970, %v2048, 0.0
        %2058 = vadd.xlane.f32.xlu0 %v2057
        %v2059 = vpop.xlane.xlu0 %2058
        %v2060 = vmul.f32 %v2053, %v1840
        %v2061 = vmul.f32 %v2056, %v1840
        %v2062 = vmul.f32 %v2059, %v1840
        %v2063 = vsub.f32 %v2046, %v2060
        %v2064 = vsub.f32 %v2047, %v2061
        %v2065 = vsub.f32 %v2048, %v2062
        %v2066 = vmul.f32 %v2063, %v2063
        %v2067 = vmul.f32 %v2064, %v2064
        %v2068 = vmul.f32 %v2065, %v2065
        %v2069 = vsel %vm970, %v2066, 0.0
        %2070 = vadd.xlane.f32.xlu0 %v2069
        %v2071 = vpop.xlane.xlu0 %2070
        %v2072 = vsel %vm970, %v2067, 0.0
        %2073 = vadd.xlane.f32.xlu0 %v2072
        %v2074 = vpop.xlane.xlu0 %2073
        %v2075 = vsel %vm970, %v2068, 0.0
        %2076 = vadd.xlane.f32.xlu0 %v2075
        %v2077 = vpop.xlane.xlu0 %2076
        %v2078 = vmul.f32 %v2071, %v1840
        %v2079 = vmul.f32 %v2074, %v1840
        %v2080 = vmul.f32 %v2077, %v1840
        %v2081 = vadd.f32 %v2078, 1e-06
        %v2082 = vadd.f32 %v2079, 1e-06
        %v2083 = vadd.f32 %v2080, 1e-06
        %v2084 = vrsqrt.pop %v2081
        %v2085 = vmul.f32 %v2084, %v2081
        %v2086 = vmul.f32 %v2085, %v2084
        %v2087 = vmul.f32 0.5, %v2086
        %v2088 = vsub.f32 1.5, %v2087
        %v2089 = vmul.f32 %v2084, %v2088
        %vm2090 = vweird.f32 %v2081
        %vm2091 = vweird.f32 %v2084
        %vm2092 = vmor %vm2090, %vm2091
        %v2093 = vsel %vm2092, %v2084, %v2089
        %v2094 = vrsqrt.pop %v2082
        %v2095 = vmul.f32 %v2094, %v2082
        %v2096 = vmul.f32 %v2095, %v2094
        %v2097 = vmul.f32 0.5, %v2096
        %v2098 = vsub.f32 1.5, %v2097
        %v2099 = vmul.f32 %v2094, %v2098
        %vm2100 = vweird.f32 %v2082
        %vm2101 = vweird.f32 %v2094
        %vm2102 = vmor %vm2100, %vm2101
        %v2103 = vsel %vm2102, %v2094, %v2099
        %v2104 = vrsqrt.pop %v2083
        %v2105 = vmul.f32 %v2104, %v2083
        %v2106 = vmul.f32 %v2105, %v2104
        %v2107 = vmul.f32 0.5, %v2106
        %v2108 = vsub.f32 1.5, %v2107
        %v2109 = vmul.f32 %v2104, %v2108
        %vm2110 = vweird.f32 %v2083
        %vm2111 = vweird.f32 %v2104
        %vm2112 = vmor %vm2110, %vm2111
        %v2113 = vsel %vm2112, %v2104, %v2109
        %v2114 = vmul.f32 %v2063, %v2093
        %v2115 = vmul.f32 %v2064, %v2103
        %v2116 = vmul.f32 %v2065, %v2113
        %v2118 = vperm.slane %v2049, 0
        %v2120 = vmul.f32 %v2114, %v2118
        %v2121 = vmul.f32 %v2115, %v2118
        %v2122 = vmul.f32 %v2116, %v2118
        %v2124 = vperm.slane %v2050, 0
        %v2126 = vadd.f32 %v2120, %v2124
        %v2127 = vadd.f32 %v2121, %v2124
        %v2128 = vadd.f32 %v2122, %v2124
        %2129 = vst.msk [vmem:[#allocation2] sm:$0xff] %vm970, %v2126
        %2130 = vst.msk [vmem:[#allocation2 + $0x8] sm:$0xff] %vm970, %v2127
        %2131 = vst.msk [vmem:[#allocation2 + $0x10] sm:$0xff] %vm970, %v2128
        %p2132 = scmp.eq.s32.totalorder %s44, 1
        // Predicated region
        $region109: #{tpu_custom_call.1} parent=83 // pred_check
          %p2133 = pneg %p2132
        $region110: #{tpu_custom_call.1} parent=83 // pred_check_branch
          %2135 = sbr.rel (%p2133) target = $region112
        $region111: #{tpu_custom_call.1} parent=83 // pred_region
          %v2136 = vld [vmem:[#allocation2] sm:$0x1]
          %v2137 = vld [vmem:[#allocation2 + $0x8] sm:$0x1]
          %v2138 = vld [vmem:[#allocation2 + $0x10] sm:$0x1]
          %vm2139 = vcmask 253952
          %2140 = vst.msk [vmem:[%s801] sm:$0x1] %vm2139, %v2136
          %2141 = vst.msk [vmem:[%s801 + $0x1] sm:$0x1] %vm2139, %v2137
          %2142 = vst.msk [vmem:[%s801 + $0x2] sm:$0x1] %vm2139, %v2138
        $region112: #{tpu_custom_call.1} parent=83 // pred_fallthru
          _
        %s2143 = sand.u32 %s465, 1
        %s2144 = scalar_lea.sflag [#allocation5], %s2143
        %s2145 = sand.u32 %s465, 1
        %s2146 = smul.addr %s2145, 3
        %s2147 = scalar_lea.vmem [#allocation12], %s2146
        // Predicated region
        $region113: #{tpu_custom_call.1} parent=83 // pred_check
          %p2148 = pneg %p475
        $region114: #{tpu_custom_call.1} parent=83 // pred_check_branch
          %2150 = sbr.rel (%p2148) target = $region116
        $region115: #{tpu_custom_call.1} parent=83 // pred_region
          %s2151 = smul.u32 3, %s43
          %2153 = vsyncadd %s2144, 0
          %s2154 = scalar_lea.hbm %s16, %s2151
          %s2155 = sshll.u32 %s2147, 4
          %s2156 = int_to_ptr.vmem [resolvable:$true] %s2155
          %s2157 = sshll.u32 %s2154, 4
          %s2158 = int_to_ptr.hbm [resolvable:$true] %s2157
          %2163 = dma.vmem_to_hbm [thread:$0]  %s2156, 48, %s2158, %s2144, 16, 16, 1
        $region116: #{tpu_custom_call.1} parent=83 // pred_fallthru
          _
      $region84: #{tpu_custom_call.1} parent=5 // pred_fallthru
        _
      %p2164 = scmp.le.s32.totalorder 2, %s34
      // Predicated region
      $region117: #{tpu_custom_call.1} parent=5 // pred_check
        %p2165 = pneg %p2164
      $region118: #{tpu_custom_call.1} parent=5 // pred_check_branch
        %2167 = sbr.rel (%p2165) target = $region120
      $region119: #{tpu_custom_call.1} parent=5 // pred_region
        %s2168 = ssub.s32 %s34, 2
        // Predicated region
        $region121: #{tpu_custom_call.1} parent=119 // pred_check
          %p2169 = pneg %p481
        $region122: #{tpu_custom_call.1} parent=119 // pred_check_branch
          %2171 = sbr.rel (%p2169) target = $region124
        $region123: #{tpu_custom_call.1} parent=119 // pred_region
          %s2172 = sand.u32 %s466, 1
          %s2173 = scalar_lea.sflag [#allocation5], %s2172
          %s2174 = sand.u32 %s466, 1
          %s2175 = smul.addr %s2174, 3
          %s2176 = scalar_lea.vmem [#allocation12], %s2175
          %2178 = dma.done %s2173, 48
        $region124: #{tpu_custom_call.1} parent=119 // pred_fallthru
          _
      $region120: #{tpu_custom_call.1} parent=5 // pred_fallthru
        _
    $region6: #{tpu_custom_call.1} parent=1 // loop_footer
      %s38 = sadd.s32 1, %s34
    $region7: #{tpu_custom_call.1} parent=1 // loop_footer_branch
      %33 = sbr.rel target = $region3
    $region8: #{tpu_custom_call.1} parent=1 // loop_exit
      _
    %2179 = vsyncpa [#allocation4], 1
    %s2180 = scalar_lea.sflag [#allocation4], 1
    %2181 = vsyncpa %s2180, 1
    %2182 = vsyncpa [#allocation7], 1
    %s2183 = scalar_lea.sflag [#allocation7], 1
    %2184 = vsyncpa %s2183, 1
    %2185 = vsyncpa [#allocation10], 1
    %s2186 = scalar_lea.sflag [#allocation10], 1
    %2187 = vsyncpa %s2186, 1
    %2188 = vsyncpa [#allocation5], 1
    %s2189 = scalar_lea.sflag [#allocation5], 1
    %2190 = vsyncpa %s2189, 1

</llo_original>
